<compile_context>
chip_gen: v7x
topology: tpu7x:2x2x1
jax: 0.10.0
libtpu: 0.0.40
codegen_flags: <defaults>
</compile_context>

<pallas_src>
import jax
import jax.numpy as jnp
from jax.experimental import pallas as pl
from jax.experimental.pallas import tpu as pltpu

# ---------------- small LLaMA-style config --------------------------------
HIDDEN = 32
N_HEADS = 4
N_KV_HEADS = 2
GROUP = N_HEADS // N_KV_HEADS
HEAD_DIM = HIDDEN // N_HEADS          # 8
INTERMEDIATE = 64
VOCAB = 64
VOCAB_PAD = 128                       # lane-dense padded logits width
N_LAYERS = 2
SEQ = 8
RMS_EPS = 1e-6
ROPE_THETA = 10000.0
DRAFT_KWARGS = dict(enable=True, mask_out=0.5, min_remain=2,
                    bench_mark=False, fix_layers=[])
NEG_INF = float(jnp.finfo(jnp.float32).min)
ATTN_SCALE = 1.0 / (HEAD_DIM ** 0.5)

NUM_REMAIN = SEQ - int(SEQ * DRAFT_KWARGS['mask_out'])
NUM_REMAIN = max(min(SEQ, DRAFT_KWARGS['min_remain']), NUM_REMAIN)   # = 4


# ---------------- the single fused kernel (no grid) -------------------------
def _fused_decoder_kernel(x_ref, cosq_ref, sinq_ref, cosk_ref, sink_ref,
                          causal_ref, ln1_ref, wq_ref, wqr_ref, wk_ref,
                          wkr_ref, wv_ref, wo_ref, ln2_ref, wg_ref, wu_ref,
                          wd_ref, fnorm_ref, lmh_ref, logits_ref):
    f32 = jnp.float32

    def rmsnorm(v, gain):
        return v * jax.lax.rsqrt(jnp.mean(v * v, axis=-1, keepdims=True) + RMS_EPS) * gain

    x = x_ref[...]                                  # [S, D] residual stream (local value)
    cosq = cosq_ref[...]                            # [H*S, Dh]  cos tiled over heads
    sinq = sinq_ref[...]
    cosk = cosk_ref[...]                            # [KV*S, Dh]
    sink = sink_ref[...]
    causal = causal_ref[...] != 0.0                 # [H*S, S] True -> future key (masked)

    for l in range(N_LAYERS):                       # static, fully unrolled
        # ------------------ attention block ------------------
        h1 = rmsnorm(x, ln1_ref[l])                 # [S, D] f32 (VPU)

        # per-head projections against pre-sliced weights (all land at lane 0),
        # stacked on the SUBLANE axis (free at multiples of 8).
        q = jnp.concatenate(
            [jnp.dot(h1, wq_ref[l, hh], preferred_element_type=f32)
             for hh in range(N_HEADS)], axis=0)                       # [H*S, Dh]
        qr = jnp.concatenate(
            [jnp.dot(h1, wqr_ref[l, hh], preferred_element_type=f32)
             for hh in range(N_HEADS)], axis=0)
        k = jnp.concatenate(
            [jnp.dot(h1, wk_ref[l, g], preferred_element_type=f32)
             for g in range(N_KV_HEADS)], axis=0)                     # [KV*S, Dh]
        kr = jnp.concatenate(
            [jnp.dot(h1, wkr_ref[l, g], preferred_element_type=f32)
             for g in range(N_KV_HEADS)], axis=0)
        v = jnp.concatenate(
            [jnp.dot(h1, wv_ref[l, g], preferred_element_type=f32)
             for g in range(N_KV_HEADS)], axis=0)                     # [KV*S, Dh]

        # RoPE on the full stacked slabs (q columns already carry 1/sqrt(Dh))
        q_rope = q * cosq + qr * sinq               # [H*S, Dh]
        k_rope = k * cosk + kr * sink               # [KV*S, Dh]

        # QK^T per kv-group (GQA, no repeat_kv); sublane-aligned value slices.
        s_all = jnp.concatenate(
            [jax.lax.dot_general(
                q_rope[g * GROUP * SEQ:(g + 1) * GROUP * SEQ, :],
                k_rope[g * SEQ:(g + 1) * SEQ, :],
                (((1,), (1,)), ((), ())), preferred_element_type=f32)
             for g in range(N_KV_HEADS)], axis=0)                     # [H*S, S]

        # draft top-k (threshold at k-th largest) + causal mask, batched over
        # all heads.  NOTE: real-score ties could keep >NUM_REMAIN keys (exact
        # top-k tie-break differs); probability ~0 for random f32 scores.
        draft = jnp.where(causal, NEG_INF, s_all)
        tmp = draft
        for _ in range(NUM_REMAIN - 1):
            tmp = jnp.where(tmp >= jnp.max(tmp, axis=-1, keepdims=True),
                            NEG_INF, tmp)
        kth = jnp.max(tmp, axis=-1, keepdims=True)
        keep = jnp.logical_and(draft >= kth, jnp.logical_not(causal))

        logit = jnp.where(keep, s_all, NEG_INF)
        logit = logit - jnp.max(logit, axis=-1, keepdims=True)
        p = jnp.exp(logit)
        p = p / jnp.sum(p, axis=-1, keepdims=True)  # exact division (EUP/VPU slack)

        # attention output per kv-group, stacked on sublanes
        attn = jnp.concatenate(
            [jnp.dot(p[g * GROUP * SEQ:(g + 1) * GROUP * SEQ, :],
                     v[g * SEQ:(g + 1) * SEQ, :], preferred_element_type=f32)
             for g in range(N_KV_HEADS)], axis=0)                     # [H*S, Dh]

        # o_proj: sum of per-head matmuls (== concat(heads) @ wo), no relayout
        o = jnp.dot(attn[0:SEQ, :], wo_ref[l, 0], preferred_element_type=f32)
        for hh in range(1, N_HEADS):
            o = o + jnp.dot(attn[hh * SEQ:(hh + 1) * SEQ, :], wo_ref[l, hh],
                            preferred_element_type=f32)
        x = x + o

        # ------------------ MLP block ------------------
        h2 = rmsnorm(x, ln2_ref[l])
        gate = jnp.dot(h2, wg_ref[l], preferred_element_type=f32)     # [S, I]
        up = jnp.dot(h2, wu_ref[l], preferred_element_type=f32)       # [S, I]
        act = gate * jax.nn.sigmoid(gate) * up                         # SwiGLU f32
        x = x + jnp.dot(act, wd_ref[l], preferred_element_type=f32)

    # ------------------ final RMSNorm + lm_head (lane-dense 128-wide) --------
    hf = rmsnorm(x, fnorm_ref[...])
    logits_ref[...] = jnp.dot(hf, lmh_ref[...], preferred_element_type=f32)


def fused_decoder_stack(x_emb, p):
    args = (x_emb, p['cos_q'], p['sin_q'], p['cos_k'], p['sin_k'], p['causal'],
            p['ln1'], p['wq'], p['wqr'], p['wk'], p['wkr'], p['wv'], p['wo'],
            p['ln2'], p['wg'], p['wu'], p['wd'], p['fnorm'], p['lm_head'])
    return pl.pallas_call(
        _fused_decoder_kernel,
        out_shape=jax.ShapeDtypeStruct((SEQ, VOCAB_PAD), jnp.float32),
        in_specs=[pl.BlockSpec(memory_space=pltpu.MemorySpace.VMEM)
                  for _ in args],
        out_specs=pl.BlockSpec(memory_space=pltpu.MemorySpace.VMEM),
    )(*args)


# ---------------- RoPE tables (layer-invariant, hoisted) --------------------
def rope_cos_sin(seq_len, dim, theta=ROPE_THETA):
    inv_freq = 1.0 / (theta ** (jnp.arange(0, dim, 2, dtype=jnp.float32) / dim))
    pos = jnp.arange(seq_len, dtype=jnp.float32)      # prefill positions 0..S-1
    freqs = jnp.outer(pos, inv_freq)                  # [S, dim/2]
    emb = jnp.concatenate([freqs, freqs], axis=-1)    # [S, dim]
    return jnp.cos(emb), jnp.sin(emb)


# ---------------- full model forward ----------------------------------------
def model_forward(packed, input_ids, labels=None):
    # TODO(synk): embedding gather + cross-entropy glue stay as tiny XLA ops.
    x = packed['embed'][input_ids[0]]                  # [S, D]
    logits_pad = fused_decoder_stack(x, packed)        # [S, VOCAB_PAD] f32
    logits = logits_pad[:, :VOCAB][None]               # [1, S, V]
    loss = None
    if labels is not None:
        shift_logits = logits[:, :-1, :].reshape(-1, VOCAB)
        shift_labels = labels[:, 1:].reshape(-1)
        logp = jax.nn.log_softmax(shift_logits, axis=-1)
        nll = -jnp.take_along_axis(logp, shift_labels[:, None], axis=-1)[:, 0]
        loss = jnp.mean(nll)                           # CrossEntropyLoss(mean)
    return loss, logits


# ---------------- deterministic parameter init + packing ---------------------
def init_params(key):
    k_embed, k_head, k_layers = jax.random.split(key, 3)

    def w(k, shape):
        return jax.random.normal(k, shape, jnp.float32) * 0.02

    layer_keys = jax.random.split(k_layers, N_LAYERS)
    layers = []
    for lk in layer_keys:
        ks = jax.random.split(lk, 7)
        layers.append(dict(
            ln1=jnp.ones((HIDDEN,), jnp.float32),
            ln2=jnp.ones((HIDDEN,), jnp.float32),
            wq=w(ks[0], (HIDDEN, N_HEADS * HEAD_DIM)),
            wk=w(ks[1], (HIDDEN, N_KV_HEADS * HEAD_DIM)),
            wv=w(ks[2], (HIDDEN, N_KV_HEADS * HEAD_DIM)),
            wo=w(ks[3], (N_HEADS * HEAD_DIM, HIDDEN)),
            wg=w(ks[4], (HIDDEN, INTERMEDIATE)),
            wu=w(ks[5], (HIDDEN, INTERMEDIATE)),
            wd=w(ks[6], (INTERMEDIATE, HIDDEN)),
        ))
    return dict(
        embed=w(k_embed, (VOCAB, HIDDEN)),
        final_norm=jnp.ones((HIDDEN,), jnp.float32),
        lm_head=w(k_head, (HIDDEN, VOCAB)),
        layers=layers,
    )


def pack_params(params):
    """Pre-rotate / per-head-slice / stack weights into the kernel layout (once)."""
    half = HEAD_DIM // 2
    # rotate_half(x) == x @ P  (per head), so rotate_half(h @ W) == h @ (W @ P)
    P = jnp.zeros((HEAD_DIM, HEAD_DIM), jnp.float32)
    P = P.at[half:, :half].set(-jnp.eye(half, dtype=jnp.float32))
    P = P.at[:half, half:].set(jnp.eye(half, dtype=jnp.float32))

    def per_head(wmat, n_heads):          # [D, n_heads*Dh] -> [n_heads, D, Dh]
        return wmat.reshape(HIDDEN, n_heads, HEAD_DIM).transpose(1, 0, 2)

    def rot(wmat, n_heads):               # (W @ P) per head, same column layout
        w3 = wmat.reshape(HIDDEN, n_heads, HEAD_DIM)
        return jnp.einsum('dhe,ef->dhf', w3, P).reshape(HIDDEN, n_heads * HEAD_DIM)

    wq, wqr, wk, wkr, wv, wo, ln1, ln2, wg, wu, wd = ([] for _ in range(11))
    for lp in params['layers']:
        wq_s = lp['wq'] * ATTN_SCALE      # fold 1/sqrt(Dh) into q columns
        wq.append(per_head(wq_s, N_HEADS))
        wqr.append(per_head(rot(wq_s, N_HEADS), N_HEADS))
        wk.append(per_head(lp['wk'], N_KV_HEADS))
        wkr.append(per_head(rot(lp['wk'], N_KV_HEADS), N_KV_HEADS))
        wv.append(per_head(lp['wv'], N_KV_HEADS))
        wo.append(lp['wo'].reshape(N_HEADS, HEAD_DIM, HIDDEN))
        ln1.append(lp['ln1'].reshape(1, HIDDEN))
        ln2.append(lp['ln2'].reshape(1, HIDDEN))
        wg.append(lp['wg'])
        wu.append(lp['wu'])
        wd.append(lp['wd'])

    cos, sin = rope_cos_sin(SEQ, HEAD_DIM)
    q_idx = jnp.arange(SEQ)[:, None]
    k_idx = jnp.arange(SEQ)[None, :]
    causal = (q_idx < k_idx).astype(jnp.float32)               # [S, S], 1 = future
    lm_head_pad = jnp.zeros((HIDDEN, VOCAB_PAD), jnp.float32)
    lm_head_pad = lm_head_pad.at[:, :VOCAB].set(params['lm_head'])

    return dict(
        embed=params['embed'],
        cos_q=jnp.tile(cos, (N_HEADS, 1)), sin_q=jnp.tile(sin, (N_HEADS, 1)),
        cos_k=jnp.tile(cos, (N_KV_HEADS, 1)), sin_k=jnp.tile(sin, (N_KV_HEADS, 1)),
        causal=jnp.tile(causal, (N_HEADS, 1)),                 # [H*S, S]
        ln1=jnp.stack(ln1), ln2=jnp.stack(ln2),
        wq=jnp.stack(wq), wqr=jnp.stack(wqr),
        wk=jnp.stack(wk), wkr=jnp.stack(wkr), wv=jnp.stack(wv),
        wo=jnp.stack(wo),
        wg=jnp.stack(wg), wu=jnp.stack(wu), wd=jnp.stack(wd),
        fnorm=params['final_norm'].reshape(1, HIDDEN),
        lm_head=lm_head_pad,
    )


if __name__ == "__main__":
    key = jax.random.PRNGKey(0)
    k_params, k_ids, k_lbl = jax.random.split(key, 3)

    packed = pack_params(init_params(k_params))
    input_ids = jax.random.randint(k_ids, (1, SEQ), 0, VOCAB, dtype=jnp.int32)
    labels = jax.random.randint(k_lbl, (1, SEQ), 0, VOCAB, dtype=jnp.int32)

    fwd = jax.jit(model_forward)
    loss, logits = fwd(packed, input_ids, labels)
    jax.block_until_ready((loss, logits))

    assert logits.shape == (1, SEQ, VOCAB)
    assert bool(jnp.isfinite(loss)) and bool(jnp.all(jnp.isfinite(logits)))
    print("KERNEL_OK")
</pallas_src>

<mosaic_0001>
module attributes {stable_mosaic.version = 11 : i64} {
  func.func @_fused_decoder_kernel(%arg0: memref<8x32xf32, #tpu.memory_space<vmem>>, %arg1: memref<32x8xf32, #tpu.memory_space<vmem>>, %arg2: memref<32x8xf32, #tpu.memory_space<vmem>>, %arg3: memref<16x8xf32, #tpu.memory_space<vmem>>, %arg4: memref<16x8xf32, #tpu.memory_space<vmem>>, %arg5: memref<32x8xf32, #tpu.memory_space<vmem>>, %arg6: memref<2x1x32xf32, #tpu.memory_space<vmem>>, %arg7: memref<2x4x32x8xf32, #tpu.memory_space<vmem>>, %arg8: memref<2x4x32x8xf32, #tpu.memory_space<vmem>>, %arg9: memref<2x2x32x8xf32, #tpu.memory_space<vmem>>, %arg10: memref<2x2x32x8xf32, #tpu.memory_space<vmem>>, %arg11: memref<2x2x32x8xf32, #tpu.memory_space<vmem>>, %arg12: memref<2x4x8x32xf32, #tpu.memory_space<vmem>>, %arg13: memref<2x1x32xf32, #tpu.memory_space<vmem>>, %arg14: memref<2x32x64xf32, #tpu.memory_space<vmem>>, %arg15: memref<2x32x64xf32, #tpu.memory_space<vmem>>, %arg16: memref<2x64x32xf32, #tpu.memory_space<vmem>>, %arg17: memref<1x32xf32, #tpu.memory_space<vmem>>, %arg18: memref<32x128xf32, #tpu.memory_space<vmem>>, %arg19: memref<8x128xf32, #tpu.memory_space<vmem>>) attributes {dimension_semantics = [], scalar_prefetch = 0 : i64, scratch_operands = 0 : i64, tpu.core_type = #tpu.core_type<tc>} {
    %c0 = arith.constant 0 : index
    %c0_0 = arith.constant 0 : index
    %0 = vector.load %arg0[%c0, %c0_0] : memref<8x32xf32, #tpu.memory_space<vmem>>, vector<8x32xf32>
    %c0_1 = arith.constant 0 : index
    %c0_2 = arith.constant 0 : index
    %1 = vector.load %arg1[%c0_1, %c0_2] : memref<32x8xf32, #tpu.memory_space<vmem>>, vector<32x8xf32>
    %c0_3 = arith.constant 0 : index
    %c0_4 = arith.constant 0 : index
    %2 = vector.load %arg2[%c0_3, %c0_4] : memref<32x8xf32, #tpu.memory_space<vmem>>, vector<32x8xf32>
    %c0_5 = arith.constant 0 : index
    %c0_6 = arith.constant 0 : index
    %3 = vector.load %arg3[%c0_5, %c0_6] : memref<16x8xf32, #tpu.memory_space<vmem>>, vector<16x8xf32>
    %c0_7 = arith.constant 0 : index
    %c0_8 = arith.constant 0 : index
    %4 = vector.load %arg4[%c0_7, %c0_8] : memref<16x8xf32, #tpu.memory_space<vmem>>, vector<16x8xf32>
    %c0_9 = arith.constant 0 : index
    %c0_10 = arith.constant 0 : index
    %5 = vector.load %arg5[%c0_9, %c0_10] : memref<32x8xf32, #tpu.memory_space<vmem>>, vector<32x8xf32>
    %cst = arith.constant 0.000000e+00 : f32
    %6 = vector.broadcast %cst : f32 to vector<32x8xf32>
    %7 = arith.cmpf one, %5, %6 : vector<32x8xf32>
    %c0_11 = arith.constant 0 : index
    %c0_12 = arith.constant 0 : index
    %c0_13 = arith.constant 0 : index
    %8 = vector.load %arg6[%c0_11, %c0_12, %c0_13] : memref<2x1x32xf32, #tpu.memory_space<vmem>>, vector<1x1x32xf32>
    %9 = vector.shape_cast %8 : vector<1x1x32xf32> to vector<1x32xf32>
    %10 = arith.mulf %0, %0 : vector<8x32xf32>
    %cst_14 = arith.constant dense<0.000000e+00> : vector<8xf32>
    %11 = vector.multi_reduction <add>, %10, %cst_14 [1] : vector<8x32xf32> to vector<8xf32>
    %12 = vector.shape_cast %11 : vector<8xf32> to vector<8x1xf32>
    %cst_15 = arith.constant 3.200000e+01 : f32
    %13 = vector.broadcast %cst_15 : f32 to vector<8x1xf32>
    %14 = arith.divf %12, %13 : vector<8x1xf32>
    %cst_16 = arith.constant 9.99999997E-7 : f32
    %15 = vector.broadcast %cst_16 : f32 to vector<8x1xf32>
    %16 = arith.addf %14, %15 : vector<8x1xf32>
    %17 = math.rsqrt %16 : vector<8x1xf32>
    %18 = vector.broadcast %17 : vector<8x1xf32> to vector<8x32xf32>
    %19 = arith.mulf %0, %18 : vector<8x32xf32>
    %20 = vector.broadcast %9 : vector<1x32xf32> to vector<8x32xf32>
    %21 = arith.mulf %19, %20 : vector<8x32xf32>
    %c0_17 = arith.constant 0 : index
    %c0_18 = arith.constant 0 : index
    %c0_19 = arith.constant 0 : index
    %c0_20 = arith.constant 0 : index
    %22 = vector.load %arg7[%c0_17, %c0_18, %c0_19, %c0_20] : memref<2x4x32x8xf32, #tpu.memory_space<vmem>>, vector<1x1x32x8xf32>
    %23 = vector.shape_cast %22 : vector<1x1x32x8xf32> to vector<32x8xf32>
    %cst_21 = arith.constant dense<0.000000e+00> : vector<8x8xf32>
    %24 = tpu.matmul %21, %23, %cst_21 {dimension_numbers = #tpu.dot_dimension_numbers<[1], [0], [0], [1], [0, 0, 1, 1], [], []>} : vector<8x32xf32>, vector<32x8xf32>, vector<8x8xf32> -> vector<8x8xf32>
    %c0_22 = arith.constant 0 : index
    %c1 = arith.constant 1 : index
    %c0_23 = arith.constant 0 : index
    %c0_24 = arith.constant 0 : index
    %25 = vector.load %arg7[%c0_22, %c1, %c0_23, %c0_24] : memref<2x4x32x8xf32, #tpu.memory_space<vmem>>, vector<1x1x32x8xf32>
    %26 = vector.shape_cast %25 : vector<1x1x32x8xf32> to vector<32x8xf32>
    %cst_25 = arith.constant dense<0.000000e+00> : vector<8x8xf32>
    %27 = tpu.matmul %21, %26, %cst_25 {dimension_numbers = #tpu.dot_dimension_numbers<[1], [0], [0], [1], [0, 0, 1, 1], [], []>} : vector<8x32xf32>, vector<32x8xf32>, vector<8x8xf32> -> vector<8x8xf32>
    %c0_26 = arith.constant 0 : index
    %c2 = arith.constant 2 : index
    %c0_27 = arith.constant 0 : index
    %c0_28 = arith.constant 0 : index
    %28 = vector.load %arg7[%c0_26, %c2, %c0_27, %c0_28] : memref<2x4x32x8xf32, #tpu.memory_space<vmem>>, vector<1x1x32x8xf32>
    %29 = vector.shape_cast %28 : vector<1x1x32x8xf32> to vector<32x8xf32>
    %cst_29 = arith.constant dense<0.000000e+00> : vector<8x8xf32>
    %30 = tpu.matmul %21, %29, %cst_29 {dimension_numbers = #tpu.dot_dimension_numbers<[1], [0], [0], [1], [0, 0, 1, 1], [], []>} : vector<8x32xf32>, vector<32x8xf32>, vector<8x8xf32> -> vector<8x8xf32>
    %c0_30 = arith.constant 0 : index
    %c3 = arith.constant 3 : index
    %c0_31 = arith.constant 0 : index
    %c0_32 = arith.constant 0 : index
    %31 = vector.load %arg7[%c0_30, %c3, %c0_31, %c0_32] : memref<2x4x32x8xf32, #tpu.memory_space<vmem>>, vector<1x1x32x8xf32>
    %32 = vector.shape_cast %31 : vector<1x1x32x8xf32> to vector<32x8xf32>
    %cst_33 = arith.constant dense<0.000000e+00> : vector<8x8xf32>
    %33 = tpu.matmul %21, %32, %cst_33 {dimension_numbers = #tpu.dot_dimension_numbers<[1], [0], [0], [1], [0, 0, 1, 1], [], []>} : vector<8x32xf32>, vector<32x8xf32>, vector<8x8xf32> -> vector<8x8xf32>
    %34 = tpu.concatenate %24, %27, %30, %33 in 0 : vector<8x8xf32>, vector<8x8xf32>, vector<8x8xf32>, vector<8x8xf32> -> vector<32x8xf32>
    %c0_34 = arith.constant 0 : index
    %c0_35 = arith.constant 0 : index
    %c0_36 = arith.constant 0 : index
    %c0_37 = arith.constant 0 : index
    %35 = vector.load %arg8[%c0_34, %c0_35, %c0_36, %c0_37] : memref<2x4x32x8xf32, #tpu.memory_space<vmem>>, vector<1x1x32x8xf32>
    %36 = vector.shape_cast %35 : vector<1x1x32x8xf32> to vector<32x8xf32>
    %cst_38 = arith.constant dense<0.000000e+00> : vector<8x8xf32>
    %37 = tpu.matmul %21, %36, %cst_38 {dimension_numbers = #tpu.dot_dimension_numbers<[1], [0], [0], [1], [0, 0, 1, 1], [], []>} : vector<8x32xf32>, vector<32x8xf32>, vector<8x8xf32> -> vector<8x8xf32>
    %c0_39 = arith.constant 0 : index
    %c1_40 = arith.constant 1 : index
    %c0_41 = arith.constant 0 : index
    %c0_42 = arith.constant 0 : index
    %38 = vector.load %arg8[%c0_39, %c1_40, %c0_41, %c0_42] : memref<2x4x32x8xf32, #tpu.memory_space<vmem>>, vector<1x1x32x8xf32>
    %39 = vector.shape_cast %38 : vector<1x1x32x8xf32> to vector<32x8xf32>
    %cst_43 = arith.constant dense<0.000000e+00> : vector<8x8xf32>
    %40 = tpu.matmul %21, %39, %cst_43 {dimension_numbers = #tpu.dot_dimension_numbers<[1], [0], [0], [1], [0, 0, 1, 1], [], []>} : vector<8x32xf32>, vector<32x8xf32>, vector<8x8xf32> -> vector<8x8xf32>
    %c0_44 = arith.constant 0 : index
    %c2_45 = arith.constant 2 : index
    %c0_46 = arith.constant 0 : index
    %c0_47 = arith.constant 0 : index
    %41 = vector.load %arg8[%c0_44, %c2_45, %c0_46, %c0_47] : memref<2x4x32x8xf32, #tpu.memory_space<vmem>>, vector<1x1x32x8xf32>
    %42 = vector.shape_cast %41 : vector<1x1x32x8xf32> to vector<32x8xf32>
    %cst_48 = arith.constant dense<0.000000e+00> : vector<8x8xf32>
    %43 = tpu.matmul %21, %42, %cst_48 {dimension_numbers = #tpu.dot_dimension_numbers<[1], [0], [0], [1], [0, 0, 1, 1], [], []>} : vector<8x32xf32>, vector<32x8xf32>, vector<8x8xf32> -> vector<8x8xf32>
    %c0_49 = arith.constant 0 : index
    %c3_50 = arith.constant 3 : index
    %c0_51 = arith.constant 0 : index
    %c0_52 = arith.constant 0 : index
    %44 = vector.load %arg8[%c0_49, %c3_50, %c0_51, %c0_52] : memref<2x4x32x8xf32, #tpu.memory_space<vmem>>, vector<1x1x32x8xf32>
    %45 = vector.shape_cast %44 : vector<1x1x32x8xf32> to vector<32x8xf32>
    %cst_53 = arith.constant dense<0.000000e+00> : vector<8x8xf32>
    %46 = tpu.matmul %21, %45, %cst_53 {dimension_numbers = #tpu.dot_dimension_numbers<[1], [0], [0], [1], [0, 0, 1, 1], [], []>} : vector<8x32xf32>, vector<32x8xf32>, vector<8x8xf32> -> vector<8x8xf32>
    %47 = tpu.concatenate %37, %40, %43, %46 in 0 : vector<8x8xf32>, vector<8x8xf32>, vector<8x8xf32>, vector<8x8xf32> -> vector<32x8xf32>
    %c0_54 = arith.constant 0 : index
    %c0_55 = arith.constant 0 : index
    %c0_56 = arith.constant 0 : index
    %c0_57 = arith.constant 0 : index
    %48 = vector.load %arg9[%c0_54, %c0_55, %c0_56, %c0_57] : memref<2x2x32x8xf32, #tpu.memory_space<vmem>>, vector<1x1x32x8xf32>
    %49 = vector.shape_cast %48 : vector<1x1x32x8xf32> to vector<32x8xf32>
    %cst_58 = arith.constant dense<0.000000e+00> : vector<8x8xf32>
    %50 = tpu.matmul %21, %49, %cst_58 {dimension_numbers = #tpu.dot_dimension_numbers<[1], [0], [0], [1], [0, 0, 1, 1], [], []>} : vector<8x32xf32>, vector<32x8xf32>, vector<8x8xf32> -> vector<8x8xf32>
    %c0_59 = arith.constant 0 : index
    %c1_60 = arith.constant 1 : index
    %c0_61 = arith.constant 0 : index
    %c0_62 = arith.constant 0 : index
    %51 = vector.load %arg9[%c0_59, %c1_60, %c0_61, %c0_62] : memref<2x2x32x8xf32, #tpu.memory_space<vmem>>, vector<1x1x32x8xf32>
    %52 = vector.shape_cast %51 : vector<1x1x32x8xf32> to vector<32x8xf32>
    %cst_63 = arith.constant dense<0.000000e+00> : vector<8x8xf32>
    %53 = tpu.matmul %21, %52, %cst_63 {dimension_numbers = #tpu.dot_dimension_numbers<[1], [0], [0], [1], [0, 0, 1, 1], [], []>} : vector<8x32xf32>, vector<32x8xf32>, vector<8x8xf32> -> vector<8x8xf32>
    %54 = tpu.concatenate %50, %53 in 0 : vector<8x8xf32>, vector<8x8xf32> -> vector<16x8xf32>
    %c0_64 = arith.constant 0 : index
    %c0_65 = arith.constant 0 : index
    %c0_66 = arith.constant 0 : index
    %c0_67 = arith.constant 0 : index
    %55 = vector.load %arg10[%c0_64, %c0_65, %c0_66, %c0_67] : memref<2x2x32x8xf32, #tpu.memory_space<vmem>>, vector<1x1x32x8xf32>
    %56 = vector.shape_cast %55 : vector<1x1x32x8xf32> to vector<32x8xf32>
    %cst_68 = arith.constant dense<0.000000e+00> : vector<8x8xf32>
    %57 = tpu.matmul %21, %56, %cst_68 {dimension_numbers = #tpu.dot_dimension_numbers<[1], [0], [0], [1], [0, 0, 1, 1], [], []>} : vector<8x32xf32>, vector<32x8xf32>, vector<8x8xf32> -> vector<8x8xf32>
    %c0_69 = arith.constant 0 : index
    %c1_70 = arith.constant 1 : index
    %c0_71 = arith.constant 0 : index
    %c0_72 = arith.constant 0 : index
    %58 = vector.load %arg10[%c0_69, %c1_70, %c0_71, %c0_72] : memref<2x2x32x8xf32, #tpu.memory_space<vmem>>, vector<1x1x32x8xf32>
    %59 = vector.shape_cast %58 : vector<1x1x32x8xf32> to vector<32x8xf32>
    %cst_73 = arith.constant dense<0.000000e+00> : vector<8x8xf32>
    %60 = tpu.matmul %21, %59, %cst_73 {dimension_numbers = #tpu.dot_dimension_numbers<[1], [0], [0], [1], [0, 0, 1, 1], [], []>} : vector<8x32xf32>, vector<32x8xf32>, vector<8x8xf32> -> vector<8x8xf32>
    %61 = tpu.concatenate %57, %60 in 0 : vector<8x8xf32>, vector<8x8xf32> -> vector<16x8xf32>
    %c0_74 = arith.constant 0 : index
    %c0_75 = arith.constant 0 : index
    %c0_76 = arith.constant 0 : index
    %c0_77 = arith.constant 0 : index
    %62 = vector.load %arg11[%c0_74, %c0_75, %c0_76, %c0_77] : memref<2x2x32x8xf32, #tpu.memory_space<vmem>>, vector<1x1x32x8xf32>
    %63 = vector.shape_cast %62 : vector<1x1x32x8xf32> to vector<32x8xf32>
    %cst_78 = arith.constant dense<0.000000e+00> : vector<8x8xf32>
    %64 = tpu.matmul %21, %63, %cst_78 {dimension_numbers = #tpu.dot_dimension_numbers<[1], [0], [0], [1], [0, 0, 1, 1], [], []>} : vector<8x32xf32>, vector<32x8xf32>, vector<8x8xf32> -> vector<8x8xf32>
    %c0_79 = arith.constant 0 : index
    %c1_80 = arith.constant 1 : index
    %c0_81 = arith.constant 0 : index
    %c0_82 = arith.constant 0 : index
    %65 = vector.load %arg11[%c0_79, %c1_80, %c0_81, %c0_82] : memref<2x2x32x8xf32, #tpu.memory_space<vmem>>, vector<1x1x32x8xf32>
    %66 = vector.shape_cast %65 : vector<1x1x32x8xf32> to vector<32x8xf32>
    %cst_83 = arith.constant dense<0.000000e+00> : vector<8x8xf32>
    %67 = tpu.matmul %21, %66, %cst_83 {dimension_numbers = #tpu.dot_dimension_numbers<[1], [0], [0], [1], [0, 0, 1, 1], [], []>} : vector<8x32xf32>, vector<32x8xf32>, vector<8x8xf32> -> vector<8x8xf32>
    %68 = tpu.concatenate %64, %67 in 0 : vector<8x8xf32>, vector<8x8xf32> -> vector<16x8xf32>
    %69 = arith.mulf %34, %1 : vector<32x8xf32>
    %70 = arith.mulf %47, %2 : vector<32x8xf32>
    %71 = arith.addf %69, %70 : vector<32x8xf32>
    %72 = arith.mulf %54, %3 : vector<16x8xf32>
    %73 = arith.mulf %61, %4 : vector<16x8xf32>
    %74 = arith.addf %72, %73 : vector<16x8xf32>
    %75 = vector.extract_strided_slice %71 {offsets = [0, 0], sizes = [16, 8], strides = [1, 1]} : vector<32x8xf32> to vector<16x8xf32>
    %76 = vector.extract_strided_slice %74 {offsets = [0, 0], sizes = [8, 8], strides = [1, 1]} : vector<16x8xf32> to vector<8x8xf32>
    %cst_84 = arith.constant dense<0.000000e+00> : vector<16x8xf32>
    %77 = tpu.matmul %75, %76, %cst_84 {dimension_numbers = #tpu.dot_dimension_numbers<[1], [1], [0], [0], [0, 0, 1, 0], [], []>} : vector<16x8xf32>, vector<8x8xf32>, vector<16x8xf32> -> vector<16x8xf32>
    %78 = vector.extract_strided_slice %71 {offsets = [16, 0], sizes = [16, 8], strides = [1, 1]} : vector<32x8xf32> to vector<16x8xf32>
    %79 = vector.extract_strided_slice %74 {offsets = [8, 0], sizes = [8, 8], strides = [1, 1]} : vector<16x8xf32> to vector<8x8xf32>
    %cst_85 = arith.constant dense<0.000000e+00> : vector<16x8xf32>
    %80 = tpu.matmul %78, %79, %cst_85 {dimension_numbers = #tpu.dot_dimension_numbers<[1], [1], [0], [0], [0, 0, 1, 0], [], []>} : vector<16x8xf32>, vector<8x8xf32>, vector<16x8xf32> -> vector<16x8xf32>
    %81 = tpu.concatenate %77, %80 in 0 : vector<16x8xf32>, vector<16x8xf32> -> vector<32x8xf32>
    %cst_86 = arith.constant -3.40282347E+38 : f32
    %82 = vector.broadcast %cst_86 : f32 to vector<32x8xf32>
    %83 = arith.select %7, %82, %81 : vector<32x8xi1>, vector<32x8xf32>
    %cst_87 = arith.constant dense<0xFF800000> : vector<32xf32>
    %84 = vector.multi_reduction <maximumf>, %83, %cst_87 [1] : vector<32x8xf32> to vector<32xf32>
    %85 = vector.shape_cast %84 : vector<32xf32> to vector<32x1xf32>
    %86 = vector.broadcast %85 : vector<32x1xf32> to vector<32x8xf32>
    %87 = arith.cmpf oge, %83, %86 : vector<32x8xf32>
    %cst_88 = arith.constant -3.40282347E+38 : f32
    %88 = vector.broadcast %cst_88 : f32 to vector<32x8xf32>
    %89 = arith.select %87, %88, %83 : vector<32x8xi1>, vector<32x8xf32>
    %cst_89 = arith.constant dense<0xFF800000> : vector<32xf32>
    %90 = vector.multi_reduction <maximumf>, %89, %cst_89 [1] : vector<32x8xf32> to vector<32xf32>
    %91 = vector.shape_cast %90 : vector<32xf32> to vector<32x1xf32>
    %92 = vector.broadcast %91 : vector<32x1xf32> to vector<32x8xf32>
    %93 = arith.cmpf oge, %89, %92 : vector<32x8xf32>
    %cst_90 = arith.constant -3.40282347E+38 : f32
    %94 = vector.broadcast %cst_90 : f32 to vector<32x8xf32>
    %95 = arith.select %93, %94, %89 : vector<32x8xi1>, vector<32x8xf32>
    %cst_91 = arith.constant dense<0xFF800000> : vector<32xf32>
    %96 = vector.multi_reduction <maximumf>, %95, %cst_91 [1] : vector<32x8xf32> to vector<32xf32>
    %97 = vector.shape_cast %96 : vector<32xf32> to vector<32x1xf32>
    %98 = vector.broadcast %97 : vector<32x1xf32> to vector<32x8xf32>
    %99 = arith.cmpf oge, %95, %98 : vector<32x8xf32>
    %cst_92 = arith.constant -3.40282347E+38 : f32
    %100 = vector.broadcast %cst_92 : f32 to vector<32x8xf32>
    %101 = arith.select %99, %100, %95 : vector<32x8xi1>, vector<32x8xf32>
    %cst_93 = arith.constant dense<0xFF800000> : vector<32xf32>
    %102 = vector.multi_reduction <maximumf>, %101, %cst_93 [1] : vector<32x8xf32> to vector<32xf32>
    %103 = vector.shape_cast %102 : vector<32xf32> to vector<32x1xf32>
    %104 = vector.broadcast %103 : vector<32x1xf32> to vector<32x8xf32>
    %105 = arith.cmpf oge, %83, %104 : vector<32x8xf32>
    %cst_94 = arith.constant dense<true> : vector<32x8xi1>
    %106 = arith.xori %7, %cst_94 : vector<32x8xi1>
    %107 = arith.andi %105, %106 : vector<32x8xi1>
    %cst_95 = arith.constant -3.40282347E+38 : f32
    %108 = vector.broadcast %cst_95 : f32 to vector<32x8xf32>
    %109 = arith.select %107, %81, %108 : vector<32x8xi1>, vector<32x8xf32>
    %cst_96 = arith.constant dense<0xFF800000> : vector<32xf32>
    %110 = vector.multi_reduction <maximumf>, %109, %cst_96 [1] : vector<32x8xf32> to vector<32xf32>
    %111 = vector.shape_cast %110 : vector<32xf32> to vector<32x1xf32>
    %112 = vector.broadcast %111 : vector<32x1xf32> to vector<32x8xf32>
    %113 = arith.subf %109, %112 : vector<32x8xf32>
    %114 = math.exp %113 : vector<32x8xf32>
    %cst_97 = arith.constant dense<0.000000e+00> : vector<32xf32>
    %115 = vector.multi_reduction <add>, %114, %cst_97 [1] : vector<32x8xf32> to vector<32xf32>
    %116 = vector.shape_cast %115 : vector<32xf32> to vector<32x1xf32>
    %117 = vector.broadcast %116 : vector<32x1xf32> to vector<32x8xf32>
    %118 = arith.divf %114, %117 : vector<32x8xf32>
    %119 = vector.extract_strided_slice %118 {offsets = [0, 0], sizes = [16, 8], strides = [1, 1]} : vector<32x8xf32> to vector<16x8xf32>
    %120 = vector.extract_strided_slice %68 {offsets = [0, 0], sizes = [8, 8], strides = [1, 1]} : vector<16x8xf32> to vector<8x8xf32>
    %cst_98 = arith.constant dense<0.000000e+00> : vector<16x8xf32>
    %121 = tpu.matmul %119, %120, %cst_98 {dimension_numbers = #tpu.dot_dimension_numbers<[1], [0], [0], [1], [0, 0, 1, 1], [], []>} : vector<16x8xf32>, vector<8x8xf32>, vector<16x8xf32> -> vector<16x8xf32>
    %122 = vector.extract_strided_slice %118 {offsets = [16, 0], sizes = [16, 8], strides = [1, 1]} : vector<32x8xf32> to vector<16x8xf32>
    %123 = vector.extract_strided_slice %68 {offsets = [8, 0], sizes = [8, 8], strides = [1, 1]} : vector<16x8xf32> to vector<8x8xf32>
    %cst_99 = arith.constant dense<0.000000e+00> : vector<16x8xf32>
    %124 = tpu.matmul %122, %123, %cst_99 {dimension_numbers = #tpu.dot_dimension_numbers<[1], [0], [0], [1], [0, 0, 1, 1], [], []>} : vector<16x8xf32>, vector<8x8xf32>, vector<16x8xf32> -> vector<16x8xf32>
    %125 = tpu.concatenate %121, %124 in 0 : vector<16x8xf32>, vector<16x8xf32> -> vector<32x8xf32>
    %126 = vector.extract_strided_slice %125 {offsets = [0, 0], sizes = [8, 8], strides = [1, 1]} : vector<32x8xf32> to vector<8x8xf32>
    %c0_100 = arith.constant 0 : index
    %c0_101 = arith.constant 0 : index
    %c0_102 = arith.constant 0 : index
    %c0_103 = arith.constant 0 : index
    %127 = vector.load %arg12[%c0_100, %c0_101, %c0_102, %c0_103] : memref<2x4x8x32xf32, #tpu.memory_space<vmem>>, vector<1x1x8x32xf32>
    %128 = vector.shape_cast %127 : vector<1x1x8x32xf32> to vector<8x32xf32>
    %cst_104 = arith.constant dense<0.000000e+00> : vector<8x32xf32>
    %129 = tpu.matmul %126, %128, %cst_104 {dimension_numbers = #tpu.dot_dimension_numbers<[1], [0], [0], [1], [0, 0, 1, 1], [], []>} : vector<8x8xf32>, vector<8x32xf32>, vector<8x32xf32> -> vector<8x32xf32>
    %130 = vector.extract_strided_slice %125 {offsets = [8, 0], sizes = [8, 8], strides = [1, 1]} : vector<32x8xf32> to vector<8x8xf32>
    %c0_105 = arith.constant 0 : index
    %c1_106 = arith.constant 1 : index
    %c0_107 = arith.constant 0 : index
    %c0_108 = arith.constant 0 : index
    %131 = vector.load %arg12[%c0_105, %c1_106, %c0_107, %c0_108] : memref<2x4x8x32xf32, #tpu.memory_space<vmem>>, vector<1x1x8x32xf32>
    %132 = vector.shape_cast %131 : vector<1x1x8x32xf32> to vector<8x32xf32>
    %cst_109 = arith.constant dense<0.000000e+00> : vector<8x32xf32>
    %133 = tpu.matmul %130, %132, %cst_109 {dimension_numbers = #tpu.dot_dimension_numbers<[1], [0], [0], [1], [0, 0, 1, 1], [], []>} : vector<8x8xf32>, vector<8x32xf32>, vector<8x32xf32> -> vector<8x32xf32>
    %134 = arith.addf %129, %133 : vector<8x32xf32>
    %135 = vector.extract_strided_slice %125 {offsets = [16, 0], sizes = [8, 8], strides = [1, 1]} : vector<32x8xf32> to vector<8x8xf32>
    %c0_110 = arith.constant 0 : index
    %c2_111 = arith.constant 2 : index
    %c0_112 = arith.constant 0 : index
    %c0_113 = arith.constant 0 : index
    %136 = vector.load %arg12[%c0_110, %c2_111, %c0_112, %c0_113] : memref<2x4x8x32xf32, #tpu.memory_space<vmem>>, vector<1x1x8x32xf32>
    %137 = vector.shape_cast %136 : vector<1x1x8x32xf32> to vector<8x32xf32>
    %cst_114 = arith.constant dense<0.000000e+00> : vector<8x32xf32>
    %138 = tpu.matmul %135, %137, %cst_114 {dimension_numbers = #tpu.dot_dimension_numbers<[1], [0], [0], [1], [0, 0, 1, 1], [], []>} : vector<8x8xf32>, vector<8x32xf32>, vector<8x32xf32> -> vector<8x32xf32>
    %139 = arith.addf %134, %138 : vector<8x32xf32>
    %140 = vector.extract_strided_slice %125 {offsets = [24, 0], sizes = [8, 8], strides = [1, 1]} : vector<32x8xf32> to vector<8x8xf32>
    %c0_115 = arith.constant 0 : index
    %c3_116 = arith.constant 3 : index
    %c0_117 = arith.constant 0 : index
    %c0_118 = arith.constant 0 : index
    %141 = vector.load %arg12[%c0_115, %c3_116, %c0_117, %c0_118] : memref<2x4x8x32xf32, #tpu.memory_space<vmem>>, vector<1x1x8x32xf32>
    %142 = vector.shape_cast %141 : vector<1x1x8x32xf32> to vector<8x32xf32>
    %cst_119 = arith.constant dense<0.000000e+00> : vector<8x32xf32>
    %143 = tpu.matmul %140, %142, %cst_119 {dimension_numbers = #tpu.dot_dimension_numbers<[1], [0], [0], [1], [0, 0, 1, 1], [], []>} : vector<8x8xf32>, vector<8x32xf32>, vector<8x32xf32> -> vector<8x32xf32>
    %144 = arith.addf %139, %143 : vector<8x32xf32>
    %145 = arith.addf %0, %144 : vector<8x32xf32>
    %c0_120 = arith.constant 0 : index
    %c0_121 = arith.constant 0 : index
    %c0_122 = arith.constant 0 : index
    %146 = vector.load %arg13[%c0_120, %c0_121, %c0_122] : memref<2x1x32xf32, #tpu.memory_space<vmem>>, vector<1x1x32xf32>
    %147 = vector.shape_cast %146 : vector<1x1x32xf32> to vector<1x32xf32>
    %148 = arith.mulf %145, %145 : vector<8x32xf32>
    %cst_123 = arith.constant dense<0.000000e+00> : vector<8xf32>
    %149 = vector.multi_reduction <add>, %148, %cst_123 [1] : vector<8x32xf32> to vector<8xf32>
    %150 = vector.shape_cast %149 : vector<8xf32> to vector<8x1xf32>
    %cst_124 = arith.constant 3.200000e+01 : f32
    %151 = vector.broadcast %cst_124 : f32 to vector<8x1xf32>
    %152 = arith.divf %150, %151 : vector<8x1xf32>
    %cst_125 = arith.constant 9.99999997E-7 : f32
    %153 = vector.broadcast %cst_125 : f32 to vector<8x1xf32>
    %154 = arith.addf %152, %153 : vector<8x1xf32>
    %155 = math.rsqrt %154 : vector<8x1xf32>
    %156 = vector.broadcast %155 : vector<8x1xf32> to vector<8x32xf32>
    %157 = arith.mulf %145, %156 : vector<8x32xf32>
    %158 = vector.broadcast %147 : vector<1x32xf32> to vector<8x32xf32>
    %159 = arith.mulf %157, %158 : vector<8x32xf32>
    %c0_126 = arith.constant 0 : index
    %c0_127 = arith.constant 0 : index
    %c0_128 = arith.constant 0 : index
    %160 = vector.load %arg14[%c0_126, %c0_127, %c0_128] : memref<2x32x64xf32, #tpu.memory_space<vmem>>, vector<1x32x64xf32>
    %161 = vector.shape_cast %160 : vector<1x32x64xf32> to vector<32x64xf32>
    %cst_129 = arith.constant dense<0.000000e+00> : vector<8x64xf32>
    %162 = tpu.matmul %159, %161, %cst_129 {dimension_numbers = #tpu.dot_dimension_numbers<[1], [0], [0], [1], [0, 0, 1, 1], [], []>} : vector<8x32xf32>, vector<32x64xf32>, vector<8x64xf32> -> vector<8x64xf32>
    %c0_130 = arith.constant 0 : index
    %c0_131 = arith.constant 0 : index
    %c0_132 = arith.constant 0 : index
    %163 = vector.load %arg15[%c0_130, %c0_131, %c0_132] : memref<2x32x64xf32, #tpu.memory_space<vmem>>, vector<1x32x64xf32>
    %164 = vector.shape_cast %163 : vector<1x32x64xf32> to vector<32x64xf32>
    %cst_133 = arith.constant dense<0.000000e+00> : vector<8x64xf32>
    %165 = tpu.matmul %159, %164, %cst_133 {dimension_numbers = #tpu.dot_dimension_numbers<[1], [0], [0], [1], [0, 0, 1, 1], [], []>} : vector<8x32xf32>, vector<32x64xf32>, vector<8x64xf32> -> vector<8x64xf32>
    %166 = arith.negf %162 : vector<8x64xf32>
    %167 = math.exp %166 : vector<8x64xf32>
    %cst_134 = arith.constant 1.000000e+00 : f32
    %168 = vector.broadcast %cst_134 : f32 to vector<8x64xf32>
    %169 = arith.addf %168, %167 : vector<8x64xf32>
    %170 = arith.divf %168, %169 : vector<8x64xf32>
    %171 = arith.mulf %162, %170 : vector<8x64xf32>
    %172 = arith.mulf %171, %165 : vector<8x64xf32>
    %c0_135 = arith.constant 0 : index
    %c0_136 = arith.constant 0 : index
    %c0_137 = arith.constant 0 : index
    %173 = vector.load %arg16[%c0_135, %c0_136, %c0_137] : memref<2x64x32xf32, #tpu.memory_space<vmem>>, vector<1x64x32xf32>
    %174 = vector.shape_cast %173 : vector<1x64x32xf32> to vector<64x32xf32>
    %cst_138 = arith.constant dense<0.000000e+00> : vector<8x32xf32>
    %175 = tpu.matmul %172, %174, %cst_138 {dimension_numbers = #tpu.dot_dimension_numbers<[1], [0], [0], [1], [0, 0, 1, 1], [], []>} : vector<8x64xf32>, vector<64x32xf32>, vector<8x32xf32> -> vector<8x32xf32>
    %176 = arith.addf %145, %175 : vector<8x32xf32>
    %c1_139 = arith.constant 1 : index
    %c0_140 = arith.constant 0 : index
    %c0_141 = arith.constant 0 : index
    %177 = vector.load %arg6[%c1_139, %c0_140, %c0_141] : memref<2x1x32xf32, #tpu.memory_space<vmem>>, vector<1x1x32xf32>
    %178 = vector.shape_cast %177 : vector<1x1x32xf32> to vector<1x32xf32>
    %179 = arith.mulf %176, %176 : vector<8x32xf32>
    %cst_142 = arith.constant dense<0.000000e+00> : vector<8xf32>
    %180 = vector.multi_reduction <add>, %179, %cst_142 [1] : vector<8x32xf32> to vector<8xf32>
    %181 = vector.shape_cast %180 : vector<8xf32> to vector<8x1xf32>
    %cst_143 = arith.constant 3.200000e+01 : f32
    %182 = vector.broadcast %cst_143 : f32 to vector<8x1xf32>
    %183 = arith.divf %181, %182 : vector<8x1xf32>
    %cst_144 = arith.constant 9.99999997E-7 : f32
    %184 = vector.broadcast %cst_144 : f32 to vector<8x1xf32>
    %185 = arith.addf %183, %184 : vector<8x1xf32>
    %186 = math.rsqrt %185 : vector<8x1xf32>
    %187 = vector.broadcast %186 : vector<8x1xf32> to vector<8x32xf32>
    %188 = arith.mulf %176, %187 : vector<8x32xf32>
    %189 = vector.broadcast %178 : vector<1x32xf32> to vector<8x32xf32>
    %190 = arith.mulf %188, %189 : vector<8x32xf32>
    %c1_145 = arith.constant 1 : index
    %c0_146 = arith.constant 0 : index
    %c0_147 = arith.constant 0 : index
    %c0_148 = arith.constant 0 : index
    %191 = vector.load %arg7[%c1_145, %c0_146, %c0_147, %c0_148] : memref<2x4x32x8xf32, #tpu.memory_space<vmem>>, vector<1x1x32x8xf32>
    %192 = vector.shape_cast %191 : vector<1x1x32x8xf32> to vector<32x8xf32>
    %cst_149 = arith.constant dense<0.000000e+00> : vector<8x8xf32>
    %193 = tpu.matmul %190, %192, %cst_149 {dimension_numbers = #tpu.dot_dimension_numbers<[1], [0], [0], [1], [0, 0, 1, 1], [], []>} : vector<8x32xf32>, vector<32x8xf32>, vector<8x8xf32> -> vector<8x8xf32>
    %c1_150 = arith.constant 1 : index
    %c1_151 = arith.constant 1 : index
    %c0_152 = arith.constant 0 : index
    %c0_153 = arith.constant 0 : index
    %194 = vector.load %arg7[%c1_150, %c1_151, %c0_152, %c0_153] : memref<2x4x32x8xf32, #tpu.memory_space<vmem>>, vector<1x1x32x8xf32>
    %195 = vector.shape_cast %194 : vector<1x1x32x8xf32> to vector<32x8xf32>
    %cst_154 = arith.constant dense<0.000000e+00> : vector<8x8xf32>
    %196 = tpu.matmul %190, %195, %cst_154 {dimension_numbers = #tpu.dot_dimension_numbers<[1], [0], [0], [1], [0, 0, 1, 1], [], []>} : vector<8x32xf32>, vector<32x8xf32>, vector<8x8xf32> -> vector<8x8xf32>
    %c1_155 = arith.constant 1 : index
    %c2_156 = arith.constant 2 : index
    %c0_157 = arith.constant 0 : index
    %c0_158 = arith.constant 0 : index
    %197 = vector.load %arg7[%c1_155, %c2_156, %c0_157, %c0_158] : memref<2x4x32x8xf32, #tpu.memory_space<vmem>>, vector<1x1x32x8xf32>
    %198 = vector.shape_cast %197 : vector<1x1x32x8xf32> to vector<32x8xf32>
    %cst_159 = arith.constant dense<0.000000e+00> : vector<8x8xf32>
    %199 = tpu.matmul %190, %198, %cst_159 {dimension_numbers = #tpu.dot_dimension_numbers<[1], [0], [0], [1], [0, 0, 1, 1], [], []>} : vector<8x32xf32>, vector<32x8xf32>, vector<8x8xf32> -> vector<8x8xf32>
    %c1_160 = arith.constant 1 : index
    %c3_161 = arith.constant 3 : index
    %c0_162 = arith.constant 0 : index
    %c0_163 = arith.constant 0 : index
    %200 = vector.load %arg7[%c1_160, %c3_161, %c0_162, %c0_163] : memref<2x4x32x8xf32, #tpu.memory_space<vmem>>, vector<1x1x32x8xf32>
    %201 = vector.shape_cast %200 : vector<1x1x32x8xf32> to vector<32x8xf32>
    %cst_164 = arith.constant dense<0.000000e+00> : vector<8x8xf32>
    %202 = tpu.matmul %190, %201, %cst_164 {dimension_numbers = #tpu.dot_dimension_numbers<[1], [0], [0], [1], [0, 0, 1, 1], [], []>} : vector<8x32xf32>, vector<32x8xf32>, vector<8x8xf32> -> vector<8x8xf32>
    %203 = tpu.concatenate %193, %196, %199, %202 in 0 : vector<8x8xf32>, vector<8x8xf32>, vector<8x8xf32>, vector<8x8xf32> -> vector<32x8xf32>
    %c1_165 = arith.constant 1 : index
    %c0_166 = arith.constant 0 : index
    %c0_167 = arith.constant 0 : index
    %c0_168 = arith.constant 0 : index
    %204 = vector.load %arg8[%c1_165, %c0_166, %c0_167, %c0_168] : memref<2x4x32x8xf32, #tpu.memory_space<vmem>>, vector<1x1x32x8xf32>
    %205 = vector.shape_cast %204 : vector<1x1x32x8xf32> to vector<32x8xf32>
    %cst_169 = arith.constant dense<0.000000e+00> : vector<8x8xf32>
    %206 = tpu.matmul %190, %205, %cst_169 {dimension_numbers = #tpu.dot_dimension_numbers<[1], [0], [0], [1], [0, 0, 1, 1], [], []>} : vector<8x32xf32>, vector<32x8xf32>, vector<8x8xf32> -> vector<8x8xf32>
    %c1_170 = arith.constant 1 : index
    %c1_171 = arith.constant 1 : index
    %c0_172 = arith.constant 0 : index
    %c0_173 = arith.constant 0 : index
    %207 = vector.load %arg8[%c1_170, %c1_171, %c0_172, %c0_173] : memref<2x4x32x8xf32, #tpu.memory_space<vmem>>, vector<1x1x32x8xf32>
    %208 = vector.shape_cast %207 : vector<1x1x32x8xf32> to vector<32x8xf32>
    %cst_174 = arith.constant dense<0.000000e+00> : vector<8x8xf32>
    %209 = tpu.matmul %190, %208, %cst_174 {dimension_numbers = #tpu.dot_dimension_numbers<[1], [0], [0], [1], [0, 0, 1, 1], [], []>} : vector<8x32xf32>, vector<32x8xf32>, vector<8x8xf32> -> vector<8x8xf32>
    %c1_175 = arith.constant 1 : index
    %c2_176 = arith.constant 2 : index
    %c0_177 = arith.constant 0 : index
    %c0_178 = arith.constant 0 : index
    %210 = vector.load %arg8[%c1_175, %c2_176, %c0_177, %c0_178] : memref<2x4x32x8xf32, #tpu.memory_space<vmem>>, vector<1x1x32x8xf32>
    %211 = vector.shape_cast %210 : vector<1x1x32x8xf32> to vector<32x8xf32>
    %cst_179 = arith.constant dense<0.000000e+00> : vector<8x8xf32>
    %212 = tpu.matmul %190, %211, %cst_179 {dimension_numbers = #tpu.dot_dimension_numbers<[1], [0], [0], [1], [0, 0, 1, 1], [], []>} : vector<8x32xf32>, vector<32x8xf32>, vector<8x8xf32> -> vector<8x8xf32>
    %c1_180 = arith.constant 1 : index
    %c3_181 = arith.constant 3 : index
    %c0_182 = arith.constant 0 : index
    %c0_183 = arith.constant 0 : index
    %213 = vector.load %arg8[%c1_180, %c3_181, %c0_182, %c0_183] : memref<2x4x32x8xf32, #tpu.memory_space<vmem>>, vector<1x1x32x8xf32>
    %214 = vector.shape_cast %213 : vector<1x1x32x8xf32> to vector<32x8xf32>
    %cst_184 = arith.constant dense<0.000000e+00> : vector<8x8xf32>
    %215 = tpu.matmul %190, %214, %cst_184 {dimension_numbers = #tpu.dot_dimension_numbers<[1], [0], [0], [1], [0, 0, 1, 1], [], []>} : vector<8x32xf32>, vector<32x8xf32>, vector<8x8xf32> -> vector<8x8xf32>
    %216 = tpu.concatenate %206, %209, %212, %215 in 0 : vector<8x8xf32>, vector<8x8xf32>, vector<8x8xf32>, vector<8x8xf32> -> vector<32x8xf32>
    %c1_185 = arith.constant 1 : index
    %c0_186 = arith.constant 0 : index
    %c0_187 = arith.constant 0 : index
    %c0_188 = arith.constant 0 : index
    %217 = vector.load %arg9[%c1_185, %c0_186, %c0_187, %c0_188] : memref<2x2x32x8xf32, #tpu.memory_space<vmem>>, vector<1x1x32x8xf32>
    %218 = vector.shape_cast %217 : vector<1x1x32x8xf32> to vector<32x8xf32>
    %cst_189 = arith.constant dense<0.000000e+00> : vector<8x8xf32>
    %219 = tpu.matmul %190, %218, %cst_189 {dimension_numbers = #tpu.dot_dimension_numbers<[1], [0], [0], [1], [0, 0, 1, 1], [], []>} : vector<8x32xf32>, vector<32x8xf32>, vector<8x8xf32> -> vector<8x8xf32>
    %c1_190 = arith.constant 1 : index
    %c1_191 = arith.constant 1 : index
    %c0_192 = arith.constant 0 : index
    %c0_193 = arith.constant 0 : index
    %220 = vector.load %arg9[%c1_190, %c1_191, %c0_192, %c0_193] : memref<2x2x32x8xf32, #tpu.memory_space<vmem>>, vector<1x1x32x8xf32>
    %221 = vector.shape_cast %220 : vector<1x1x32x8xf32> to vector<32x8xf32>
    %cst_194 = arith.constant dense<0.000000e+00> : vector<8x8xf32>
    %222 = tpu.matmul %190, %221, %cst_194 {dimension_numbers = #tpu.dot_dimension_numbers<[1], [0], [0], [1], [0, 0, 1, 1], [], []>} : vector<8x32xf32>, vector<32x8xf32>, vector<8x8xf32> -> vector<8x8xf32>
    %223 = tpu.concatenate %219, %222 in 0 : vector<8x8xf32>, vector<8x8xf32> -> vector<16x8xf32>
    %c1_195 = arith.constant 1 : index
    %c0_196 = arith.constant 0 : index
    %c0_197 = arith.constant 0 : index
    %c0_198 = arith.constant 0 : index
    %224 = vector.load %arg10[%c1_195, %c0_196, %c0_197, %c0_198] : memref<2x2x32x8xf32, #tpu.memory_space<vmem>>, vector<1x1x32x8xf32>
    %225 = vector.shape_cast %224 : vector<1x1x32x8xf32> to vector<32x8xf32>
    %cst_199 = arith.constant dense<0.000000e+00> : vector<8x8xf32>
    %226 = tpu.matmul %190, %225, %cst_199 {dimension_numbers = #tpu.dot_dimension_numbers<[1], [0], [0], [1], [0, 0, 1, 1], [], []>} : vector<8x32xf32>, vector<32x8xf32>, vector<8x8xf32> -> vector<8x8xf32>
    %c1_200 = arith.constant 1 : index
    %c1_201 = arith.constant 1 : index
    %c0_202 = arith.constant 0 : index
    %c0_203 = arith.constant 0 : index
    %227 = vector.load %arg10[%c1_200, %c1_201, %c0_202, %c0_203] : memref<2x2x32x8xf32, #tpu.memory_space<vmem>>, vector<1x1x32x8xf32>
    %228 = vector.shape_cast %227 : vector<1x1x32x8xf32> to vector<32x8xf32>
    %cst_204 = arith.constant dense<0.000000e+00> : vector<8x8xf32>
    %229 = tpu.matmul %190, %228, %cst_204 {dimension_numbers = #tpu.dot_dimension_numbers<[1], [0], [0], [1], [0, 0, 1, 1], [], []>} : vector<8x32xf32>, vector<32x8xf32>, vector<8x8xf32> -> vector<8x8xf32>
    %230 = tpu.concatenate %226, %229 in 0 : vector<8x8xf32>, vector<8x8xf32> -> vector<16x8xf32>
    %c1_205 = arith.constant 1 : index
    %c0_206 = arith.constant 0 : index
    %c0_207 = arith.constant 0 : index
    %c0_208 = arith.constant 0 : index
    %231 = vector.load %arg11[%c1_205, %c0_206, %c0_207, %c0_208] : memref<2x2x32x8xf32, #tpu.memory_space<vmem>>, vector<1x1x32x8xf32>
    %232 = vector.shape_cast %231 : vector<1x1x32x8xf32> to vector<32x8xf32>
    %cst_209 = arith.constant dense<0.000000e+00> : vector<8x8xf32>
    %233 = tpu.matmul %190, %232, %cst_209 {dimension_numbers = #tpu.dot_dimension_numbers<[1], [0], [0], [1], [0, 0, 1, 1], [], []>} : vector<8x32xf32>, vector<32x8xf32>, vector<8x8xf32> -> vector<8x8xf32>
    %c1_210 = arith.constant 1 : index
    %c1_211 = arith.constant 1 : index
    %c0_212 = arith.constant 0 : index
    %c0_213 = arith.constant 0 : index
    %234 = vector.load %arg11[%c1_210, %c1_211, %c0_212, %c0_213] : memref<2x2x32x8xf32, #tpu.memory_space<vmem>>, vector<1x1x32x8xf32>
    %235 = vector.shape_cast %234 : vector<1x1x32x8xf32> to vector<32x8xf32>
    %cst_214 = arith.constant dense<0.000000e+00> : vector<8x8xf32>
    %236 = tpu.matmul %190, %235, %cst_214 {dimension_numbers = #tpu.dot_dimension_numbers<[1], [0], [0], [1], [0, 0, 1, 1], [], []>} : vector<8x32xf32>, vector<32x8xf32>, vector<8x8xf32> -> vector<8x8xf32>
    %237 = tpu.concatenate %233, %236 in 0 : vector<8x8xf32>, vector<8x8xf32> -> vector<16x8xf32>
    %238 = arith.mulf %203, %1 : vector<32x8xf32>
    %239 = arith.mulf %216, %2 : vector<32x8xf32>
    %240 = arith.addf %238, %239 : vector<32x8xf32>
    %241 = arith.mulf %223, %3 : vector<16x8xf32>
    %242 = arith.mulf %230, %4 : vector<16x8xf32>
    %243 = arith.addf %241, %242 : vector<16x8xf32>
    %244 = vector.extract_strided_slice %240 {offsets = [0, 0], sizes = [16, 8], strides = [1, 1]} : vector<32x8xf32> to vector<16x8xf32>
    %245 = vector.extract_strided_slice %243 {offsets = [0, 0], sizes = [8, 8], strides = [1, 1]} : vector<16x8xf32> to vector<8x8xf32>
    %cst_215 = arith.constant dense<0.000000e+00> : vector<16x8xf32>
    %246 = tpu.matmul %244, %245, %cst_215 {dimension_numbers = #tpu.dot_dimension_numbers<[1], [1], [0], [0], [0, 0, 1, 0], [], []>} : vector<16x8xf32>, vector<8x8xf32>, vector<16x8xf32> -> vector<16x8xf32>
    %247 = vector.extract_strided_slice %240 {offsets = [16, 0], sizes = [16, 8], strides = [1, 1]} : vector<32x8xf32> to vector<16x8xf32>
    %248 = vector.extract_strided_slice %243 {offsets = [8, 0], sizes = [8, 8], strides = [1, 1]} : vector<16x8xf32> to vector<8x8xf32>
    %cst_216 = arith.constant dense<0.000000e+00> : vector<16x8xf32>
    %249 = tpu.matmul %247, %248, %cst_216 {dimension_numbers = #tpu.dot_dimension_numbers<[1], [1], [0], [0], [0, 0, 1, 0], [], []>} : vector<16x8xf32>, vector<8x8xf32>, vector<16x8xf32> -> vector<16x8xf32>
    %250 = tpu.concatenate %246, %249 in 0 : vector<16x8xf32>, vector<16x8xf32> -> vector<32x8xf32>
    %cst_217 = arith.constant -3.40282347E+38 : f32
    %251 = vector.broadcast %cst_217 : f32 to vector<32x8xf32>
    %252 = arith.select %7, %251, %250 : vector<32x8xi1>, vector<32x8xf32>
    %cst_218 = arith.constant dense<0xFF800000> : vector<32xf32>
    %253 = vector.multi_reduction <maximumf>, %252, %cst_218 [1] : vector<32x8xf32> to vector<32xf32>
    %254 = vector.shape_cast %253 : vector<32xf32> to vector<32x1xf32>
    %255 = vector.broadcast %254 : vector<32x1xf32> to vector<32x8xf32>
    %256 = arith.cmpf oge, %252, %255 : vector<32x8xf32>
    %cst_219 = arith.constant -3.40282347E+38 : f32
    %257 = vector.broadcast %cst_219 : f32 to vector<32x8xf32>
    %258 = arith.select %256, %257, %252 : vector<32x8xi1>, vector<32x8xf32>
    %cst_220 = arith.constant dense<0xFF800000> : vector<32xf32>
    %259 = vector.multi_reduction <maximumf>, %258, %cst_220 [1] : vector<32x8xf32> to vector<32xf32>
    %260 = vector.shape_cast %259 : vector<32xf32> to vector<32x1xf32>
    %261 = vector.broadcast %260 : vector<32x1xf32> to vector<32x8xf32>
    %262 = arith.cmpf oge, %258, %261 : vector<32x8xf32>
    %cst_221 = arith.constant -3.40282347E+38 : f32
    %263 = vector.broadcast %cst_221 : f32 to vector<32x8xf32>
    %264 = arith.select %262, %263, %258 : vector<32x8xi1>, vector<32x8xf32>
    %cst_222 = arith.constant dense<0xFF800000> : vector<32xf32>
    %265 = vector.multi_reduction <maximumf>, %264, %cst_222 [1] : vector<32x8xf32> to vector<32xf32>
    %266 = vector.shape_cast %265 : vector<32xf32> to vector<32x1xf32>
    %267 = vector.broadcast %266 : vector<32x1xf32> to vector<32x8xf32>
    %268 = arith.cmpf oge, %264, %267 : vector<32x8xf32>
    %cst_223 = arith.constant -3.40282347E+38 : f32
    %269 = vector.broadcast %cst_223 : f32 to vector<32x8xf32>
    %270 = arith.select %268, %269, %264 : vector<32x8xi1>, vector<32x8xf32>
    %cst_224 = arith.constant dense<0xFF800000> : vector<32xf32>
    %271 = vector.multi_reduction <maximumf>, %270, %cst_224 [1] : vector<32x8xf32> to vector<32xf32>
    %272 = vector.shape_cast %271 : vector<32xf32> to vector<32x1xf32>
    %273 = vector.broadcast %272 : vector<32x1xf32> to vector<32x8xf32>
    %274 = arith.cmpf oge, %252, %273 : vector<32x8xf32>
    %cst_225 = arith.constant dense<true> : vector<32x8xi1>
    %275 = arith.xori %7, %cst_225 : vector<32x8xi1>
    %276 = arith.andi %274, %275 : vector<32x8xi1>
    %cst_226 = arith.constant -3.40282347E+38 : f32
    %277 = vector.broadcast %cst_226 : f32 to vector<32x8xf32>
    %278 = arith.select %276, %250, %277 : vector<32x8xi1>, vector<32x8xf32>
    %cst_227 = arith.constant dense<0xFF800000> : vector<32xf32>
    %279 = vector.multi_reduction <maximumf>, %278, %cst_227 [1] : vector<32x8xf32> to vector<32xf32>
    %280 = vector.shape_cast %279 : vector<32xf32> to vector<32x1xf32>
    %281 = vector.broadcast %280 : vector<32x1xf32> to vector<32x8xf32>
    %282 = arith.subf %278, %281 : vector<32x8xf32>
    %283 = math.exp %282 : vector<32x8xf32>
    %cst_228 = arith.constant dense<0.000000e+00> : vector<32xf32>
    %284 = vector.multi_reduction <add>, %283, %cst_228 [1] : vector<32x8xf32> to vector<32xf32>
    %285 = vector.shape_cast %284 : vector<32xf32> to vector<32x1xf32>
    %286 = vector.broadcast %285 : vector<32x1xf32> to vector<32x8xf32>
    %287 = arith.divf %283, %286 : vector<32x8xf32>
    %288 = vector.extract_strided_slice %287 {offsets = [0, 0], sizes = [16, 8], strides = [1, 1]} : vector<32x8xf32> to vector<16x8xf32>
    %289 = vector.extract_strided_slice %237 {offsets = [0, 0], sizes = [8, 8], strides = [1, 1]} : vector<16x8xf32> to vector<8x8xf32>
    %cst_229 = arith.constant dense<0.000000e+00> : vector<16x8xf32>
    %290 = tpu.matmul %288, %289, %cst_229 {dimension_numbers = #tpu.dot_dimension_numbers<[1], [0], [0], [1], [0, 0, 1, 1], [], []>} : vector<16x8xf32>, vector<8x8xf32>, vector<16x8xf32> -> vector<16x8xf32>
    %291 = vector.extract_strided_slice %287 {offsets = [16, 0], sizes = [16, 8], strides = [1, 1]} : vector<32x8xf32> to vector<16x8xf32>
    %292 = vector.extract_strided_slice %237 {offsets = [8, 0], sizes = [8, 8], strides = [1, 1]} : vector<16x8xf32> to vector<8x8xf32>
    %cst_230 = arith.constant dense<0.000000e+00> : vector<16x8xf32>
    %293 = tpu.matmul %291, %292, %cst_230 {dimension_numbers = #tpu.dot_dimension_numbers<[1], [0], [0], [1], [0, 0, 1, 1], [], []>} : vector<16x8xf32>, vector<8x8xf32>, vector<16x8xf32> -> vector<16x8xf32>
    %294 = tpu.concatenate %290, %293 in 0 : vector<16x8xf32>, vector<16x8xf32> -> vector<32x8xf32>
    %295 = vector.extract_strided_slice %294 {offsets = [0, 0], sizes = [8, 8], strides = [1, 1]} : vector<32x8xf32> to vector<8x8xf32>
    %c1_231 = arith.constant 1 : index
    %c0_232 = arith.constant 0 : index
    %c0_233 = arith.constant 0 : index
    %c0_234 = arith.constant 0 : index
    %296 = vector.load %arg12[%c1_231, %c0_232, %c0_233, %c0_234] : memref<2x4x8x32xf32, #tpu.memory_space<vmem>>, vector<1x1x8x32xf32>
    %297 = vector.shape_cast %296 : vector<1x1x8x32xf32> to vector<8x32xf32>
    %cst_235 = arith.constant dense<0.000000e+00> : vector<8x32xf32>
    %298 = tpu.matmul %295, %297, %cst_235 {dimension_numbers = #tpu.dot_dimension_numbers<[1], [0], [0], [1], [0, 0, 1, 1], [], []>} : vector<8x8xf32>, vector<8x32xf32>, vector<8x32xf32> -> vector<8x32xf32>
    %299 = vector.extract_strided_slice %294 {offsets = [8, 0], sizes = [8, 8], strides = [1, 1]} : vector<32x8xf32> to vector<8x8xf32>
    %c1_236 = arith.constant 1 : index
    %c1_237 = arith.constant 1 : index
    %c0_238 = arith.constant 0 : index
    %c0_239 = arith.constant 0 : index
    %300 = vector.load %arg12[%c1_236, %c1_237, %c0_238, %c0_239] : memref<2x4x8x32xf32, #tpu.memory_space<vmem>>, vector<1x1x8x32xf32>
    %301 = vector.shape_cast %300 : vector<1x1x8x32xf32> to vector<8x32xf32>
    %cst_240 = arith.constant dense<0.000000e+00> : vector<8x32xf32>
    %302 = tpu.matmul %299, %301, %cst_240 {dimension_numbers = #tpu.dot_dimension_numbers<[1], [0], [0], [1], [0, 0, 1, 1], [], []>} : vector<8x8xf32>, vector<8x32xf32>, vector<8x32xf32> -> vector<8x32xf32>
    %303 = arith.addf %298, %302 : vector<8x32xf32>
    %304 = vector.extract_strided_slice %294 {offsets = [16, 0], sizes = [8, 8], strides = [1, 1]} : vector<32x8xf32> to vector<8x8xf32>
    %c1_241 = arith.constant 1 : index
    %c2_242 = arith.constant 2 : index
    %c0_243 = arith.constant 0 : index
    %c0_244 = arith.constant 0 : index
    %305 = vector.load %arg12[%c1_241, %c2_242, %c0_243, %c0_244] : memref<2x4x8x32xf32, #tpu.memory_space<vmem>>, vector<1x1x8x32xf32>
    %306 = vector.shape_cast %305 : vector<1x1x8x32xf32> to vector<8x32xf32>
    %cst_245 = arith.constant dense<0.000000e+00> : vector<8x32xf32>
    %307 = tpu.matmul %304, %306, %cst_245 {dimension_numbers = #tpu.dot_dimension_numbers<[1], [0], [0], [1], [0, 0, 1, 1], [], []>} : vector<8x8xf32>, vector<8x32xf32>, vector<8x32xf32> -> vector<8x32xf32>
    %308 = arith.addf %303, %307 : vector<8x32xf32>
    %309 = vector.extract_strided_slice %294 {offsets = [24, 0], sizes = [8, 8], strides = [1, 1]} : vector<32x8xf32> to vector<8x8xf32>
    %c1_246 = arith.constant 1 : index
    %c3_247 = arith.constant 3 : index
    %c0_248 = arith.constant 0 : index
    %c0_249 = arith.constant 0 : index
    %310 = vector.load %arg12[%c1_246, %c3_247, %c0_248, %c0_249] : memref<2x4x8x32xf32, #tpu.memory_space<vmem>>, vector<1x1x8x32xf32>
    %311 = vector.shape_cast %310 : vector<1x1x8x32xf32> to vector<8x32xf32>
    %cst_250 = arith.constant dense<0.000000e+00> : vector<8x32xf32>
    %312 = tpu.matmul %309, %311, %cst_250 {dimension_numbers = #tpu.dot_dimension_numbers<[1], [0], [0], [1], [0, 0, 1, 1], [], []>} : vector<8x8xf32>, vector<8x32xf32>, vector<8x32xf32> -> vector<8x32xf32>
    %313 = arith.addf %308, %312 : vector<8x32xf32>
    %314 = arith.addf %176, %313 : vector<8x32xf32>
    %c1_251 = arith.constant 1 : index
    %c0_252 = arith.constant 0 : index
    %c0_253 = arith.constant 0 : index
    %315 = vector.load %arg13[%c1_251, %c0_252, %c0_253] : memref<2x1x32xf32, #tpu.memory_space<vmem>>, vector<1x1x32xf32>
    %316 = vector.shape_cast %315 : vector<1x1x32xf32> to vector<1x32xf32>
    %317 = arith.mulf %314, %314 : vector<8x32xf32>
    %cst_254 = arith.constant dense<0.000000e+00> : vector<8xf32>
    %318 = vector.multi_reduction <add>, %317, %cst_254 [1] : vector<8x32xf32> to vector<8xf32>
    %319 = vector.shape_cast %318 : vector<8xf32> to vector<8x1xf32>
    %cst_255 = arith.constant 3.200000e+01 : f32
    %320 = vector.broadcast %cst_255 : f32 to vector<8x1xf32>
    %321 = arith.divf %319, %320 : vector<8x1xf32>
    %cst_256 = arith.constant 9.99999997E-7 : f32
    %322 = vector.broadcast %cst_256 : f32 to vector<8x1xf32>
    %323 = arith.addf %321, %322 : vector<8x1xf32>
    %324 = math.rsqrt %323 : vector<8x1xf32>
    %325 = vector.broadcast %324 : vector<8x1xf32> to vector<8x32xf32>
    %326 = arith.mulf %314, %325 : vector<8x32xf32>
    %327 = vector.broadcast %316 : vector<1x32xf32> to vector<8x32xf32>
    %328 = arith.mulf %326, %327 : vector<8x32xf32>
    %c1_257 = arith.constant 1 : index
    %c0_258 = arith.constant 0 : index
    %c0_259 = arith.constant 0 : index
    %329 = vector.load %arg14[%c1_257, %c0_258, %c0_259] : memref<2x32x64xf32, #tpu.memory_space<vmem>>, vector<1x32x64xf32>
    %330 = vector.shape_cast %329 : vector<1x32x64xf32> to vector<32x64xf32>
    %cst_260 = arith.constant dense<0.000000e+00> : vector<8x64xf32>
    %331 = tpu.matmul %328, %330, %cst_260 {dimension_numbers = #tpu.dot_dimension_numbers<[1], [0], [0], [1], [0, 0, 1, 1], [], []>} : vector<8x32xf32>, vector<32x64xf32>, vector<8x64xf32> -> vector<8x64xf32>
    %c1_261 = arith.constant 1 : index
    %c0_262 = arith.constant 0 : index
    %c0_263 = arith.constant 0 : index
    %332 = vector.load %arg15[%c1_261, %c0_262, %c0_263] : memref<2x32x64xf32, #tpu.memory_space<vmem>>, vector<1x32x64xf32>
    %333 = vector.shape_cast %332 : vector<1x32x64xf32> to vector<32x64xf32>
    %cst_264 = arith.constant dense<0.000000e+00> : vector<8x64xf32>
    %334 = tpu.matmul %328, %333, %cst_264 {dimension_numbers = #tpu.dot_dimension_numbers<[1], [0], [0], [1], [0, 0, 1, 1], [], []>} : vector<8x32xf32>, vector<32x64xf32>, vector<8x64xf32> -> vector<8x64xf32>
    %335 = arith.negf %331 : vector<8x64xf32>
    %336 = math.exp %335 : vector<8x64xf32>
    %cst_265 = arith.constant 1.000000e+00 : f32
    %337 = vector.broadcast %cst_265 : f32 to vector<8x64xf32>
    %338 = arith.addf %337, %336 : vector<8x64xf32>
    %339 = arith.divf %337, %338 : vector<8x64xf32>
    %340 = arith.mulf %331, %339 : vector<8x64xf32>
    %341 = arith.mulf %340, %334 : vector<8x64xf32>
    %c1_266 = arith.constant 1 : index
    %c0_267 = arith.constant 0 : index
    %c0_268 = arith.constant 0 : index
    %342 = vector.load %arg16[%c1_266, %c0_267, %c0_268] : memref<2x64x32xf32, #tpu.memory_space<vmem>>, vector<1x64x32xf32>
    %343 = vector.shape_cast %342 : vector<1x64x32xf32> to vector<64x32xf32>
    %cst_269 = arith.constant dense<0.000000e+00> : vector<8x32xf32>
    %344 = tpu.matmul %341, %343, %cst_269 {dimension_numbers = #tpu.dot_dimension_numbers<[1], [0], [0], [1], [0, 0, 1, 1], [], []>} : vector<8x64xf32>, vector<64x32xf32>, vector<8x32xf32> -> vector<8x32xf32>
    %345 = arith.addf %314, %344 : vector<8x32xf32>
    %c0_270 = arith.constant 0 : index
    %c0_271 = arith.constant 0 : index
    %346 = vector.load %arg17[%c0_270, %c0_271] : memref<1x32xf32, #tpu.memory_space<vmem>>, vector<1x32xf32>
    %347 = arith.mulf %345, %345 : vector<8x32xf32>
    %cst_272 = arith.constant dense<0.000000e+00> : vector<8xf32>
    %348 = vector.multi_reduction <add>, %347, %cst_272 [1] : vector<8x32xf32> to vector<8xf32>
    %349 = vector.shape_cast %348 : vector<8xf32> to vector<8x1xf32>
    %cst_273 = arith.constant 3.200000e+01 : f32
    %350 = vector.broadcast %cst_273 : f32 to vector<8x1xf32>
    %351 = arith.divf %349, %350 : vector<8x1xf32>
    %cst_274 = arith.constant 9.99999997E-7 : f32
    %352 = vector.broadcast %cst_274 : f32 to vector<8x1xf32>
    %353 = arith.addf %351, %352 : vector<8x1xf32>
    %354 = math.rsqrt %353 : vector<8x1xf32>
    %355 = vector.broadcast %354 : vector<8x1xf32> to vector<8x32xf32>
    %356 = arith.mulf %345, %355 : vector<8x32xf32>
    %357 = vector.broadcast %346 : vector<1x32xf32> to vector<8x32xf32>
    %358 = arith.mulf %356, %357 : vector<8x32xf32>
    %c0_275 = arith.constant 0 : index
    %c0_276 = arith.constant 0 : index
    %359 = vector.load %arg18[%c0_275, %c0_276] : memref<32x128xf32, #tpu.memory_space<vmem>>, vector<32x128xf32>
    %cst_277 = arith.constant dense<0.000000e+00> : vector<8x128xf32>
    %360 = tpu.matmul %358, %359, %cst_277 {dimension_numbers = #tpu.dot_dimension_numbers<[1], [0], [0], [1], [0, 0, 1, 1], [], []>} : vector<8x32xf32>, vector<32x128xf32>, vector<8x128xf32> -> vector<8x128xf32>
    %c0_278 = arith.constant 0 : index
    %c0_279 = arith.constant 0 : index
    %361 = vector.load %arg19[%c0_278, %c0_279] : memref<8x128xf32, #tpu.memory_space<vmem>>, vector<8x128xf32>
    tpu.vector_store %arg19[%c0_278, %c0_279], %360 {strides = array<i32>} : memref<8x128xf32, #tpu.memory_space<vmem>>, vector<8x128xf32>,
    return
  }
}

</mosaic_0001>

<llo_original>
// kernel: model_forward.1
$region0: #{model_forward.1}
  #allocation0 [shape = 'u32[]', space=smem, size = 0x4, offset = 0x4, fixed_abs, tag = 'smem constant byte address 0x4 - core index']
  #allocation1 [shape = 'u32[144,128]{1,0:T(1,128)}', space=vmem, size = 0x12000, scoped, tag = 'internal scratch']
  %s0 = inlined_call_operand.vmem [shape: f32[8,32], index: 0, kind: input, shape index: {}]
  %s1 = inlined_call_operand.vmem [shape: f32[32,8], index: 1, kind: input, shape index: {}]
  %s2 = inlined_call_operand.vmem [shape: f32[32,8], index: 2, kind: input, shape index: {}]
  %s3 = inlined_call_operand.vmem [shape: f32[16,8], index: 3, kind: input, shape index: {}]
  %s4 = inlined_call_operand.vmem [shape: f32[16,8], index: 4, kind: input, shape index: {}]
  %s5 = inlined_call_operand.vmem [shape: f32[32,8], index: 5, kind: input, shape index: {}]
  %s6 = inlined_call_operand.vmem [shape: f32[2,1,32], index: 6, kind: input, shape index: {}]
  %s7 = inlined_call_operand.vmem [shape: f32[2,4,32,8], index: 7, kind: input, shape index: {}]
  %s8 = inlined_call_operand.vmem [shape: f32[2,4,32,8], index: 8, kind: input, shape index: {}]
  %s9 = inlined_call_operand.vmem [shape: f32[2,2,32,8], index: 9, kind: input, shape index: {}]
  %s10 = inlined_call_operand.vmem [shape: f32[2,2,32,8], index: 10, kind: input, shape index: {}]
  %s11 = inlined_call_operand.vmem [shape: f32[2,2,32,8], index: 11, kind: input, shape index: {}]
  %s12 = inlined_call_operand.vmem [shape: f32[2,4,8,32], index: 12, kind: input, shape index: {}]
  %s13 = inlined_call_operand.vmem [shape: f32[2,1,32], index: 13, kind: input, shape index: {}]
  %s14 = inlined_call_operand.vmem [shape: f32[2,32,64], index: 14, kind: input, shape index: {}]
  %s15 = inlined_call_operand.vmem [shape: f32[2,32,64], index: 15, kind: input, shape index: {}]
  %s16 = inlined_call_operand.vmem [shape: f32[2,64,32], index: 16, kind: input, shape index: {}]
  %s17 = inlined_call_operand.vmem [shape: f32[1,32], index: 17, kind: input, shape index: {}]
  %s18 = inlined_call_operand.vmem [shape: f32[32,128], index: 18, kind: input, shape index: {}]
  %s19 = inlined_call_operand.vmem [shape: f32[8,128], index: 19, kind: output, shape index: {}]
  %s20 = sld [smem:[#allocation0]]
  $region86: #{model_forward.1} parent=0
    _
  %s22 = ssub.s32 1, %s20
  %s23 = scalar_select 0, %s22, %s20
  // Predicated region
  $region2: #{model_forward.1} parent=0 // pred_check
    _
  $region3: #{model_forward.1} parent=0 // pred_check_branch
    %25 = sbr.rel (0) target = $region5
  $region4: #{model_forward.1} parent=0 // pred_region
    _
  $region5: #{model_forward.1} parent=0 // pred_fallthru
    _
  // Predicated region
  $region6: #{model_forward.1} parent=0 // pred_check
    _
  $region7: #{model_forward.1} parent=0 // pred_check_branch
    %27 = sbr.rel (0) target = $region9
  $region8: #{model_forward.1} parent=0 // pred_region
    _
  $region9: #{model_forward.1} parent=0 // pred_fallthru
    _
  // Predicated region
  $region10: #{model_forward.1} parent=0 // pred_check
    _
  $region11: #{model_forward.1} parent=0 // pred_check_branch
    %29 = sbr.rel (0) target = $region13
  $region12: #{model_forward.1} parent=0 // pred_region
    _
  $region13: #{model_forward.1} parent=0 // pred_fallthru
    _
  // Predicated region
  $region14: #{model_forward.1} parent=0 // pred_check
    _
  $region15: #{model_forward.1} parent=0 // pred_check_branch
    %31 = sbr.rel (0) target = $region17
  $region16: #{model_forward.1} parent=0 // pred_region
    _
  $region17: #{model_forward.1} parent=0 // pred_fallthru
    _
  // Predicated region
  $region18: #{model_forward.1} parent=0 // pred_check
    _
  $region19: #{model_forward.1} parent=0 // pred_check_branch
    %33 = sbr.rel (0) target = $region21
  $region20: #{model_forward.1} parent=0 // pred_region
    _
  $region21: #{model_forward.1} parent=0 // pred_fallthru
    _
  // Predicated region
  $region22: #{model_forward.1} parent=0 // pred_check
    _
  $region23: #{model_forward.1} parent=0 // pred_check_branch
    %35 = sbr.rel (0) target = $region25
  $region24: #{model_forward.1} parent=0 // pred_region
    _
  $region25: #{model_forward.1} parent=0 // pred_fallthru
    _
  // Predicated region
  $region26: #{model_forward.1} parent=0 // pred_check
    _
  $region27: #{model_forward.1} parent=0 // pred_check_branch
    %37 = sbr.rel (0) target = $region29
  $region28: #{model_forward.1} parent=0 // pred_region
    _
  $region29: #{model_forward.1} parent=0 // pred_fallthru
    _
  // Predicated region
  $region30: #{model_forward.1} parent=0 // pred_check
    _
  $region31: #{model_forward.1} parent=0 // pred_check_branch
    %39 = sbr.rel (0) target = $region33
  $region32: #{model_forward.1} parent=0 // pred_region
    _
  $region33: #{model_forward.1} parent=0 // pred_fallthru
    _
  // Predicated region
  $region34: #{model_forward.1} parent=0 // pred_check
    _
  $region35: #{model_forward.1} parent=0 // pred_check_branch
    %41 = sbr.rel (0) target = $region37
  $region36: #{model_forward.1} parent=0 // pred_region
    _
  $region37: #{model_forward.1} parent=0 // pred_fallthru
    _
  // Predicated region
  $region38: #{model_forward.1} parent=0 // pred_check
    _
  $region39: #{model_forward.1} parent=0 // pred_check_branch
    %43 = sbr.rel (0) target = $region41
  $region40: #{model_forward.1} parent=0 // pred_region
    _
  $region41: #{model_forward.1} parent=0 // pred_fallthru
    _
  // Predicated region
  $region42: #{model_forward.1} parent=0 // pred_check
    _
  $region43: #{model_forward.1} parent=0 // pred_check_branch
    %45 = sbr.rel (0) target = $region45
  $region44: #{model_forward.1} parent=0 // pred_region
    _
  $region45: #{model_forward.1} parent=0 // pred_fallthru
    _
  // Predicated region
  $region46: #{model_forward.1} parent=0 // pred_check
    _
  $region47: #{model_forward.1} parent=0 // pred_check_branch
    %47 = sbr.rel (0) target = $region49
  $region48: #{model_forward.1} parent=0 // pred_region
    _
  $region49: #{model_forward.1} parent=0 // pred_fallthru
    _
  // Predicated region
  $region50: #{model_forward.1} parent=0 // pred_check
    _
  $region51: #{model_forward.1} parent=0 // pred_check_branch
    %49 = sbr.rel (0) target = $region53
  $region52: #{model_forward.1} parent=0 // pred_region
    _
  $region53: #{model_forward.1} parent=0 // pred_fallthru
    _
  // Predicated region
  $region54: #{model_forward.1} parent=0 // pred_check
    _
  $region55: #{model_forward.1} parent=0 // pred_check_branch
    %51 = sbr.rel (0) target = $region57
  $region56: #{model_forward.1} parent=0 // pred_region
    _
  $region57: #{model_forward.1} parent=0 // pred_fallthru
    _
  // Predicated region
  $region58: #{model_forward.1} parent=0 // pred_check
    _
  $region59: #{model_forward.1} parent=0 // pred_check_branch
    %53 = sbr.rel (0) target = $region61
  $region60: #{model_forward.1} parent=0 // pred_region
    _
  $region61: #{model_forward.1} parent=0 // pred_fallthru
    _
  // Predicated region
  $region62: #{model_forward.1} parent=0 // pred_check
    _
  $region63: #{model_forward.1} parent=0 // pred_check_branch
    %55 = sbr.rel (0) target = $region65
  $region64: #{model_forward.1} parent=0 // pred_region
    _
  $region65: #{model_forward.1} parent=0 // pred_fallthru
    _
  // Predicated region
  $region66: #{model_forward.1} parent=0 // pred_check
    _
  $region67: #{model_forward.1} parent=0 // pred_check_branch
    %57 = sbr.rel (0) target = $region69
  $region68: #{model_forward.1} parent=0 // pred_region
    _
  $region69: #{model_forward.1} parent=0 // pred_fallthru
    _
  // Predicated region
  $region70: #{model_forward.1} parent=0 // pred_check
    _
  $region71: #{model_forward.1} parent=0 // pred_check_branch
    %59 = sbr.rel (0) target = $region73
  $region72: #{model_forward.1} parent=0 // pred_region
    _
  $region73: #{model_forward.1} parent=0 // pred_fallthru
    _
  // Predicated region
  $region74: #{model_forward.1} parent=0 // pred_check
    _
  $region75: #{model_forward.1} parent=0 // pred_check_branch
    %61 = sbr.rel (0) target = $region77
  $region76: #{model_forward.1} parent=0 // pred_region
    _
  $region77: #{model_forward.1} parent=0 // pred_fallthru
    _
  %v62 = vld [vmem:[%s0] sm:$0xff]
  %v63 = vld [vmem:[%s1] sm:$0xff]
  %v64 = vld [vmem:[%s1 + $0x8] sm:$0xff]
  %v65 = vld [vmem:[%s1 + $0x10] sm:$0xff]
  %v66 = vld [vmem:[%s1 + $0x18] sm:$0xff]
  %v67 = vld [vmem:[%s2] sm:$0xff]
  %v68 = vld [vmem:[%s2 + $0x8] sm:$0xff]
  %v69 = vld [vmem:[%s2 + $0x10] sm:$0xff]
  %v70 = vld [vmem:[%s2 + $0x18] sm:$0xff]
  %v71 = vld [vmem:[%s3] sm:$0xff]
  %v72 = vld [vmem:[%s3 + $0x8] sm:$0xff]
  %v73 = vld [vmem:[%s4] sm:$0xff]
  %v74 = vld [vmem:[%s4 + $0x8] sm:$0xff]
  %v75 = vld [vmem:[%s5] sm:$0xff]
  %v76 = vld [vmem:[%s5 + $0x8] sm:$0xff]
  %v77 = vld [vmem:[%s5 + $0x10] sm:$0xff]
  %v78 = vld [vmem:[%s5 + $0x18] sm:$0xff]
  %vm79 = vcmp.ne.f32.partialorder %v75, 0.0
  %vm80 = vcmp.ne.f32.partialorder %v76, 0.0
  %vm81 = vcmp.ne.f32.partialorder %v77, 0.0
  %vm82 = vcmp.ne.f32.partialorder %v78, 0.0
  %v83 = vld [vmem:[%s6] sm:$0x1]
  %v84 = vmul.f32 %v62, %v62
  %vm85 = vcmask 261120
  %v86 = vsel %vm85, %v84, 0.0
  %87 = vadd.xlane.f32.xlu0 %v86
  %v88 = vpop.xlane.xlu0 %87
  %v89 = vrcp.pop 32.0
  %v90 = vmul.f32 %v88, %v89
  %v91 = vadd.f32 %v90, 1e-06
  %v92 = vrsqrt.pop %v91
  %v93 = vmul.f32 %v62, %v92
  %v95 = vlaneseq
  %v96 = vshrl.u32 %v95, 7
  %v97 = vsub.s32 0, %v96
  %v98 = vrot.slane %v83, %v97
  %v100 = vmul.f32 %v93, %v98
  %v101 = vld [vmem:[%s7] sm:$0xff]
  %v102 = vld [vmem:[%s7 + $0x8] sm:$0xff]
  %v103 = vld [vmem:[%s7 + $0x10] sm:$0xff]
  %v104 = vld [vmem:[%s7 + $0x18] sm:$0xff]
  %v106 = vsel %vm85, %v100, 0
  %108 = vmatprep.subr.mxu0 0.0
  %109 = vmatpush1.msra.mxu0 %v101
  %110 = vmatprep.subr.mxu0 0.0
  %111 = vmatpush1.msra.mxu0 %v102
  %112 = vmatprep.subr.mxu0 0.0
  %113 = vmatpush1.msra.mxu0 %v103
  %114 = vmatprep.subr.mxu0 0.0
  %115 = vmatpush1.msra.mxu0 %v104
  %116 = vmatprep.subr.mxu0 0.0
  %117 = vmatpush1.msra.mxu0 0.0
  %118 = vmatprep.subr.mxu0 0.0
  %119 = vmatpush1.msra.mxu0 0.0
  %120 = vmatprep.subr.mxu0 0.0
  %121 = vmatpush1.msra.mxu0 0.0
  %122 = vmatprep.subr.mxu0 0.0
  %123 = vmatpush1.msra.mxu0 0.0
  %124 = vmatprep.subr.mxu0 0.0
  %125 = vmatpush1.msra.mxu0 0.0
  %126 = vmatprep.subr.mxu0 0.0
  %127 = vmatpush1.msra.mxu0 0.0
  %128 = vmatprep.subr.mxu0 0.0
  %129 = vmatpush1.msra.mxu0 0.0
  %130 = vmatprep.subr.mxu0 0.0
  %131 = vmatpush1.msra.mxu0 0.0
  %132 = vmatprep.subr.mxu0 0.0
  %133 = vmatpush1.msra.mxu0 0.0
  %134 = vmatprep.subr.mxu0 0.0
  %135 = vmatpush1.msra.mxu0 0.0
  %136 = vmatprep.subr.mxu0 0.0
  %137 = vmatpush1.msra.mxu0 0.0
  %138 = vmatprep.subr.mxu0 0.0
  %139 = vmatpush1.msra.mxu0 0.0
  %140 = vmatprep.subr.mxu0 0.0
  %141 = vmatpush1.msra.mxu0 0.0
  %142 = vmatprep.subr.mxu0 0.0
  %143 = vmatpush1.msra.mxu0 0.0
  %144 = vmatprep.subr.mxu0 0.0
  %145 = vmatpush1.msra.mxu0 0.0
  %146 = vmatprep.subr.mxu0 0.0
  %147 = vmatpush1.msra.mxu0 0.0
  %148 = vmatprep.subr.mxu0 0.0
  %149 = vmatpush1.msra.mxu0 0.0
  %150 = vmatprep.subr.mxu0 0.0
  %151 = vmatpush1.msra.mxu0 0.0
  %152 = vmatprep.subr.mxu0 0.0
  %153 = vmatpush1.msra.mxu0 0.0
  %154 = vmatprep.subr.mxu0 0.0
  %155 = vmatpush1.msra.mxu0 0.0
  %156 = vmatprep.subr.mxu0 0.0
  %157 = vmatpush1.msra.mxu0 0.0
  %158 = vmatprep.subr.mxu0 0.0
  %159 = vmatpush1.msra.mxu0 0.0
  %160 = vmatprep.subr.mxu0 0.0
  %161 = vmatpush1.msra.mxu0 0.0
  %162 = vmatprep.subr.mxu0 0.0
  %163 = vmatpush1.msra.mxu0 0.0
  %164 = vmatprep.subr.mxu0 0.0
  %165 = vmatpush1.msra.mxu0 0.0
  %166 = vmatprep.subr.mxu0 0.0
  %167 = vmatpush1.msra.mxu0 0.0
  %168 = vmatprep.subr.mxu0 0.0
  %169 = vmatpush1.msra.mxu0 0.0
  %170 = vmatprep.subr.mxu0 0.0
  %171 = vmatpush1.msra.mxu0 0.0
  %172 = vmatprep.mubr.f32.mxu0 0.0
  %173 = vmatmul.mubr.f32.gmra.mrb[0].mxu0 %v106
  %v174 = vpop.f32.mrb[0].mxu0
  %v175 = vadd.f32 0.0, %v174
  %v176 = vpop.f32.mrb[0].mxu0
  %177 = vdwg.mxu0
  %s178 = scalar_lea.vmem %s7, 32
  %v179 = vld [vmem:[%s178] sm:$0xff]
  %v180 = vld [vmem:[%s178 + $0x8] sm:$0xff]
  %v181 = vld [vmem:[%s178 + $0x10] sm:$0xff]
  %v182 = vld [vmem:[%s178 + $0x18] sm:$0xff]
  %183 = vmatprep.subr.mxu0 0.0
  %184 = vmatpush1.msra.mxu0 %v179
  %185 = vmatprep.subr.mxu0 0.0
  %186 = vmatpush1.msra.mxu0 %v180
  %187 = vmatprep.subr.mxu0 0.0
  %188 = vmatpush1.msra.mxu0 %v181
  %189 = vmatprep.subr.mxu0 0.0
  %190 = vmatpush1.msra.mxu0 %v182
  %191 = vmatprep.subr.mxu0 0.0
  %192 = vmatpush1.msra.mxu0 0.0
  %193 = vmatprep.subr.mxu0 0.0
  %194 = vmatpush1.msra.mxu0 0.0
  %195 = vmatprep.subr.mxu0 0.0
  %196 = vmatpush1.msra.mxu0 0.0
  %197 = vmatprep.subr.mxu0 0.0
  %198 = vmatpush1.msra.mxu0 0.0
  %199 = vmatprep.subr.mxu0 0.0
  %200 = vmatpush1.msra.mxu0 0.0
  %201 = vmatprep.subr.mxu0 0.0
  %202 = vmatpush1.msra.mxu0 0.0
  %203 = vmatprep.subr.mxu0 0.0
  %204 = vmatpush1.msra.mxu0 0.0
  %205 = vmatprep.subr.mxu0 0.0
  %206 = vmatpush1.msra.mxu0 0.0
  %207 = vmatprep.subr.mxu0 0.0
  %208 = vmatpush1.msra.mxu0 0.0
  %209 = vmatprep.subr.mxu0 0.0
  %210 = vmatpush1.msra.mxu0 0.0
  %211 = vmatprep.subr.mxu0 0.0
  %212 = vmatpush1.msra.mxu0 0.0
  %213 = vmatprep.subr.mxu0 0.0
  %214 = vmatpush1.msra.mxu0 0.0
  %215 = vmatprep.subr.mxu0 0.0
  %216 = vmatpush1.msra.mxu0 0.0
  %217 = vmatprep.subr.mxu0 0.0
  %218 = vmatpush1.msra.mxu0 0.0
  %219 = vmatprep.subr.mxu0 0.0
  %220 = vmatpush1.msra.mxu0 0.0
  %221 = vmatprep.subr.mxu0 0.0
  %222 = vmatpush1.msra.mxu0 0.0
  %223 = vmatprep.subr.mxu0 0.0
  %224 = vmatpush1.msra.mxu0 0.0
  %225 = vmatprep.subr.mxu0 0.0
  %226 = vmatpush1.msra.mxu0 0.0
  %227 = vmatprep.subr.mxu0 0.0
  %228 = vmatpush1.msra.mxu0 0.0
  %229 = vmatprep.subr.mxu0 0.0
  %230 = vmatpush1.msra.mxu0 0.0
  %231 = vmatprep.subr.mxu0 0.0
  %232 = vmatpush1.msra.mxu0 0.0
  %233 = vmatprep.subr.mxu0 0.0
  %234 = vmatpush1.msra.mxu0 0.0
  %235 = vmatprep.subr.mxu0 0.0
  %236 = vmatpush1.msra.mxu0 0.0
  %237 = vmatprep.subr.mxu0 0.0
  %238 = vmatpush1.msra.mxu0 0.0
  %239 = vmatprep.subr.mxu0 0.0
  %240 = vmatpush1.msra.mxu0 0.0
  %241 = vmatprep.subr.mxu0 0.0
  %242 = vmatpush1.msra.mxu0 0.0
  %243 = vmatprep.subr.mxu0 0.0
  %244 = vmatpush1.msra.mxu0 0.0
  %245 = vmatprep.subr.mxu0 0.0
  %246 = vmatpush1.msra.mxu0 0.0
  %247 = vmatprep.mubr.f32.mxu0 0.0
  %248 = vmatmul.mubr.f32.gmra.mrb[0].mxu0 %v106
  %v249 = vpop.f32.mrb[0].mxu0
  %v250 = vadd.f32 0.0, %v249
  %v251 = vpop.f32.mrb[0].mxu0
  %252 = vdwg.mxu0
  %s253 = scalar_lea.vmem %s7, 64
  %v254 = vld [vmem:[%s253] sm:$0xff]
  %v255 = vld [vmem:[%s253 + $0x8] sm:$0xff]
  %v256 = vld [vmem:[%s253 + $0x10] sm:$0xff]
  %v257 = vld [vmem:[%s253 + $0x18] sm:$0xff]
  %258 = vmatprep.subr.mxu0 0.0
  %259 = vmatpush1.msra.mxu0 %v254
  %260 = vmatprep.subr.mxu0 0.0
  %261 = vmatpush1.msra.mxu0 %v255
  %262 = vmatprep.subr.mxu0 0.0
  %263 = vmatpush1.msra.mxu0 %v256
  %264 = vmatprep.subr.mxu0 0.0
  %265 = vmatpush1.msra.mxu0 %v257
  %266 = vmatprep.subr.mxu0 0.0
  %267 = vmatpush1.msra.mxu0 0.0
  %268 = vmatprep.subr.mxu0 0.0
  %269 = vmatpush1.msra.mxu0 0.0
  %270 = vmatprep.subr.mxu0 0.0
  %271 = vmatpush1.msra.mxu0 0.0
  %272 = vmatprep.subr.mxu0 0.0
  %273 = vmatpush1.msra.mxu0 0.0
  %274 = vmatprep.subr.mxu0 0.0
  %275 = vmatpush1.msra.mxu0 0.0
  %276 = vmatprep.subr.mxu0 0.0
  %277 = vmatpush1.msra.mxu0 0.0
  %278 = vmatprep.subr.mxu0 0.0
  %279 = vmatpush1.msra.mxu0 0.0
  %280 = vmatprep.subr.mxu0 0.0
  %281 = vmatpush1.msra.mxu0 0.0
  %282 = vmatprep.subr.mxu0 0.0
  %283 = vmatpush1.msra.mxu0 0.0
  %284 = vmatprep.subr.mxu0 0.0
  %285 = vmatpush1.msra.mxu0 0.0
  %286 = vmatprep.subr.mxu0 0.0
  %287 = vmatpush1.msra.mxu0 0.0
  %288 = vmatprep.subr.mxu0 0.0
  %289 = vmatpush1.msra.mxu0 0.0
  %290 = vmatprep.subr.mxu0 0.0
  %291 = vmatpush1.msra.mxu0 0.0
  %292 = vmatprep.subr.mxu0 0.0
  %293 = vmatpush1.msra.mxu0 0.0
  %294 = vmatprep.subr.mxu0 0.0
  %295 = vmatpush1.msra.mxu0 0.0
  %296 = vmatprep.subr.mxu0 0.0
  %297 = vmatpush1.msra.mxu0 0.0
  %298 = vmatprep.subr.mxu0 0.0
  %299 = vmatpush1.msra.mxu0 0.0
  %300 = vmatprep.subr.mxu0 0.0
  %301 = vmatpush1.msra.mxu0 0.0
  %302 = vmatprep.subr.mxu0 0.0
  %303 = vmatpush1.msra.mxu0 0.0
  %304 = vmatprep.subr.mxu0 0.0
  %305 = vmatpush1.msra.mxu0 0.0
  %306 = vmatprep.subr.mxu0 0.0
  %307 = vmatpush1.msra.mxu0 0.0
  %308 = vmatprep.subr.mxu0 0.0
  %309 = vmatpush1.msra.mxu0 0.0
  %310 = vmatprep.subr.mxu0 0.0
  %311 = vmatpush1.msra.mxu0 0.0
  %312 = vmatprep.subr.mxu0 0.0
  %313 = vmatpush1.msra.mxu0 0.0
  %314 = vmatprep.subr.mxu0 0.0
  %315 = vmatpush1.msra.mxu0 0.0
  %316 = vmatprep.subr.mxu0 0.0
  %317 = vmatpush1.msra.mxu0 0.0
  %318 = vmatprep.subr.mxu0 0.0
  %319 = vmatpush1.msra.mxu0 0.0
  %320 = vmatprep.subr.mxu0 0.0
  %321 = vmatpush1.msra.mxu0 0.0
  %322 = vmatprep.mubr.f32.mxu0 0.0
  %323 = vmatmul.mubr.f32.gmra.mrb[0].mxu0 %v106
  %v324 = vpop.f32.mrb[0].mxu0
  %v325 = vadd.f32 0.0, %v324
  %v326 = vpop.f32.mrb[0].mxu0
  %327 = vdwg.mxu0
  %s328 = scalar_lea.vmem %s7, 96
  %v329 = vld [vmem:[%s328] sm:$0xff]
  %v330 = vld [vmem:[%s328 + $0x8] sm:$0xff]
  %v331 = vld [vmem:[%s328 + $0x10] sm:$0xff]
  %v332 = vld [vmem:[%s328 + $0x18] sm:$0xff]
  %333 = vmatprep.subr.mxu0 0.0
  %334 = vmatpush1.msra.mxu0 %v329
  %335 = vmatprep.subr.mxu0 0.0
  %336 = vmatpush1.msra.mxu0 %v330
  %337 = vmatprep.subr.mxu0 0.0
  %338 = vmatpush1.msra.mxu0 %v331
  %339 = vmatprep.subr.mxu0 0.0
  %340 = vmatpush1.msra.mxu0 %v332
  %341 = vmatprep.subr.mxu0 0.0
  %342 = vmatpush1.msra.mxu0 0.0
  %343 = vmatprep.subr.mxu0 0.0
  %344 = vmatpush1.msra.mxu0 0.0
  %345 = vmatprep.subr.mxu0 0.0
  %346 = vmatpush1.msra.mxu0 0.0
  %347 = vmatprep.subr.mxu0 0.0
  %348 = vmatpush1.msra.mxu0 0.0
  %349 = vmatprep.subr.mxu0 0.0
  %350 = vmatpush1.msra.mxu0 0.0
  %351 = vmatprep.subr.mxu0 0.0
  %352 = vmatpush1.msra.mxu0 0.0
  %353 = vmatprep.subr.mxu0 0.0
  %354 = vmatpush1.msra.mxu0 0.0
  %355 = vmatprep.subr.mxu0 0.0
  %356 = vmatpush1.msra.mxu0 0.0
  %357 = vmatprep.subr.mxu0 0.0
  %358 = vmatpush1.msra.mxu0 0.0
  %359 = vmatprep.subr.mxu0 0.0
  %360 = vmatpush1.msra.mxu0 0.0
  %361 = vmatprep.subr.mxu0 0.0
  %362 = vmatpush1.msra.mxu0 0.0
  %363 = vmatprep.subr.mxu0 0.0
  %364 = vmatpush1.msra.mxu0 0.0
  %365 = vmatprep.subr.mxu0 0.0
  %366 = vmatpush1.msra.mxu0 0.0
  %367 = vmatprep.subr.mxu0 0.0
  %368 = vmatpush1.msra.mxu0 0.0
  %369 = vmatprep.subr.mxu0 0.0
  %370 = vmatpush1.msra.mxu0 0.0
  %371 = vmatprep.subr.mxu0 0.0
  %372 = vmatpush1.msra.mxu0 0.0
  %373 = vmatprep.subr.mxu0 0.0
  %374 = vmatpush1.msra.mxu0 0.0
  %375 = vmatprep.subr.mxu0 0.0
  %376 = vmatpush1.msra.mxu0 0.0
  %377 = vmatprep.subr.mxu0 0.0
  %378 = vmatpush1.msra.mxu0 0.0
  %379 = vmatprep.subr.mxu0 0.0
  %380 = vmatpush1.msra.mxu0 0.0
  %381 = vmatprep.subr.mxu0 0.0
  %382 = vmatpush1.msra.mxu0 0.0
  %383 = vmatprep.subr.mxu0 0.0
  %384 = vmatpush1.msra.mxu0 0.0
  %385 = vmatprep.subr.mxu0 0.0
  %386 = vmatpush1.msra.mxu0 0.0
  %387 = vmatprep.subr.mxu0 0.0
  %388 = vmatpush1.msra.mxu0 0.0
  %389 = vmatprep.subr.mxu0 0.0
  %390 = vmatpush1.msra.mxu0 0.0
  %391 = vmatprep.subr.mxu0 0.0
  %392 = vmatpush1.msra.mxu0 0.0
  %393 = vmatprep.subr.mxu0 0.0
  %394 = vmatpush1.msra.mxu0 0.0
  %395 = vmatprep.subr.mxu0 0.0
  %396 = vmatpush1.msra.mxu0 0.0
  %397 = vmatprep.mubr.f32.mxu0 0.0
  %398 = vmatmul.mubr.f32.gmra.mrb[0].mxu0 %v106
  %v399 = vpop.f32.mrb[0].mxu0
  %v400 = vadd.f32 0.0, %v399
  %v401 = vpop.f32.mrb[0].mxu0
  %402 = vdwg.mxu0
  %v403 = vld [vmem:[%s8] sm:$0xff]
  %v404 = vld [vmem:[%s8 + $0x8] sm:$0xff]
  %v405 = vld [vmem:[%s8 + $0x10] sm:$0xff]
  %v406 = vld [vmem:[%s8 + $0x18] sm:$0xff]
  %407 = vmatprep.subr.mxu0 0.0
  %408 = vmatpush1.msra.mxu0 %v403
  %409 = vmatprep.subr.mxu0 0.0
  %410 = vmatpush1.msra.mxu0 %v404
  %411 = vmatprep.subr.mxu0 0.0
  %412 = vmatpush1.msra.mxu0 %v405
  %413 = vmatprep.subr.mxu0 0.0
  %414 = vmatpush1.msra.mxu0 %v406
  %415 = vmatprep.subr.mxu0 0.0
  %416 = vmatpush1.msra.mxu0 0.0
  %417 = vmatprep.subr.mxu0 0.0
  %418 = vmatpush1.msra.mxu0 0.0
  %419 = vmatprep.subr.mxu0 0.0
  %420 = vmatpush1.msra.mxu0 0.0
  %421 = vmatprep.subr.mxu0 0.0
  %422 = vmatpush1.msra.mxu0 0.0
  %423 = vmatprep.subr.mxu0 0.0
  %424 = vmatpush1.msra.mxu0 0.0
  %425 = vmatprep.subr.mxu0 0.0
  %426 = vmatpush1.msra.mxu0 0.0
  %427 = vmatprep.subr.mxu0 0.0
  %428 = vmatpush1.msra.mxu0 0.0
  %429 = vmatprep.subr.mxu0 0.0
  %430 = vmatpush1.msra.mxu0 0.0
  %431 = vmatprep.subr.mxu0 0.0
  %432 = vmatpush1.msra.mxu0 0.0
  %433 = vmatprep.subr.mxu0 0.0
  %434 = vmatpush1.msra.mxu0 0.0
  %435 = vmatprep.subr.mxu0 0.0
  %436 = vmatpush1.msra.mxu0 0.0
  %437 = vmatprep.subr.mxu0 0.0
  %438 = vmatpush1.msra.mxu0 0.0
  %439 = vmatprep.subr.mxu0 0.0
  %440 = vmatpush1.msra.mxu0 0.0
  %441 = vmatprep.subr.mxu0 0.0
  %442 = vmatpush1.msra.mxu0 0.0
  %443 = vmatprep.subr.mxu0 0.0
  %444 = vmatpush1.msra.mxu0 0.0
  %445 = vmatprep.subr.mxu0 0.0
  %446 = vmatpush1.msra.mxu0 0.0
  %447 = vmatprep.subr.mxu0 0.0
  %448 = vmatpush1.msra.mxu0 0.0
  %449 = vmatprep.subr.mxu0 0.0
  %450 = vmatpush1.msra.mxu0 0.0
  %451 = vmatprep.subr.mxu0 0.0
  %452 = vmatpush1.msra.mxu0 0.0
  %453 = vmatprep.subr.mxu0 0.0
  %454 = vmatpush1.msra.mxu0 0.0
  %455 = vmatprep.subr.mxu0 0.0
  %456 = vmatpush1.msra.mxu0 0.0
  %457 = vmatprep.subr.mxu0 0.0
  %458 = vmatpush1.msra.mxu0 0.0
  %459 = vmatprep.subr.mxu0 0.0
  %460 = vmatpush1.msra.mxu0 0.0
  %461 = vmatprep.subr.mxu0 0.0
  %462 = vmatpush1.msra.mxu0 0.0
  %463 = vmatprep.subr.mxu0 0.0
  %464 = vmatpush1.msra.mxu0 0.0
  %465 = vmatprep.subr.mxu0 0.0
  %466 = vmatpush1.msra.mxu0 0.0
  %467 = vmatprep.subr.mxu0 0.0
  %468 = vmatpush1.msra.mxu0 0.0
  %469 = vmatprep.subr.mxu0 0.0
  %470 = vmatpush1.msra.mxu0 0.0
  %471 = vmatprep.mubr.f32.mxu0 0.0
  %472 = vmatmul.mubr.f32.gmra.mrb[0].mxu0 %v106
  %v473 = vpop.f32.mrb[0].mxu0
  %v474 = vadd.f32 0.0, %v473
  %v475 = vpop.f32.mrb[0].mxu0
  %476 = vdwg.mxu0
  %s477 = scalar_lea.vmem %s8, 32
  %v478 = vld [vmem:[%s477] sm:$0xff]
  %v479 = vld [vmem:[%s477 + $0x8] sm:$0xff]
  %v480 = vld [vmem:[%s477 + $0x10] sm:$0xff]
  %v481 = vld [vmem:[%s477 + $0x18] sm:$0xff]
  %482 = vmatprep.subr.mxu0 0.0
  %483 = vmatpush1.msra.mxu0 %v478
  %484 = vmatprep.subr.mxu0 0.0
  %485 = vmatpush1.msra.mxu0 %v479
  %486 = vmatprep.subr.mxu0 0.0
  %487 = vmatpush1.msra.mxu0 %v480
  %488 = vmatprep.subr.mxu0 0.0
  %489 = vmatpush1.msra.mxu0 %v481
  %490 = vmatprep.subr.mxu0 0.0
  %491 = vmatpush1.msra.mxu0 0.0
  %492 = vmatprep.subr.mxu0 0.0
  %493 = vmatpush1.msra.mxu0 0.0
  %494 = vmatprep.subr.mxu0 0.0
  %495 = vmatpush1.msra.mxu0 0.0
  %496 = vmatprep.subr.mxu0 0.0
  %497 = vmatpush1.msra.mxu0 0.0
  %498 = vmatprep.subr.mxu0 0.0
  %499 = vmatpush1.msra.mxu0 0.0
  %500 = vmatprep.subr.mxu0 0.0
  %501 = vmatpush1.msra.mxu0 0.0
  %502 = vmatprep.subr.mxu0 0.0
  %503 = vmatpush1.msra.mxu0 0.0
  %504 = vmatprep.subr.mxu0 0.0
  %505 = vmatpush1.msra.mxu0 0.0
  %506 = vmatprep.subr.mxu0 0.0
  %507 = vmatpush1.msra.mxu0 0.0
  %508 = vmatprep.subr.mxu0 0.0
  %509 = vmatpush1.msra.mxu0 0.0
  %510 = vmatprep.subr.mxu0 0.0
  %511 = vmatpush1.msra.mxu0 0.0
  %512 = vmatprep.subr.mxu0 0.0
  %513 = vmatpush1.msra.mxu0 0.0
  %514 = vmatprep.subr.mxu0 0.0
  %515 = vmatpush1.msra.mxu0 0.0
  %516 = vmatprep.subr.mxu0 0.0
  %517 = vmatpush1.msra.mxu0 0.0
  %518 = vmatprep.subr.mxu0 0.0
  %519 = vmatpush1.msra.mxu0 0.0
  %520 = vmatprep.subr.mxu0 0.0
  %521 = vmatpush1.msra.mxu0 0.0
  %522 = vmatprep.subr.mxu0 0.0
  %523 = vmatpush1.msra.mxu0 0.0
  %524 = vmatprep.subr.mxu0 0.0
  %525 = vmatpush1.msra.mxu0 0.0
  %526 = vmatprep.subr.mxu0 0.0
  %527 = vmatpush1.msra.mxu0 0.0
  %528 = vmatprep.subr.mxu0 0.0
  %529 = vmatpush1.msra.mxu0 0.0
  %530 = vmatprep.subr.mxu0 0.0
  %531 = vmatpush1.msra.mxu0 0.0
  %532 = vmatprep.subr.mxu0 0.0
  %533 = vmatpush1.msra.mxu0 0.0
  %534 = vmatprep.subr.mxu0 0.0
  %535 = vmatpush1.msra.mxu0 0.0
  %536 = vmatprep.subr.mxu0 0.0
  %537 = vmatpush1.msra.mxu0 0.0
  %538 = vmatprep.subr.mxu0 0.0
  %539 = vmatpush1.msra.mxu0 0.0
  %540 = vmatprep.subr.mxu0 0.0
  %541 = vmatpush1.msra.mxu0 0.0
  %542 = vmatprep.subr.mxu0 0.0
  %543 = vmatpush1.msra.mxu0 0.0
  %544 = vmatprep.subr.mxu0 0.0
  %545 = vmatpush1.msra.mxu0 0.0
  %546 = vmatprep.mubr.f32.mxu0 0.0
  %547 = vmatmul.mubr.f32.gmra.mrb[0].mxu0 %v106
  %v548 = vpop.f32.mrb[0].mxu0
  %v549 = vadd.f32 0.0, %v548
  %v550 = vpop.f32.mrb[0].mxu0
  %551 = vdwg.mxu0
  %s552 = scalar_lea.vmem %s8, 64
  %v553 = vld [vmem:[%s552] sm:$0xff]
  %v554 = vld [vmem:[%s552 + $0x8] sm:$0xff]
  %v555 = vld [vmem:[%s552 + $0x10] sm:$0xff]
  %v556 = vld [vmem:[%s552 + $0x18] sm:$0xff]
  %557 = vmatprep.subr.mxu0 0.0
  %558 = vmatpush1.msra.mxu0 %v553
  %559 = vmatprep.subr.mxu0 0.0
  %560 = vmatpush1.msra.mxu0 %v554
  %561 = vmatprep.subr.mxu0 0.0
  %562 = vmatpush1.msra.mxu0 %v555
  %563 = vmatprep.subr.mxu0 0.0
  %564 = vmatpush1.msra.mxu0 %v556
  %565 = vmatprep.subr.mxu0 0.0
  %566 = vmatpush1.msra.mxu0 0.0
  %567 = vmatprep.subr.mxu0 0.0
  %568 = vmatpush1.msra.mxu0 0.0
  %569 = vmatprep.subr.mxu0 0.0
  %570 = vmatpush1.msra.mxu0 0.0
  %571 = vmatprep.subr.mxu0 0.0
  %572 = vmatpush1.msra.mxu0 0.0
  %573 = vmatprep.subr.mxu0 0.0
  %574 = vmatpush1.msra.mxu0 0.0
  %575 = vmatprep.subr.mxu0 0.0
  %576 = vmatpush1.msra.mxu0 0.0
  %577 = vmatprep.subr.mxu0 0.0
  %578 = vmatpush1.msra.mxu0 0.0
  %579 = vmatprep.subr.mxu0 0.0
  %580 = vmatpush1.msra.mxu0 0.0
  %581 = vmatprep.subr.mxu0 0.0
  %582 = vmatpush1.msra.mxu0 0.0
  %583 = vmatprep.subr.mxu0 0.0
  %584 = vmatpush1.msra.mxu0 0.0
  %585 = vmatprep.subr.mxu0 0.0
  %586 = vmatpush1.msra.mxu0 0.0
  %587 = vmatprep.subr.mxu0 0.0
  %588 = vmatpush1.msra.mxu0 0.0
  %589 = vmatprep.subr.mxu0 0.0
  %590 = vmatpush1.msra.mxu0 0.0
  %591 = vmatprep.subr.mxu0 0.0
  %592 = vmatpush1.msra.mxu0 0.0
  %593 = vmatprep.subr.mxu0 0.0
  %594 = vmatpush1.msra.mxu0 0.0
  %595 = vmatprep.subr.mxu0 0.0
  %596 = vmatpush1.msra.mxu0 0.0
  %597 = vmatprep.subr.mxu0 0.0
  %598 = vmatpush1.msra.mxu0 0.0
  %599 = vmatprep.subr.mxu0 0.0
  %600 = vmatpush1.msra.mxu0 0.0
  %601 = vmatprep.subr.mxu0 0.0
  %602 = vmatpush1.msra.mxu0 0.0
  %603 = vmatprep.subr.mxu0 0.0
  %604 = vmatpush1.msra.mxu0 0.0
  %605 = vmatprep.subr.mxu0 0.0
  %606 = vmatpush1.msra.mxu0 0.0
  %607 = vmatprep.subr.mxu0 0.0
  %608 = vmatpush1.msra.mxu0 0.0
  %609 = vmatprep.subr.mxu0 0.0
  %610 = vmatpush1.msra.mxu0 0.0
  %611 = vmatprep.subr.mxu0 0.0
  %612 = vmatpush1.msra.mxu0 0.0
  %613 = vmatprep.subr.mxu0 0.0
  %614 = vmatpush1.msra.mxu0 0.0
  %615 = vmatprep.subr.mxu0 0.0
  %616 = vmatpush1.msra.mxu0 0.0
  %617 = vmatprep.subr.mxu0 0.0
  %618 = vmatpush1.msra.mxu0 0.0
  %619 = vmatprep.subr.mxu0 0.0
  %620 = vmatpush1.msra.mxu0 0.0
  %621 = vmatprep.mubr.f32.mxu0 0.0
  %622 = vmatmul.mubr.f32.gmra.mrb[0].mxu0 %v106
  %v623 = vpop.f32.mrb[0].mxu0
  %v624 = vadd.f32 0.0, %v623
  %v625 = vpop.f32.mrb[0].mxu0
  %626 = vdwg.mxu0
  %s627 = scalar_lea.vmem %s8, 96
  %v628 = vld [vmem:[%s627] sm:$0xff]
  %v629 = vld [vmem:[%s627 + $0x8] sm:$0xff]
  %v630 = vld [vmem:[%s627 + $0x10] sm:$0xff]
  %v631 = vld [vmem:[%s627 + $0x18] sm:$0xff]
  %632 = vmatprep.subr.mxu0 0.0
  %633 = vmatpush1.msra.mxu0 %v628
  %634 = vmatprep.subr.mxu0 0.0
  %635 = vmatpush1.msra.mxu0 %v629
  %636 = vmatprep.subr.mxu0 0.0
  %637 = vmatpush1.msra.mxu0 %v630
  %638 = vmatprep.subr.mxu0 0.0
  %639 = vmatpush1.msra.mxu0 %v631
  %640 = vmatprep.subr.mxu0 0.0
  %641 = vmatpush1.msra.mxu0 0.0
  %642 = vmatprep.subr.mxu0 0.0
  %643 = vmatpush1.msra.mxu0 0.0
  %644 = vmatprep.subr.mxu0 0.0
  %645 = vmatpush1.msra.mxu0 0.0
  %646 = vmatprep.subr.mxu0 0.0
  %647 = vmatpush1.msra.mxu0 0.0
  %648 = vmatprep.subr.mxu0 0.0
  %649 = vmatpush1.msra.mxu0 0.0
  %650 = vmatprep.subr.mxu0 0.0
  %651 = vmatpush1.msra.mxu0 0.0
  %652 = vmatprep.subr.mxu0 0.0
  %653 = vmatpush1.msra.mxu0 0.0
  %654 = vmatprep.subr.mxu0 0.0
  %655 = vmatpush1.msra.mxu0 0.0
  %656 = vmatprep.subr.mxu0 0.0
  %657 = vmatpush1.msra.mxu0 0.0
  %658 = vmatprep.subr.mxu0 0.0
  %659 = vmatpush1.msra.mxu0 0.0
  %660 = vmatprep.subr.mxu0 0.0
  %661 = vmatpush1.msra.mxu0 0.0
  %662 = vmatprep.subr.mxu0 0.0
  %663 = vmatpush1.msra.mxu0 0.0
  %664 = vmatprep.subr.mxu0 0.0
  %665 = vmatpush1.msra.mxu0 0.0
  %666 = vmatprep.subr.mxu0 0.0
  %667 = vmatpush1.msra.mxu0 0.0
  %668 = vmatprep.subr.mxu0 0.0
  %669 = vmatpush1.msra.mxu0 0.0
  %670 = vmatprep.subr.mxu0 0.0
  %671 = vmatpush1.msra.mxu0 0.0
  %672 = vmatprep.subr.mxu0 0.0
  %673 = vmatpush1.msra.mxu0 0.0
  %674 = vmatprep.subr.mxu0 0.0
  %675 = vmatpush1.msra.mxu0 0.0
  %676 = vmatprep.subr.mxu0 0.0
  %677 = vmatpush1.msra.mxu0 0.0
  %678 = vmatprep.subr.mxu0 0.0
  %679 = vmatpush1.msra.mxu0 0.0
  %680 = vmatprep.subr.mxu0 0.0
  %681 = vmatpush1.msra.mxu0 0.0
  %682 = vmatprep.subr.mxu0 0.0
  %683 = vmatpush1.msra.mxu0 0.0
  %684 = vmatprep.subr.mxu0 0.0
  %685 = vmatpush1.msra.mxu0 0.0
  %686 = vmatprep.subr.mxu0 0.0
  %687 = vmatpush1.msra.mxu0 0.0
  %688 = vmatprep.subr.mxu0 0.0
  %689 = vmatpush1.msra.mxu0 0.0
  %690 = vmatprep.subr.mxu0 0.0
  %691 = vmatpush1.msra.mxu0 0.0
  %692 = vmatprep.subr.mxu0 0.0
  %693 = vmatpush1.msra.mxu0 0.0
  %694 = vmatprep.subr.mxu0 0.0
  %695 = vmatpush1.msra.mxu0 0.0
  %696 = vmatprep.mubr.f32.mxu0 0.0
  %697 = vmatmul.mubr.f32.gmra.mrb[0].mxu0 %v106
  %v698 = vpop.f32.mrb[0].mxu0
  %v699 = vadd.f32 0.0, %v698
  %v700 = vpop.f32.mrb[0].mxu0
  %701 = vdwg.mxu0
  %v702 = vld [vmem:[%s9] sm:$0xff]
  %v703 = vld [vmem:[%s9 + $0x8] sm:$0xff]
  %v704 = vld [vmem:[%s9 + $0x10] sm:$0xff]
  %v705 = vld [vmem:[%s9 + $0x18] sm:$0xff]
  %706 = vmatprep.subr.mxu0 0.0
  %707 = vmatpush1.msra.mxu0 %v702
  %708 = vmatprep.subr.mxu0 0.0
  %709 = vmatpush1.msra.mxu0 %v703
  %710 = vmatprep.subr.mxu0 0.0
  %711 = vmatpush1.msra.mxu0 %v704
  %712 = vmatprep.subr.mxu0 0.0
  %713 = vmatpush1.msra.mxu0 %v705
  %714 = vmatprep.subr.mxu0 0.0
  %715 = vmatpush1.msra.mxu0 0.0
  %716 = vmatprep.subr.mxu0 0.0
  %717 = vmatpush1.msra.mxu0 0.0
  %718 = vmatprep.subr.mxu0 0.0
  %719 = vmatpush1.msra.mxu0 0.0
  %720 = vmatprep.subr.mxu0 0.0
  %721 = vmatpush1.msra.mxu0 0.0
  %722 = vmatprep.subr.mxu0 0.0
  %723 = vmatpush1.msra.mxu0 0.0
  %724 = vmatprep.subr.mxu0 0.0
  %725 = vmatpush1.msra.mxu0 0.0
  %726 = vmatprep.subr.mxu0 0.0
  %727 = vmatpush1.msra.mxu0 0.0
  %728 = vmatprep.subr.mxu0 0.0
  %729 = vmatpush1.msra.mxu0 0.0
  %730 = vmatprep.subr.mxu0 0.0
  %731 = vmatpush1.msra.mxu0 0.0
  %732 = vmatprep.subr.mxu0 0.0
  %733 = vmatpush1.msra.mxu0 0.0
  %734 = vmatprep.subr.mxu0 0.0
  %735 = vmatpush1.msra.mxu0 0.0
  %736 = vmatprep.subr.mxu0 0.0
  %737 = vmatpush1.msra.mxu0 0.0
  %738 = vmatprep.subr.mxu0 0.0
  %739 = vmatpush1.msra.mxu0 0.0
  %740 = vmatprep.subr.mxu0 0.0
  %741 = vmatpush1.msra.mxu0 0.0
  %742 = vmatprep.subr.mxu0 0.0
  %743 = vmatpush1.msra.mxu0 0.0
  %744 = vmatprep.subr.mxu0 0.0
  %745 = vmatpush1.msra.mxu0 0.0
  %746 = vmatprep.subr.mxu0 0.0
  %747 = vmatpush1.msra.mxu0 0.0
  %748 = vmatprep.subr.mxu0 0.0
  %749 = vmatpush1.msra.mxu0 0.0
  %750 = vmatprep.subr.mxu0 0.0
  %751 = vmatpush1.msra.mxu0 0.0
  %752 = vmatprep.subr.mxu0 0.0
  %753 = vmatpush1.msra.mxu0 0.0
  %754 = vmatprep.subr.mxu0 0.0
  %755 = vmatpush1.msra.mxu0 0.0
  %756 = vmatprep.subr.mxu0 0.0
  %757 = vmatpush1.msra.mxu0 0.0
  %758 = vmatprep.subr.mxu0 0.0
  %759 = vmatpush1.msra.mxu0 0.0
  %760 = vmatprep.subr.mxu0 0.0
  %761 = vmatpush1.msra.mxu0 0.0
  %762 = vmatprep.subr.mxu0 0.0
  %763 = vmatpush1.msra.mxu0 0.0
  %764 = vmatprep.subr.mxu0 0.0
  %765 = vmatpush1.msra.mxu0 0.0
  %766 = vmatprep.subr.mxu0 0.0
  %767 = vmatpush1.msra.mxu0 0.0
  %768 = vmatprep.subr.mxu0 0.0
  %769 = vmatpush1.msra.mxu0 0.0
  %770 = vmatprep.mubr.f32.mxu0 0.0
  %771 = vmatmul.mubr.f32.gmra.mrb[0].mxu0 %v106
  %v772 = vpop.f32.mrb[0].mxu0
  %v773 = vadd.f32 0.0, %v772
  %v774 = vpop.f32.mrb[0].mxu0
  %775 = vdwg.mxu0
  %s776 = scalar_lea.vmem %s9, 32
  %v777 = vld [vmem:[%s776] sm:$0xff]
  %v778 = vld [vmem:[%s776 + $0x8] sm:$0xff]
  %v779 = vld [vmem:[%s776 + $0x10] sm:$0xff]
  %v780 = vld [vmem:[%s776 + $0x18] sm:$0xff]
  %781 = vmatprep.subr.mxu0 0.0
  %782 = vmatpush1.msra.mxu0 %v777
  %783 = vmatprep.subr.mxu0 0.0
  %784 = vmatpush1.msra.mxu0 %v778
  %785 = vmatprep.subr.mxu0 0.0
  %786 = vmatpush1.msra.mxu0 %v779
  %787 = vmatprep.subr.mxu0 0.0
  %788 = vmatpush1.msra.mxu0 %v780
  %789 = vmatprep.subr.mxu0 0.0
  %790 = vmatpush1.msra.mxu0 0.0
  %791 = vmatprep.subr.mxu0 0.0
  %792 = vmatpush1.msra.mxu0 0.0
  %793 = vmatprep.subr.mxu0 0.0
  %794 = vmatpush1.msra.mxu0 0.0
  %795 = vmatprep.subr.mxu0 0.0
  %796 = vmatpush1.msra.mxu0 0.0
  %797 = vmatprep.subr.mxu0 0.0
  %798 = vmatpush1.msra.mxu0 0.0
  %799 = vmatprep.subr.mxu0 0.0
  %800 = vmatpush1.msra.mxu0 0.0
  %801 = vmatprep.subr.mxu0 0.0
  %802 = vmatpush1.msra.mxu0 0.0
  %803 = vmatprep.subr.mxu0 0.0
  %804 = vmatpush1.msra.mxu0 0.0
  %805 = vmatprep.subr.mxu0 0.0
  %806 = vmatpush1.msra.mxu0 0.0
  %807 = vmatprep.subr.mxu0 0.0
  %808 = vmatpush1.msra.mxu0 0.0
  %809 = vmatprep.subr.mxu0 0.0
  %810 = vmatpush1.msra.mxu0 0.0
  %811 = vmatprep.subr.mxu0 0.0
  %812 = vmatpush1.msra.mxu0 0.0
  %813 = vmatprep.subr.mxu0 0.0
  %814 = vmatpush1.msra.mxu0 0.0
  %815 = vmatprep.subr.mxu0 0.0
  %816 = vmatpush1.msra.mxu0 0.0
  %817 = vmatprep.subr.mxu0 0.0
  %818 = vmatpush1.msra.mxu0 0.0
  %819 = vmatprep.subr.mxu0 0.0
  %820 = vmatpush1.msra.mxu0 0.0
  %821 = vmatprep.subr.mxu0 0.0
  %822 = vmatpush1.msra.mxu0 0.0
  %823 = vmatprep.subr.mxu0 0.0
  %824 = vmatpush1.msra.mxu0 0.0
  %825 = vmatprep.subr.mxu0 0.0
  %826 = vmatpush1.msra.mxu0 0.0
  %827 = vmatprep.subr.mxu0 0.0
  %828 = vmatpush1.msra.mxu0 0.0
  %829 = vmatprep.subr.mxu0 0.0
  %830 = vmatpush1.msra.mxu0 0.0
  %831 = vmatprep.subr.mxu0 0.0
  %832 = vmatpush1.msra.mxu0 0.0
  %833 = vmatprep.subr.mxu0 0.0
  %834 = vmatpush1.msra.mxu0 0.0
  %835 = vmatprep.subr.mxu0 0.0
  %836 = vmatpush1.msra.mxu0 0.0
  %837 = vmatprep.subr.mxu0 0.0
  %838 = vmatpush1.msra.mxu0 0.0
  %839 = vmatprep.subr.mxu0 0.0
  %840 = vmatpush1.msra.mxu0 0.0
  %841 = vmatprep.subr.mxu0 0.0
  %842 = vmatpush1.msra.mxu0 0.0
  %843 = vmatprep.subr.mxu0 0.0
  %844 = vmatpush1.msra.mxu0 0.0
  %845 = vmatprep.mubr.f32.mxu0 0.0
  %846 = vmatmul.mubr.f32.gmra.mrb[0].mxu0 %v106
  %v847 = vpop.f32.mrb[0].mxu0
  %v848 = vadd.f32 0.0, %v847
  %v849 = vpop.f32.mrb[0].mxu0
  %850 = vdwg.mxu0
  %v851 = vld [vmem:[%s10] sm:$0xff]
  %v852 = vld [vmem:[%s10 + $0x8] sm:$0xff]
  %v853 = vld [vmem:[%s10 + $0x10] sm:$0xff]
  %v854 = vld [vmem:[%s10 + $0x18] sm:$0xff]
  %855 = vmatprep.subr.mxu0 0.0
  %856 = vmatpush1.msra.mxu0 %v851
  %857 = vmatprep.subr.mxu0 0.0
  %858 = vmatpush1.msra.mxu0 %v852
  %859 = vmatprep.subr.mxu0 0.0
  %860 = vmatpush1.msra.mxu0 %v853
  %861 = vmatprep.subr.mxu0 0.0
  %862 = vmatpush1.msra.mxu0 %v854
  %863 = vmatprep.subr.mxu0 0.0
  %864 = vmatpush1.msra.mxu0 0.0
  %865 = vmatprep.subr.mxu0 0.0
  %866 = vmatpush1.msra.mxu0 0.0
  %867 = vmatprep.subr.mxu0 0.0
  %868 = vmatpush1.msra.mxu0 0.0
  %869 = vmatprep.subr.mxu0 0.0
  %870 = vmatpush1.msra.mxu0 0.0
  %871 = vmatprep.subr.mxu0 0.0
  %872 = vmatpush1.msra.mxu0 0.0
  %873 = vmatprep.subr.mxu0 0.0
  %874 = vmatpush1.msra.mxu0 0.0
  %875 = vmatprep.subr.mxu0 0.0
  %876 = vmatpush1.msra.mxu0 0.0
  %877 = vmatprep.subr.mxu0 0.0
  %878 = vmatpush1.msra.mxu0 0.0
  %879 = vmatprep.subr.mxu0 0.0
  %880 = vmatpush1.msra.mxu0 0.0
  %881 = vmatprep.subr.mxu0 0.0
  %882 = vmatpush1.msra.mxu0 0.0
  %883 = vmatprep.subr.mxu0 0.0
  %884 = vmatpush1.msra.mxu0 0.0
  %885 = vmatprep.subr.mxu0 0.0
  %886 = vmatpush1.msra.mxu0 0.0
  %887 = vmatprep.subr.mxu0 0.0
  %888 = vmatpush1.msra.mxu0 0.0
  %889 = vmatprep.subr.mxu0 0.0
  %890 = vmatpush1.msra.mxu0 0.0
  %891 = vmatprep.subr.mxu0 0.0
  %892 = vmatpush1.msra.mxu0 0.0
  %893 = vmatprep.subr.mxu0 0.0
  %894 = vmatpush1.msra.mxu0 0.0
  %895 = vmatprep.subr.mxu0 0.0
  %896 = vmatpush1.msra.mxu0 0.0
  %897 = vmatprep.subr.mxu0 0.0
  %898 = vmatpush1.msra.mxu0 0.0
  %899 = vmatprep.subr.mxu0 0.0
  %900 = vmatpush1.msra.mxu0 0.0
  %901 = vmatprep.subr.mxu0 0.0
  %902 = vmatpush1.msra.mxu0 0.0
  %903 = vmatprep.subr.mxu0 0.0
  %904 = vmatpush1.msra.mxu0 0.0
  %905 = vmatprep.subr.mxu0 0.0
  %906 = vmatpush1.msra.mxu0 0.0
  %907 = vmatprep.subr.mxu0 0.0
  %908 = vmatpush1.msra.mxu0 0.0
  %909 = vmatprep.subr.mxu0 0.0
  %910 = vmatpush1.msra.mxu0 0.0
  %911 = vmatprep.subr.mxu0 0.0
  %912 = vmatpush1.msra.mxu0 0.0
  %913 = vmatprep.subr.mxu0 0.0
  %914 = vmatpush1.msra.mxu0 0.0
  %915 = vmatprep.subr.mxu0 0.0
  %916 = vmatpush1.msra.mxu0 0.0
  %917 = vmatprep.subr.mxu0 0.0
  %918 = vmatpush1.msra.mxu0 0.0
  %919 = vmatprep.mubr.f32.mxu0 0.0
  %920 = vmatmul.mubr.f32.gmra.mrb[0].mxu0 %v106
  %v921 = vpop.f32.mrb[0].mxu0
  %v922 = vadd.f32 0.0, %v921
  %v923 = vpop.f32.mrb[0].mxu0
  %924 = vdwg.mxu0
  %s925 = scalar_lea.vmem %s10, 32
  %v926 = vld [vmem:[%s925] sm:$0xff]
  %v927 = vld [vmem:[%s925 + $0x8] sm:$0xff]
  %v928 = vld [vmem:[%s925 + $0x10] sm:$0xff]
  %v929 = vld [vmem:[%s925 + $0x18] sm:$0xff]
  %930 = vmatprep.subr.mxu0 0.0
  %931 = vmatpush1.msra.mxu0 %v926
  %932 = vmatprep.subr.mxu0 0.0
  %933 = vmatpush1.msra.mxu0 %v927
  %934 = vmatprep.subr.mxu0 0.0
  %935 = vmatpush1.msra.mxu0 %v928
  %936 = vmatprep.subr.mxu0 0.0
  %937 = vmatpush1.msra.mxu0 %v929
  %938 = vmatprep.subr.mxu0 0.0
  %939 = vmatpush1.msra.mxu0 0.0
  %940 = vmatprep.subr.mxu0 0.0
  %941 = vmatpush1.msra.mxu0 0.0
  %942 = vmatprep.subr.mxu0 0.0
  %943 = vmatpush1.msra.mxu0 0.0
  %944 = vmatprep.subr.mxu0 0.0
  %945 = vmatpush1.msra.mxu0 0.0
  %946 = vmatprep.subr.mxu0 0.0
  %947 = vmatpush1.msra.mxu0 0.0
  %948 = vmatprep.subr.mxu0 0.0
  %949 = vmatpush1.msra.mxu0 0.0
  %950 = vmatprep.subr.mxu0 0.0
  %951 = vmatpush1.msra.mxu0 0.0
  %952 = vmatprep.subr.mxu0 0.0
  %953 = vmatpush1.msra.mxu0 0.0
  %954 = vmatprep.subr.mxu0 0.0
  %955 = vmatpush1.msra.mxu0 0.0
  %956 = vmatprep.subr.mxu0 0.0
  %957 = vmatpush1.msra.mxu0 0.0
  %958 = vmatprep.subr.mxu0 0.0
  %959 = vmatpush1.msra.mxu0 0.0
  %960 = vmatprep.subr.mxu0 0.0
  %961 = vmatpush1.msra.mxu0 0.0
  %962 = vmatprep.subr.mxu0 0.0
  %963 = vmatpush1.msra.mxu0 0.0
  %964 = vmatprep.subr.mxu0 0.0
  %965 = vmatpush1.msra.mxu0 0.0
  %966 = vmatprep.subr.mxu0 0.0
  %967 = vmatpush1.msra.mxu0 0.0
  %968 = vmatprep.subr.mxu0 0.0
  %969 = vmatpush1.msra.mxu0 0.0
  %970 = vmatprep.subr.mxu0 0.0
  %971 = vmatpush1.msra.mxu0 0.0
  %972 = vmatprep.subr.mxu0 0.0
  %973 = vmatpush1.msra.mxu0 0.0
  %974 = vmatprep.subr.mxu0 0.0
  %975 = vmatpush1.msra.mxu0 0.0
  %976 = vmatprep.subr.mxu0 0.0
  %977 = vmatpush1.msra.mxu0 0.0
  %978 = vmatprep.subr.mxu0 0.0
  %979 = vmatpush1.msra.mxu0 0.0
  %980 = vmatprep.subr.mxu0 0.0
  %981 = vmatpush1.msra.mxu0 0.0
  %982 = vmatprep.subr.mxu0 0.0
  %983 = vmatpush1.msra.mxu0 0.0
  %984 = vmatprep.subr.mxu0 0.0
  %985 = vmatpush1.msra.mxu0 0.0
  %986 = vmatprep.subr.mxu0 0.0
  %987 = vmatpush1.msra.mxu0 0.0
  %988 = vmatprep.subr.mxu0 0.0
  %989 = vmatpush1.msra.mxu0 0.0
  %990 = vmatprep.subr.mxu0 0.0
  %991 = vmatpush1.msra.mxu0 0.0
  %992 = vmatprep.subr.mxu0 0.0
  %993 = vmatpush1.msra.mxu0 0.0
  %994 = vmatprep.mubr.f32.mxu0 0.0
  %995 = vmatmul.mubr.f32.gmra.mrb[0].mxu0 %v106
  %v996 = vpop.f32.mrb[0].mxu0
  %v997 = vadd.f32 0.0, %v996
  %v998 = vpop.f32.mrb[0].mxu0
  %999 = vdwg.mxu0
  %v1000 = vld [vmem:[%s11] sm:$0xff]
  %v1001 = vld [vmem:[%s11 + $0x8] sm:$0xff]
  %v1002 = vld [vmem:[%s11 + $0x10] sm:$0xff]
  %v1003 = vld [vmem:[%s11 + $0x18] sm:$0xff]
  %1004 = vmatprep.subr.mxu0 0.0
  %1005 = vmatpush1.msra.mxu0 %v1000
  %1006 = vmatprep.subr.mxu0 0.0
  %1007 = vmatpush1.msra.mxu0 %v1001
  %1008 = vmatprep.subr.mxu0 0.0
  %1009 = vmatpush1.msra.mxu0 %v1002
  %1010 = vmatprep.subr.mxu0 0.0
  %1011 = vmatpush1.msra.mxu0 %v1003
  %1012 = vmatprep.subr.mxu0 0.0
  %1013 = vmatpush1.msra.mxu0 0.0
  %1014 = vmatprep.subr.mxu0 0.0
  %1015 = vmatpush1.msra.mxu0 0.0
  %1016 = vmatprep.subr.mxu0 0.0
  %1017 = vmatpush1.msra.mxu0 0.0
  %1018 = vmatprep.subr.mxu0 0.0
  %1019 = vmatpush1.msra.mxu0 0.0
  %1020 = vmatprep.subr.mxu0 0.0
  %1021 = vmatpush1.msra.mxu0 0.0
  %1022 = vmatprep.subr.mxu0 0.0
  %1023 = vmatpush1.msra.mxu0 0.0
  %1024 = vmatprep.subr.mxu0 0.0
  %1025 = vmatpush1.msra.mxu0 0.0
  %1026 = vmatprep.subr.mxu0 0.0
  %1027 = vmatpush1.msra.mxu0 0.0
  %1028 = vmatprep.subr.mxu0 0.0
  %1029 = vmatpush1.msra.mxu0 0.0
  %1030 = vmatprep.subr.mxu0 0.0
  %1031 = vmatpush1.msra.mxu0 0.0
  %1032 = vmatprep.subr.mxu0 0.0
  %1033 = vmatpush1.msra.mxu0 0.0
  %1034 = vmatprep.subr.mxu0 0.0
  %1035 = vmatpush1.msra.mxu0 0.0
  %1036 = vmatprep.subr.mxu0 0.0
  %1037 = vmatpush1.msra.mxu0 0.0
  %1038 = vmatprep.subr.mxu0 0.0
  %1039 = vmatpush1.msra.mxu0 0.0
  %1040 = vmatprep.subr.mxu0 0.0
  %1041 = vmatpush1.msra.mxu0 0.0
  %1042 = vmatprep.subr.mxu0 0.0
  %1043 = vmatpush1.msra.mxu0 0.0
  %1044 = vmatprep.subr.mxu0 0.0
  %1045 = vmatpush1.msra.mxu0 0.0
  %1046 = vmatprep.subr.mxu0 0.0
  %1047 = vmatpush1.msra.mxu0 0.0
  %1048 = vmatprep.subr.mxu0 0.0
  %1049 = vmatpush1.msra.mxu0 0.0
  %1050 = vmatprep.subr.mxu0 0.0
  %1051 = vmatpush1.msra.mxu0 0.0
  %1052 = vmatprep.subr.mxu0 0.0
  %1053 = vmatpush1.msra.mxu0 0.0
  %1054 = vmatprep.subr.mxu0 0.0
  %1055 = vmatpush1.msra.mxu0 0.0
  %1056 = vmatprep.subr.mxu0 0.0
  %1057 = vmatpush1.msra.mxu0 0.0
  %1058 = vmatprep.subr.mxu0 0.0
  %1059 = vmatpush1.msra.mxu0 0.0
  %1060 = vmatprep.subr.mxu0 0.0
  %1061 = vmatpush1.msra.mxu0 0.0
  %1062 = vmatprep.subr.mxu0 0.0
  %1063 = vmatpush1.msra.mxu0 0.0
  %1064 = vmatprep.subr.mxu0 0.0
  %1065 = vmatpush1.msra.mxu0 0.0
  %1066 = vmatprep.subr.mxu0 0.0
  %1067 = vmatpush1.msra.mxu0 0.0
  %1068 = vmatprep.mubr.f32.mxu0 0.0
  %1069 = vmatmul.mubr.f32.gmra.mrb[0].mxu0 %v106
  %v1070 = vpop.f32.mrb[0].mxu0
  %v1071 = vadd.f32 0.0, %v1070
  %v1072 = vpop.f32.mrb[0].mxu0
  %1073 = vdwg.mxu0
  %s1074 = scalar_lea.vmem %s11, 32
  %v1075 = vld [vmem:[%s1074] sm:$0xff]
  %v1076 = vld [vmem:[%s1074 + $0x8] sm:$0xff]
  %v1077 = vld [vmem:[%s1074 + $0x10] sm:$0xff]
  %v1078 = vld [vmem:[%s1074 + $0x18] sm:$0xff]
  %1079 = vmatprep.subr.mxu0 0.0
  %1080 = vmatpush1.msra.mxu0 %v1075
  %1081 = vmatprep.subr.mxu0 0.0
  %1082 = vmatpush1.msra.mxu0 %v1076
  %1083 = vmatprep.subr.mxu0 0.0
  %1084 = vmatpush1.msra.mxu0 %v1077
  %1085 = vmatprep.subr.mxu0 0.0
  %1086 = vmatpush1.msra.mxu0 %v1078
  %1087 = vmatprep.subr.mxu0 0.0
  %1088 = vmatpush1.msra.mxu0 0.0
  %1089 = vmatprep.subr.mxu0 0.0
  %1090 = vmatpush1.msra.mxu0 0.0
  %1091 = vmatprep.subr.mxu0 0.0
  %1092 = vmatpush1.msra.mxu0 0.0
  %1093 = vmatprep.subr.mxu0 0.0
  %1094 = vmatpush1.msra.mxu0 0.0
  %1095 = vmatprep.subr.mxu0 0.0
  %1096 = vmatpush1.msra.mxu0 0.0
  %1097 = vmatprep.subr.mxu0 0.0
  %1098 = vmatpush1.msra.mxu0 0.0
  %1099 = vmatprep.subr.mxu0 0.0
  %1100 = vmatpush1.msra.mxu0 0.0
  %1101 = vmatprep.subr.mxu0 0.0
  %1102 = vmatpush1.msra.mxu0 0.0
  %1103 = vmatprep.subr.mxu0 0.0
  %1104 = vmatpush1.msra.mxu0 0.0
  %1105 = vmatprep.subr.mxu0 0.0
  %1106 = vmatpush1.msra.mxu0 0.0
  %1107 = vmatprep.subr.mxu0 0.0
  %1108 = vmatpush1.msra.mxu0 0.0
  %1109 = vmatprep.subr.mxu0 0.0
  %1110 = vmatpush1.msra.mxu0 0.0
  %1111 = vmatprep.subr.mxu0 0.0
  %1112 = vmatpush1.msra.mxu0 0.0
  %1113 = vmatprep.subr.mxu0 0.0
  %1114 = vmatpush1.msra.mxu0 0.0
  %1115 = vmatprep.subr.mxu0 0.0
  %1116 = vmatpush1.msra.mxu0 0.0
  %1117 = vmatprep.subr.mxu0 0.0
  %1118 = vmatpush1.msra.mxu0 0.0
  %1119 = vmatprep.subr.mxu0 0.0
  %1120 = vmatpush1.msra.mxu0 0.0
  %1121 = vmatprep.subr.mxu0 0.0
  %1122 = vmatpush1.msra.mxu0 0.0
  %1123 = vmatprep.subr.mxu0 0.0
  %1124 = vmatpush1.msra.mxu0 0.0
  %1125 = vmatprep.subr.mxu0 0.0
  %1126 = vmatpush1.msra.mxu0 0.0
  %1127 = vmatprep.subr.mxu0 0.0
  %1128 = vmatpush1.msra.mxu0 0.0
  %1129 = vmatprep.subr.mxu0 0.0
  %1130 = vmatpush1.msra.mxu0 0.0
  %1131 = vmatprep.subr.mxu0 0.0
  %1132 = vmatpush1.msra.mxu0 0.0
  %1133 = vmatprep.subr.mxu0 0.0
  %1134 = vmatpush1.msra.mxu0 0.0
  %1135 = vmatprep.subr.mxu0 0.0
  %1136 = vmatpush1.msra.mxu0 0.0
  %1137 = vmatprep.subr.mxu0 0.0
  %1138 = vmatpush1.msra.mxu0 0.0
  %1139 = vmatprep.subr.mxu0 0.0
  %1140 = vmatpush1.msra.mxu0 0.0
  %1141 = vmatprep.subr.mxu0 0.0
  %1142 = vmatpush1.msra.mxu0 0.0
  %1143 = vmatprep.mubr.f32.mxu0 0.0
  %1144 = vmatmul.mubr.f32.gmra.mrb[0].mxu0 %v106
  %v1145 = vpop.f32.mrb[0].mxu0
  %v1146 = vadd.f32 0.0, %v1145
  %v1147 = vpop.f32.mrb[0].mxu0
  %1148 = vdwg.mxu0
  %v1149 = vmul.f32 %v175, %v63
  %v1150 = vmul.f32 %v250, %v64
  %v1151 = vmul.f32 %v325, %v65
  %v1152 = vmul.f32 %v400, %v66
  %v1153 = vmul.f32 %v474, %v67
  %v1154 = vmul.f32 %v549, %v68
  %v1155 = vmul.f32 %v624, %v69
  %v1156 = vmul.f32 %v699, %v70
  %v1157 = vadd.f32 %v1149, %v1153
  %v1158 = vadd.f32 %v1150, %v1154
  %v1159 = vadd.f32 %v1151, %v1155
  %v1160 = vadd.f32 %v1152, %v1156
  %v1161 = vmul.f32 %v773, %v71
  %v1162 = vmul.f32 %v848, %v72
  %v1163 = vmul.f32 %v922, %v73
  %v1164 = vmul.f32 %v997, %v74
  %v1165 = vadd.f32 %v1161, %v1163
  %v1166 = vadd.f32 %v1162, %v1164
  %vm1167 = vcmask 64512
  %v1169 = vsel %vm1167, %v1157, 0
  %v1172 = vsel %vm1167, %v1158, 0
  %v1175 = vsel %vm1167, %v1165, 0
  %1177 = vmatprep.subr.mxu0 0.0
  %1178 = vmatpush1.xpose.msra.mxu0 %v1175
  %1179 = vmatprep.subr.mxu0 0.0
  %1180 = vmatpush1.xpose.msra.mxu0 0.0
  %1181 = vmatprep.subr.mxu0 0.0
  %1182 = vmatpush1.xpose.msra.mxu0 0.0
  %1183 = vmatprep.subr.mxu0 0.0
  %1184 = vmatpush1.xpose.msra.mxu0 0.0
  %1185 = vmatprep.subr.mxu0 0.0
  %1186 = vmatpush1.xpose.msra.mxu0 0.0
  %1187 = vmatprep.subr.mxu0 0.0
  %1188 = vmatpush1.xpose.msra.mxu0 0.0
  %1189 = vmatprep.subr.mxu0 0.0
  %1190 = vmatpush1.xpose.msra.mxu0 0.0
  %1191 = vmatprep.subr.mxu0 0.0
  %1192 = vmatpush1.xpose.msra.mxu0 0.0
  %1193 = vmatprep.subr.mxu0 0.0
  %1194 = vmatpush1.xpose.msra.mxu0 0.0
  %1195 = vmatprep.subr.mxu0 0.0
  %1196 = vmatpush1.xpose.msra.mxu0 0.0
  %1197 = vmatprep.subr.mxu0 0.0
  %1198 = vmatpush1.xpose.msra.mxu0 0.0
  %1199 = vmatprep.subr.mxu0 0.0
  %1200 = vmatpush1.xpose.msra.mxu0 0.0
  %1201 = vmatprep.subr.mxu0 0.0
  %1202 = vmatpush1.xpose.msra.mxu0 0.0
  %1203 = vmatprep.subr.mxu0 0.0
  %1204 = vmatpush1.xpose.msra.mxu0 0.0
  %1205 = vmatprep.subr.mxu0 0.0
  %1206 = vmatpush1.xpose.msra.mxu0 0.0
  %1207 = vmatprep.subr.mxu0 0.0
  %1208 = vmatpush1.xpose.msra.mxu0 0.0
  %1209 = vmatprep.subr.mxu0 0.0
  %1210 = vmatpush1.xpose.msra.mxu0 0.0
  %1211 = vmatprep.subr.mxu0 0.0
  %1212 = vmatpush1.xpose.msra.mxu0 0.0
  %1213 = vmatprep.subr.mxu0 0.0
  %1214 = vmatpush1.xpose.msra.mxu0 0.0
  %1215 = vmatprep.subr.mxu0 0.0
  %1216 = vmatpush1.xpose.msra.mxu0 0.0
  %1217 = vmatprep.subr.mxu0 0.0
  %1218 = vmatpush1.xpose.msra.mxu0 0.0
  %1219 = vmatprep.subr.mxu0 0.0
  %1220 = vmatpush1.xpose.msra.mxu0 0.0
  %1221 = vmatprep.subr.mxu0 0.0
  %1222 = vmatpush1.xpose.msra.mxu0 0.0
  %1223 = vmatprep.subr.mxu0 0.0
  %1224 = vmatpush1.xpose.msra.mxu0 0.0
  %1225 = vmatprep.subr.mxu0 0.0
  %1226 = vmatpush1.xpose.msra.mxu0 0.0
  %1227 = vmatprep.subr.mxu0 0.0
  %1228 = vmatpush1.xpose.msra.mxu0 0.0
  %1229 = vmatprep.subr.mxu0 0.0
  %1230 = vmatpush1.xpose.msra.mxu0 0.0
  %1231 = vmatprep.subr.mxu0 0.0
  %1232 = vmatpush1.xpose.msra.mxu0 0.0
  %1233 = vmatprep.subr.mxu0 0.0
  %1234 = vmatpush1.xpose.msra.mxu0 0.0
  %1235 = vmatprep.subr.mxu0 0.0
  %1236 = vmatpush1.xpose.msra.mxu0 0.0
  %1237 = vmatprep.subr.mxu0 0.0
  %1238 = vmatpush1.xpose.msra.mxu0 0.0
  %1239 = vmatprep.subr.mxu0 0.0
  %1240 = vmatpush1.xpose.msra.mxu0 0.0
  %1241 = vmatprep.mubr.f32.mxu0 0.0
  %1242 = vmatmul.mubr.f32.gmra.mrb[0].mxu0 %v1169
  %v1243 = vpop.f32.mrb[0].mxu0
  %v1244 = vadd.f32 0.0, %v1243
  %v1245 = vpop.f32.mrb[0].mxu0
  %1246 = vmatprep.mubr.f32.mxu0 0.0
  %1247 = vmatmul.mubr.f32.gmra.mrb[0].mxu0 %v1172
  %v1248 = vpop.f32.mrb[0].mxu0
  %v1249 = vadd.f32 0.0, %v1248
  %v1250 = vpop.f32.mrb[0].mxu0
  %1251 = vdwg.mxu0
  %v1253 = vsel %vm1167, %v1159, 0
  %v1256 = vsel %vm1167, %v1160, 0
  %v1259 = vsel %vm1167, %v1166, 0
  %1261 = vmatprep.subr.mxu0 0.0
  %1262 = vmatpush1.xpose.msra.mxu0 %v1259
  %1263 = vmatprep.subr.mxu0 0.0
  %1264 = vmatpush1.xpose.msra.mxu0 0.0
  %1265 = vmatprep.subr.mxu0 0.0
  %1266 = vmatpush1.xpose.msra.mxu0 0.0
  %1267 = vmatprep.subr.mxu0 0.0
  %1268 = vmatpush1.xpose.msra.mxu0 0.0
  %1269 = vmatprep.subr.mxu0 0.0
  %1270 = vmatpush1.xpose.msra.mxu0 0.0
  %1271 = vmatprep.subr.mxu0 0.0
  %1272 = vmatpush1.xpose.msra.mxu0 0.0
  %1273 = vmatprep.subr.mxu0 0.0
  %1274 = vmatpush1.xpose.msra.mxu0 0.0
  %1275 = vmatprep.subr.mxu0 0.0
  %1276 = vmatpush1.xpose.msra.mxu0 0.0
  %1277 = vmatprep.subr.mxu0 0.0
  %1278 = vmatpush1.xpose.msra.mxu0 0.0
  %1279 = vmatprep.subr.mxu0 0.0
  %1280 = vmatpush1.xpose.msra.mxu0 0.0
  %1281 = vmatprep.subr.mxu0 0.0
  %1282 = vmatpush1.xpose.msra.mxu0 0.0
  %1283 = vmatprep.subr.mxu0 0.0
  %1284 = vmatpush1.xpose.msra.mxu0 0.0
  %1285 = vmatprep.subr.mxu0 0.0
  %1286 = vmatpush1.xpose.msra.mxu0 0.0
  %1287 = vmatprep.subr.mxu0 0.0
  %1288 = vmatpush1.xpose.msra.mxu0 0.0
  %1289 = vmatprep.subr.mxu0 0.0
  %1290 = vmatpush1.xpose.msra.mxu0 0.0
  %1291 = vmatprep.subr.mxu0 0.0
  %1292 = vmatpush1.xpose.msra.mxu0 0.0
  %1293 = vmatprep.subr.mxu0 0.0
  %1294 = vmatpush1.xpose.msra.mxu0 0.0
  %1295 = vmatprep.subr.mxu0 0.0
  %1296 = vmatpush1.xpose.msra.mxu0 0.0
  %1297 = vmatprep.subr.mxu0 0.0
  %1298 = vmatpush1.xpose.msra.mxu0 0.0
  %1299 = vmatprep.subr.mxu0 0.0
  %1300 = vmatpush1.xpose.msra.mxu0 0.0
  %1301 = vmatprep.subr.mxu0 0.0
  %1302 = vmatpush1.xpose.msra.mxu0 0.0
  %1303 = vmatprep.subr.mxu0 0.0
  %1304 = vmatpush1.xpose.msra.mxu0 0.0
  %1305 = vmatprep.subr.mxu0 0.0
  %1306 = vmatpush1.xpose.msra.mxu0 0.0
  %1307 = vmatprep.subr.mxu0 0.0
  %1308 = vmatpush1.xpose.msra.mxu0 0.0
  %1309 = vmatprep.subr.mxu0 0.0
  %1310 = vmatpush1.xpose.msra.mxu0 0.0
  %1311 = vmatprep.subr.mxu0 0.0
  %1312 = vmatpush1.xpose.msra.mxu0 0.0
  %1313 = vmatprep.subr.mxu0 0.0
  %1314 = vmatpush1.xpose.msra.mxu0 0.0
  %1315 = vmatprep.subr.mxu0 0.0
  %1316 = vmatpush1.xpose.msra.mxu0 0.0
  %1317 = vmatprep.subr.mxu0 0.0
  %1318 = vmatpush1.xpose.msra.mxu0 0.0
  %1319 = vmatprep.subr.mxu0 0.0
  %1320 = vmatpush1.xpose.msra.mxu0 0.0
  %1321 = vmatprep.subr.mxu0 0.0
  %1322 = vmatpush1.xpose.msra.mxu0 0.0
  %1323 = vmatprep.subr.mxu0 0.0
  %1324 = vmatpush1.xpose.msra.mxu0 0.0
  %1325 = vmatprep.mubr.f32.mxu0 0.0
  %1326 = vmatmul.mubr.f32.gmra.mrb[0].mxu0 %v1253
  %v1327 = vpop.f32.mrb[0].mxu0
  %v1328 = vadd.f32 0.0, %v1327
  %v1329 = vpop.f32.mrb[0].mxu0
  %1330 = vmatprep.mubr.f32.mxu0 0.0
  %1331 = vmatmul.mubr.f32.gmra.mrb[0].mxu0 %v1256
  %v1332 = vpop.f32.mrb[0].mxu0
  %v1333 = vadd.f32 0.0, %v1332
  %v1334 = vpop.f32.mrb[0].mxu0
  %1335 = vdwg.mxu0
  %v1336 = vsel %vm79, -3.4028235e+38, %v1244
  %v1337 = vsel %vm80, -3.4028235e+38, %v1249
  %v1338 = vsel %vm81, -3.4028235e+38, %v1328
  %v1339 = vsel %vm82, -3.4028235e+38, %v1333
  %v1340 = vsel %vm1167, %v1336, -inf
  %1341 = vmax.xlane.f32.xlu0 %v1340
  %v1342 = vpop.xlane.xlu0 %1341
  %v1343 = vsel %vm1167, %v1337, -inf
  %1344 = vmax.xlane.f32.xlu0 %v1343
  %v1345 = vpop.xlane.xlu0 %1344
  %v1346 = vsel %vm1167, %v1338, -inf
  %1347 = vmax.xlane.f32.xlu0 %v1346
  %v1348 = vpop.xlane.xlu0 %1347
  %v1349 = vsel %vm1167, %v1339, -inf
  %1350 = vmax.xlane.f32.xlu0 %v1349
  %v1351 = vpop.xlane.xlu0 %1350
  %vm1352 = vcmp.ge.f32.partialorder %v1336, %v1342
  %vm1353 = vcmp.ge.f32.partialorder %v1337, %v1345
  %vm1354 = vcmp.ge.f32.partialorder %v1338, %v1348
  %vm1355 = vcmp.ge.f32.partialorder %v1339, %v1351
  %v1356 = vsel %vm1352, -3.4028235e+38, %v1336
  %v1357 = vsel %vm1353, -3.4028235e+38, %v1337
  %v1358 = vsel %vm1354, -3.4028235e+38, %v1338
  %v1359 = vsel %vm1355, -3.4028235e+38, %v1339
  %v1360 = vsel %vm1167, %v1356, -inf
  %1361 = vmax.xlane.f32.xlu0 %v1360
  %v1362 = vpop.xlane.xlu0 %1361
  %v1363 = vsel %vm1167, %v1357, -inf
  %1364 = vmax.xlane.f32.xlu0 %v1363
  %v1365 = vpop.xlane.xlu0 %1364
  %v1366 = vsel %vm1167, %v1358, -inf
  %1367 = vmax.xlane.f32.xlu0 %v1366
  %v1368 = vpop.xlane.xlu0 %1367
  %v1369 = vsel %vm1167, %v1359, -inf
  %1370 = vmax.xlane.f32.xlu0 %v1369
  %v1371 = vpop.xlane.xlu0 %1370
  %vm1372 = vcmp.ge.f32.partialorder %v1356, %v1362
  %vm1373 = vcmp.ge.f32.partialorder %v1357, %v1365
  %vm1374 = vcmp.ge.f32.partialorder %v1358, %v1368
  %vm1375 = vcmp.ge.f32.partialorder %v1359, %v1371
  %v1376 = vsel %vm1372, -3.4028235e+38, %v1356
  %v1377 = vsel %vm1373, -3.4028235e+38, %v1357
  %v1378 = vsel %vm1374, -3.4028235e+38, %v1358
  %v1379 = vsel %vm1375, -3.4028235e+38, %v1359
  %v1380 = vsel %vm1167, %v1376, -inf
  %1381 = vmax.xlane.f32.xlu0 %v1380
  %v1382 = vpop.xlane.xlu0 %1381
  %v1383 = vsel %vm1167, %v1377, -inf
  %1384 = vmax.xlane.f32.xlu0 %v1383
  %v1385 = vpop.xlane.xlu0 %1384
  %v1386 = vsel %vm1167, %v1378, -inf
  %1387 = vmax.xlane.f32.xlu0 %v1386
  %v1388 = vpop.xlane.xlu0 %1387
  %v1389 = vsel %vm1167, %v1379, -inf
  %1390 = vmax.xlane.f32.xlu0 %v1389
  %v1391 = vpop.xlane.xlu0 %1390
  %vm1392 = vcmp.ge.f32.partialorder %v1376, %v1382
  %vm1393 = vcmp.ge.f32.partialorder %v1377, %v1385
  %vm1394 = vcmp.ge.f32.partialorder %v1378, %v1388
  %vm1395 = vcmp.ge.f32.partialorder %v1379, %v1391
  %v1396 = vsel %vm1392, -3.4028235e+38, %v1376
  %v1397 = vsel %vm1393, -3.4028235e+38, %v1377
  %v1398 = vsel %vm1394, -3.4028235e+38, %v1378
  %v1399 = vsel %vm1395, -3.4028235e+38, %v1379
  %v1400 = vsel %vm1167, %v1396, -inf
  %1401 = vmax.xlane.f32.xlu0 %v1400
  %v1402 = vpop.xlane.xlu0 %1401
  %v1403 = vsel %vm1167, %v1397, -inf
  %1404 = vmax.xlane.f32.xlu0 %v1403
  %v1405 = vpop.xlane.xlu0 %1404
  %v1406 = vsel %vm1167, %v1398, -inf
  %1407 = vmax.xlane.f32.xlu0 %v1406
  %v1408 = vpop.xlane.xlu0 %1407
  %v1409 = vsel %vm1167, %v1399, -inf
  %1410 = vmax.xlane.f32.xlu0 %v1409
  %v1411 = vpop.xlane.xlu0 %1410
  %vm1412 = vcmp.ge.f32.partialorder %v1336, %v1402
  %vm1413 = vcmp.ge.f32.partialorder %v1337, %v1405
  %vm1414 = vcmp.ge.f32.partialorder %v1338, %v1408
  %vm1415 = vcmp.ge.f32.partialorder %v1339, %v1411
  %vm1416 = vmxor %vm79, 1
  %vm1417 = vmxor %vm80, 1
  %vm1418 = vmxor %vm81, 1
  %vm1419 = vmxor %vm82, 1
  %vm1420 = vmand %vm1412, %vm1416
  %vm1421 = vmand %vm1413, %vm1417
  %vm1422 = vmand %vm1414, %vm1418
  %vm1423 = vmand %vm1415, %vm1419
  %v1424 = vsel %vm1420, %v1244, -3.4028235e+38
  %v1425 = vsel %vm1421, %v1249, -3.4028235e+38
  %v1426 = vsel %vm1422, %v1328, -3.4028235e+38
  %v1427 = vsel %vm1423, %v1333, -3.4028235e+38
  %v1428 = vsel %vm1167, %v1424, -inf
  %1429 = vmax.xlane.f32.xlu0 %v1428
  %v1430 = vpop.xlane.xlu0 %1429
  %v1431 = vsel %vm1167, %v1425, -inf
  %1432 = vmax.xlane.f32.xlu0 %v1431
  %v1433 = vpop.xlane.xlu0 %1432
  %v1434 = vsel %vm1167, %v1426, -inf
  %1435 = vmax.xlane.f32.xlu0 %v1434
  %v1436 = vpop.xlane.xlu0 %1435
  %v1437 = vsel %vm1167, %v1427, -inf
  %1438 = vmax.xlane.f32.xlu0 %v1437
  %v1439 = vpop.xlane.xlu0 %1438
  %v1440 = vsub.f32 %v1424, %v1430
  %v1441 = vsub.f32 %v1425, %v1433
  %v1442 = vsub.f32 %v1426, %v1436
  %v1443 = vsub.f32 %v1427, %v1439
  %v1444 = vmul.f32 %v1440, 1.442695
  %v1445 = vpow.pop %v1444
  %v1446 = vmul.f32 %v1441, 1.442695
  %v1447 = vpow.pop %v1446
  %v1448 = vmul.f32 %v1442, 1.442695
  %v1449 = vpow.pop %v1448
  %v1450 = vmul.f32 %v1443, 1.442695
  %v1451 = vpow.pop %v1450
  %v1452 = vsel %vm1167, %v1445, 0.0
  %1453 = vadd.xlane.f32.xlu0 %v1452
  %v1454 = vpop.xlane.xlu0 %1453
  %v1455 = vsel %vm1167, %v1447, 0.0
  %1456 = vadd.xlane.f32.xlu0 %v1455
  %v1457 = vpop.xlane.xlu0 %1456
  %v1458 = vsel %vm1167, %v1449, 0.0
  %1459 = vadd.xlane.f32.xlu0 %v1458
  %v1460 = vpop.xlane.xlu0 %1459
  %v1461 = vsel %vm1167, %v1451, 0.0
  %1462 = vadd.xlane.f32.xlu0 %v1461
  %v1463 = vpop.xlane.xlu0 %1462
  %v1464 = vrcp.pop %v1454
  %v1465 = vmul.f32 %v1445, %v1464
  %v1466 = vrcp.pop %v1457
  %v1467 = vmul.f32 %v1447, %v1466
  %v1468 = vrcp.pop %v1460
  %v1469 = vmul.f32 %v1449, %v1468
  %v1470 = vrcp.pop %v1463
  %v1471 = vmul.f32 %v1451, %v1470
  %v1473 = vsel %vm1167, %v1465, 0
  %v1476 = vsel %vm1167, %v1467, 0
  %1478 = vmatprep.subr.mxu0 0.0
  %1479 = vmatpush1.msra.mxu0 %v1071
  %1480 = vmatprep.subr.mxu0 0.0
  %1481 = vmatpush1.msra.mxu0 0.0
  %1482 = vmatprep.subr.mxu0 0.0
  %1483 = vmatpush1.msra.mxu0 0.0
  %1484 = vmatprep.subr.mxu0 0.0
  %1485 = vmatpush1.msra.mxu0 0.0
  %1486 = vmatprep.subr.mxu0 0.0
  %1487 = vmatpush1.msra.mxu0 0.0
  %1488 = vmatprep.subr.mxu0 0.0
  %1489 = vmatpush1.msra.mxu0 0.0
  %1490 = vmatprep.subr.mxu0 0.0
  %1491 = vmatpush1.msra.mxu0 0.0
  %1492 = vmatprep.subr.mxu0 0.0
  %1493 = vmatpush1.msra.mxu0 0.0
  %1494 = vmatprep.subr.mxu0 0.0
  %1495 = vmatpush1.msra.mxu0 0.0
  %1496 = vmatprep.subr.mxu0 0.0
  %1497 = vmatpush1.msra.mxu0 0.0
  %1498 = vmatprep.subr.mxu0 0.0
  %1499 = vmatpush1.msra.mxu0 0.0
  %1500 = vmatprep.subr.mxu0 0.0
  %1501 = vmatpush1.msra.mxu0 0.0
  %1502 = vmatprep.subr.mxu0 0.0
  %1503 = vmatpush1.msra.mxu0 0.0
  %1504 = vmatprep.subr.mxu0 0.0
  %1505 = vmatpush1.msra.mxu0 0.0
  %1506 = vmatprep.subr.mxu0 0.0
  %1507 = vmatpush1.msra.mxu0 0.0
  %1508 = vmatprep.subr.mxu0 0.0
  %1509 = vmatpush1.msra.mxu0 0.0
  %1510 = vmatprep.subr.mxu0 0.0
  %1511 = vmatpush1.msra.mxu0 0.0
  %1512 = vmatprep.subr.mxu0 0.0
  %1513 = vmatpush1.msra.mxu0 0.0
  %1514 = vmatprep.subr.mxu0 0.0
  %1515 = vmatpush1.msra.mxu0 0.0
  %1516 = vmatprep.subr.mxu0 0.0
  %1517 = vmatpush1.msra.mxu0 0.0
  %1518 = vmatprep.subr.mxu0 0.0
  %1519 = vmatpush1.msra.mxu0 0.0
  %1520 = vmatprep.subr.mxu0 0.0
  %1521 = vmatpush1.msra.mxu0 0.0
  %1522 = vmatprep.subr.mxu0 0.0
  %1523 = vmatpush1.msra.mxu0 0.0
  %1524 = vmatprep.subr.mxu0 0.0
  %1525 = vmatpush1.msra.mxu0 0.0
  %1526 = vmatprep.subr.mxu0 0.0
  %1527 = vmatpush1.msra.mxu0 0.0
  %1528 = vmatprep.subr.mxu0 0.0
  %1529 = vmatpush1.msra.mxu0 0.0
  %1530 = vmatprep.subr.mxu0 0.0
  %1531 = vmatpush1.msra.mxu0 0.0
  %1532 = vmatprep.subr.mxu0 0.0
  %1533 = vmatpush1.msra.mxu0 0.0
  %1534 = vmatprep.subr.mxu0 0.0
  %1535 = vmatpush1.msra.mxu0 0.0
  %1536 = vmatprep.subr.mxu0 0.0
  %1537 = vmatpush1.msra.mxu0 0.0
  %1538 = vmatprep.subr.mxu0 0.0
  %1539 = vmatpush1.msra.mxu0 0.0
  %1540 = vmatprep.subr.mxu0 0.0
  %1541 = vmatpush1.msra.mxu0 0.0
  %1542 = vmatprep.mubr.f32.mxu0 0.0
  %1543 = vmatmul.mubr.f32.gmra.mrb[0].mxu0 %v1473
  %v1544 = vpop.f32.mrb[0].mxu0
  %v1545 = vadd.f32 0.0, %v1544
  %v1546 = vpop.f32.mrb[0].mxu0
  %1547 = vmatprep.mubr.f32.mxu0 0.0
  %1548 = vmatmul.mubr.f32.gmra.mrb[0].mxu0 %v1476
  %v1549 = vpop.f32.mrb[0].mxu0
  %v1550 = vadd.f32 0.0, %v1549
  %v1551 = vpop.f32.mrb[0].mxu0
  %1552 = vdwg.mxu0
  %v1554 = vsel %vm1167, %v1469, 0
  %v1557 = vsel %vm1167, %v1471, 0
  %1559 = vmatprep.subr.mxu0 0.0
  %1560 = vmatpush1.msra.mxu0 %v1146
  %1561 = vmatprep.subr.mxu0 0.0
  %1562 = vmatpush1.msra.mxu0 0.0
  %1563 = vmatprep.subr.mxu0 0.0
  %1564 = vmatpush1.msra.mxu0 0.0
  %1565 = vmatprep.subr.mxu0 0.0
  %1566 = vmatpush1.msra.mxu0 0.0
  %1567 = vmatprep.subr.mxu0 0.0
  %1568 = vmatpush1.msra.mxu0 0.0
  %1569 = vmatprep.subr.mxu0 0.0
  %1570 = vmatpush1.msra.mxu0 0.0
  %1571 = vmatprep.subr.mxu0 0.0
  %1572 = vmatpush1.msra.mxu0 0.0
  %1573 = vmatprep.subr.mxu0 0.0
  %1574 = vmatpush1.msra.mxu0 0.0
  %1575 = vmatprep.subr.mxu0 0.0
  %1576 = vmatpush1.msra.mxu0 0.0
  %1577 = vmatprep.subr.mxu0 0.0
  %1578 = vmatpush1.msra.mxu0 0.0
  %1579 = vmatprep.subr.mxu0 0.0
  %1580 = vmatpush1.msra.mxu0 0.0
  %1581 = vmatprep.subr.mxu0 0.0
  %1582 = vmatpush1.msra.mxu0 0.0
  %1583 = vmatprep.subr.mxu0 0.0
  %1584 = vmatpush1.msra.mxu0 0.0
  %1585 = vmatprep.subr.mxu0 0.0
  %1586 = vmatpush1.msra.mxu0 0.0
  %1587 = vmatprep.subr.mxu0 0.0
  %1588 = vmatpush1.msra.mxu0 0.0
  %1589 = vmatprep.subr.mxu0 0.0
  %1590 = vmatpush1.msra.mxu0 0.0
  %1591 = vmatprep.subr.mxu0 0.0
  %1592 = vmatpush1.msra.mxu0 0.0
  %1593 = vmatprep.subr.mxu0 0.0
  %1594 = vmatpush1.msra.mxu0 0.0
  %1595 = vmatprep.subr.mxu0 0.0
  %1596 = vmatpush1.msra.mxu0 0.0
  %1597 = vmatprep.subr.mxu0 0.0
  %1598 = vmatpush1.msra.mxu0 0.0
  %1599 = vmatprep.subr.mxu0 0.0
  %1600 = vmatpush1.msra.mxu0 0.0
  %1601 = vmatprep.subr.mxu0 0.0
  %1602 = vmatpush1.msra.mxu0 0.0
  %1603 = vmatprep.subr.mxu0 0.0
  %1604 = vmatpush1.msra.mxu0 0.0
  %1605 = vmatprep.subr.mxu0 0.0
  %1606 = vmatpush1.msra.mxu0 0.0
  %1607 = vmatprep.subr.mxu0 0.0
  %1608 = vmatpush1.msra.mxu0 0.0
  %1609 = vmatprep.subr.mxu0 0.0
  %1610 = vmatpush1.msra.mxu0 0.0
  %1611 = vmatprep.subr.mxu0 0.0
  %1612 = vmatpush1.msra.mxu0 0.0
  %1613 = vmatprep.subr.mxu0 0.0
  %1614 = vmatpush1.msra.mxu0 0.0
  %1615 = vmatprep.subr.mxu0 0.0
  %1616 = vmatpush1.msra.mxu0 0.0
  %1617 = vmatprep.subr.mxu0 0.0
  %1618 = vmatpush1.msra.mxu0 0.0
  %1619 = vmatprep.subr.mxu0 0.0
  %1620 = vmatpush1.msra.mxu0 0.0
  %1621 = vmatprep.subr.mxu0 0.0
  %1622 = vmatpush1.msra.mxu0 0.0
  %1623 = vmatprep.mubr.f32.mxu0 0.0
  %1624 = vmatmul.mubr.f32.gmra.mrb[0].mxu0 %v1554
  %v1625 = vpop.f32.mrb[0].mxu0
  %v1626 = vadd.f32 0.0, %v1625
  %v1627 = vpop.f32.mrb[0].mxu0
  %1628 = vmatprep.mubr.f32.mxu0 0.0
  %1629 = vmatmul.mubr.f32.gmra.mrb[0].mxu0 %v1557
  %v1630 = vpop.f32.mrb[0].mxu0
  %v1631 = vadd.f32 0.0, %v1630
  %v1632 = vpop.f32.mrb[0].mxu0
  %1633 = vdwg.mxu0
  %v1634 = vld [vmem:[%s12] sm:$0xff]
  %s1635 = scalar_lea.vmem %s12, 8
  %v1636 = vld [vmem:[%s1635] sm:$0xff]
  %v1638 = vsel %vm1167, %v1550, 0
  %1640 = vmatprep.subr.mxu0 0.0
  %1641 = vmatpush1.msra.mxu0 %v1636
  %1642 = vmatprep.subr.mxu0 0.0
  %1643 = vmatpush1.msra.mxu0 0.0
  %1644 = vmatprep.subr.mxu0 0.0
  %1645 = vmatpush1.msra.mxu0 0.0
  %1646 = vmatprep.subr.mxu0 0.0
  %1647 = vmatpush1.msra.mxu0 0.0
  %1648 = vmatprep.subr.mxu0 0.0
  %1649 = vmatpush1.msra.mxu0 0.0
  %1650 = vmatprep.subr.mxu0 0.0
  %1651 = vmatpush1.msra.mxu0 0.0
  %1652 = vmatprep.subr.mxu0 0.0
  %1653 = vmatpush1.msra.mxu0 0.0
  %1654 = vmatprep.subr.mxu0 0.0
  %1655 = vmatpush1.msra.mxu0 0.0
  %1656 = vmatprep.subr.mxu0 0.0
  %1657 = vmatpush1.msra.mxu0 0.0
  %1658 = vmatprep.subr.mxu0 0.0
  %1659 = vmatpush1.msra.mxu0 0.0
  %1660 = vmatprep.subr.mxu0 0.0
  %1661 = vmatpush1.msra.mxu0 0.0
  %1662 = vmatprep.subr.mxu0 0.0
  %1663 = vmatpush1.msra.mxu0 0.0
  %1664 = vmatprep.subr.mxu0 0.0
  %1665 = vmatpush1.msra.mxu0 0.0
  %1666 = vmatprep.subr.mxu0 0.0
  %1667 = vmatpush1.msra.mxu0 0.0
  %1668 = vmatprep.subr.mxu0 0.0
  %1669 = vmatpush1.msra.mxu0 0.0
  %1670 = vmatprep.subr.mxu0 0.0
  %1671 = vmatpush1.msra.mxu0 0.0
  %1672 = vmatprep.subr.mxu0 0.0
  %1673 = vmatpush1.msra.mxu0 0.0
  %1674 = vmatprep.subr.mxu0 0.0
  %1675 = vmatpush1.msra.mxu0 0.0
  %1676 = vmatprep.subr.mxu0 0.0
  %1677 = vmatpush1.msra.mxu0 0.0
  %1678 = vmatprep.subr.mxu0 0.0
  %1679 = vmatpush1.msra.mxu0 0.0
  %1680 = vmatprep.subr.mxu0 0.0
  %1681 = vmatpush1.msra.mxu0 0.0
  %1682 = vmatprep.subr.mxu0 0.0
  %1683 = vmatpush1.msra.mxu0 0.0
  %1684 = vmatprep.subr.mxu0 0.0
  %1685 = vmatpush1.msra.mxu0 0.0
  %1686 = vmatprep.subr.mxu0 0.0
  %1687 = vmatpush1.msra.mxu0 0.0
  %1688 = vmatprep.subr.mxu0 0.0
  %1689 = vmatpush1.msra.mxu0 0.0
  %1690 = vmatprep.subr.mxu0 0.0
  %1691 = vmatpush1.msra.mxu0 0.0
  %1692 = vmatprep.subr.mxu0 0.0
  %1693 = vmatpush1.msra.mxu0 0.0
  %1694 = vmatprep.subr.mxu0 0.0
  %1695 = vmatpush1.msra.mxu0 0.0
  %1696 = vmatprep.subr.mxu0 0.0
  %1697 = vmatpush1.msra.mxu0 0.0
  %1698 = vmatprep.subr.mxu0 0.0
  %1699 = vmatpush1.msra.mxu0 0.0
  %1700 = vmatprep.subr.mxu0 0.0
  %1701 = vmatpush1.msra.mxu0 0.0
  %1702 = vmatprep.subr.mxu0 0.0
  %1703 = vmatpush1.msra.mxu0 0.0
  %1704 = vmatprep.mubr.f32.mxu0 0.0
  %1705 = vmatmul.mubr.f32.gmra.mrb[0].mxu0 %v1638
  %v1706 = vpop.f32.mrb[0].mxu0
  %v1707 = vadd.f32 0.0, %v1706
  %v1708 = vpop.f32.mrb[0].mxu0
  %1709 = vdwg.mxu0
  %v1711 = vsel %vm1167, %v1545, 0
  %1713 = vmatprep.subr.mxu0 0.0
  %1714 = vmatpush1.msra.mxu0 %v1634
  %1715 = vmatprep.subr.mxu0 0.0
  %1716 = vmatpush1.msra.mxu0 0.0
  %1717 = vmatprep.subr.mxu0 0.0
  %1718 = vmatpush1.msra.mxu0 0.0
  %1719 = vmatprep.subr.mxu0 0.0
  %1720 = vmatpush1.msra.mxu0 0.0
  %1721 = vmatprep.subr.mxu0 0.0
  %1722 = vmatpush1.msra.mxu0 0.0
  %1723 = vmatprep.subr.mxu0 0.0
  %1724 = vmatpush1.msra.mxu0 0.0
  %1725 = vmatprep.subr.mxu0 0.0
  %1726 = vmatpush1.msra.mxu0 0.0
  %1727 = vmatprep.subr.mxu0 0.0
  %1728 = vmatpush1.msra.mxu0 0.0
  %1729 = vmatprep.subr.mxu0 0.0
  %1730 = vmatpush1.msra.mxu0 0.0
  %1731 = vmatprep.subr.mxu0 0.0
  %1732 = vmatpush1.msra.mxu0 0.0
  %1733 = vmatprep.subr.mxu0 0.0
  %1734 = vmatpush1.msra.mxu0 0.0
  %1735 = vmatprep.subr.mxu0 0.0
  %1736 = vmatpush1.msra.mxu0 0.0
  %1737 = vmatprep.subr.mxu0 0.0
  %1738 = vmatpush1.msra.mxu0 0.0
  %1739 = vmatprep.subr.mxu0 0.0
  %1740 = vmatpush1.msra.mxu0 0.0
  %1741 = vmatprep.subr.mxu0 0.0
  %1742 = vmatpush1.msra.mxu0 0.0
  %1743 = vmatprep.subr.mxu0 0.0
  %1744 = vmatpush1.msra.mxu0 0.0
  %1745 = vmatprep.subr.mxu0 0.0
  %1746 = vmatpush1.msra.mxu0 0.0
  %1747 = vmatprep.subr.mxu0 0.0
  %1748 = vmatpush1.msra.mxu0 0.0
  %1749 = vmatprep.subr.mxu0 0.0
  %1750 = vmatpush1.msra.mxu0 0.0
  %1751 = vmatprep.subr.mxu0 0.0
  %1752 = vmatpush1.msra.mxu0 0.0
  %1753 = vmatprep.subr.mxu0 0.0
  %1754 = vmatpush1.msra.mxu0 0.0
  %1755 = vmatprep.subr.mxu0 0.0
  %1756 = vmatpush1.msra.mxu0 0.0
  %1757 = vmatprep.subr.mxu0 0.0
  %1758 = vmatpush1.msra.mxu0 0.0
  %1759 = vmatprep.subr.mxu0 0.0
  %1760 = vmatpush1.msra.mxu0 0.0
  %1761 = vmatprep.subr.mxu0 0.0
  %1762 = vmatpush1.msra.mxu0 0.0
  %1763 = vmatprep.subr.mxu0 0.0
  %1764 = vmatpush1.msra.mxu0 0.0
  %1765 = vmatprep.subr.mxu0 0.0
  %1766 = vmatpush1.msra.mxu0 0.0
  %1767 = vmatprep.subr.mxu0 0.0
  %1768 = vmatpush1.msra.mxu0 0.0
  %1769 = vmatprep.subr.mxu0 0.0
  %1770 = vmatpush1.msra.mxu0 0.0
  %1771 = vmatprep.subr.mxu0 0.0
  %1772 = vmatpush1.msra.mxu0 0.0
  %1773 = vmatprep.subr.mxu0 0.0
  %1774 = vmatpush1.msra.mxu0 0.0
  %1775 = vmatprep.subr.mxu0 0.0
  %1776 = vmatpush1.msra.mxu0 0.0
  %1777 = vmatprep.mubr.f32.mxu0 0.0
  %1778 = vmatmul.mubr.f32.gmra.mrb[0].mxu0 %v1711
  %v1779 = vpop.f32.mrb[0].mxu0
  %v1780 = vadd.f32 %v1707, %v1779
  %v1781 = vpop.f32.mrb[0].mxu0
  %1782 = vdwg.mxu0
  %s1783 = scalar_lea.vmem %s12, 16
  %v1784 = vld [vmem:[%s1783] sm:$0xff]
  %v1786 = vsel %vm1167, %v1626, 0
  %1788 = vmatprep.subr.mxu0 0.0
  %1789 = vmatpush1.msra.mxu0 %v1784
  %1790 = vmatprep.subr.mxu0 0.0
  %1791 = vmatpush1.msra.mxu0 0.0
  %1792 = vmatprep.subr.mxu0 0.0
  %1793 = vmatpush1.msra.mxu0 0.0
  %1794 = vmatprep.subr.mxu0 0.0
  %1795 = vmatpush1.msra.mxu0 0.0
  %1796 = vmatprep.subr.mxu0 0.0
  %1797 = vmatpush1.msra.mxu0 0.0
  %1798 = vmatprep.subr.mxu0 0.0
  %1799 = vmatpush1.msra.mxu0 0.0
  %1800 = vmatprep.subr.mxu0 0.0
  %1801 = vmatpush1.msra.mxu0 0.0
  %1802 = vmatprep.subr.mxu0 0.0
  %1803 = vmatpush1.msra.mxu0 0.0
  %1804 = vmatprep.subr.mxu0 0.0
  %1805 = vmatpush1.msra.mxu0 0.0
  %1806 = vmatprep.subr.mxu0 0.0
  %1807 = vmatpush1.msra.mxu0 0.0
  %1808 = vmatprep.subr.mxu0 0.0
  %1809 = vmatpush1.msra.mxu0 0.0
  %1810 = vmatprep.subr.mxu0 0.0
  %1811 = vmatpush1.msra.mxu0 0.0
  %1812 = vmatprep.subr.mxu0 0.0
  %1813 = vmatpush1.msra.mxu0 0.0
  %1814 = vmatprep.subr.mxu0 0.0
  %1815 = vmatpush1.msra.mxu0 0.0
  %1816 = vmatprep.subr.mxu0 0.0
  %1817 = vmatpush1.msra.mxu0 0.0
  %1818 = vmatprep.subr.mxu0 0.0
  %1819 = vmatpush1.msra.mxu0 0.0
  %1820 = vmatprep.subr.mxu0 0.0
  %1821 = vmatpush1.msra.mxu0 0.0
  %1822 = vmatprep.subr.mxu0 0.0
  %1823 = vmatpush1.msra.mxu0 0.0
  %1824 = vmatprep.subr.mxu0 0.0
  %1825 = vmatpush1.msra.mxu0 0.0
  %1826 = vmatprep.subr.mxu0 0.0
  %1827 = vmatpush1.msra.mxu0 0.0
  %1828 = vmatprep.subr.mxu0 0.0
  %1829 = vmatpush1.msra.mxu0 0.0
  %1830 = vmatprep.subr.mxu0 0.0
  %1831 = vmatpush1.msra.mxu0 0.0
  %1832 = vmatprep.subr.mxu0 0.0
  %1833 = vmatpush1.msra.mxu0 0.0
  %1834 = vmatprep.subr.mxu0 0.0
  %1835 = vmatpush1.msra.mxu0 0.0
  %1836 = vmatprep.subr.mxu0 0.0
  %1837 = vmatpush1.msra.mxu0 0.0
  %1838 = vmatprep.subr.mxu0 0.0
  %1839 = vmatpush1.msra.mxu0 0.0
  %1840 = vmatprep.subr.mxu0 0.0
  %1841 = vmatpush1.msra.mxu0 0.0
  %1842 = vmatprep.subr.mxu0 0.0
  %1843 = vmatpush1.msra.mxu0 0.0
  %1844 = vmatprep.subr.mxu0 0.0
  %1845 = vmatpush1.msra.mxu0 0.0
  %1846 = vmatprep.subr.mxu0 0.0
  %1847 = vmatpush1.msra.mxu0 0.0
  %1848 = vmatprep.subr.mxu0 0.0
  %1849 = vmatpush1.msra.mxu0 0.0
  %1850 = vmatprep.subr.mxu0 0.0
  %1851 = vmatpush1.msra.mxu0 0.0
  %1852 = vmatprep.mubr.f32.mxu0 0.0
  %1853 = vmatmul.mubr.f32.gmra.mrb[0].mxu0 %v1786
  %v1854 = vpop.f32.mrb[0].mxu0
  %v1855 = vadd.f32 0.0, %v1854
  %v1856 = vpop.f32.mrb[0].mxu0
  %1857 = vdwg.mxu0
  %v1858 = vadd.f32 %v1780, %v1855
  %s1859 = scalar_lea.vmem %s12, 24
  %v1860 = vld [vmem:[%s1859] sm:$0xff]
  %v1862 = vsel %vm1167, %v1631, 0
  %1864 = vmatprep.subr.mxu0 0.0
  %1865 = vmatpush1.msra.mxu0 %v1860
  %1866 = vmatprep.subr.mxu0 0.0
  %1867 = vmatpush1.msra.mxu0 0.0
  %1868 = vmatprep.subr.mxu0 0.0
  %1869 = vmatpush1.msra.mxu0 0.0
  %1870 = vmatprep.subr.mxu0 0.0
  %1871 = vmatpush1.msra.mxu0 0.0
  %1872 = vmatprep.subr.mxu0 0.0
  %1873 = vmatpush1.msra.mxu0 0.0
  %1874 = vmatprep.subr.mxu0 0.0
  %1875 = vmatpush1.msra.mxu0 0.0
  %1876 = vmatprep.subr.mxu0 0.0
  %1877 = vmatpush1.msra.mxu0 0.0
  %1878 = vmatprep.subr.mxu0 0.0
  %1879 = vmatpush1.msra.mxu0 0.0
  %1880 = vmatprep.subr.mxu0 0.0
  %1881 = vmatpush1.msra.mxu0 0.0
  %1882 = vmatprep.subr.mxu0 0.0
  %1883 = vmatpush1.msra.mxu0 0.0
  %1884 = vmatprep.subr.mxu0 0.0
  %1885 = vmatpush1.msra.mxu0 0.0
  %1886 = vmatprep.subr.mxu0 0.0
  %1887 = vmatpush1.msra.mxu0 0.0
  %1888 = vmatprep.subr.mxu0 0.0
  %1889 = vmatpush1.msra.mxu0 0.0
  %1890 = vmatprep.subr.mxu0 0.0
  %1891 = vmatpush1.msra.mxu0 0.0
  %1892 = vmatprep.subr.mxu0 0.0
  %1893 = vmatpush1.msra.mxu0 0.0
  %1894 = vmatprep.subr.mxu0 0.0
  %1895 = vmatpush1.msra.mxu0 0.0
  %1896 = vmatprep.subr.mxu0 0.0
  %1897 = vmatpush1.msra.mxu0 0.0
  %1898 = vmatprep.subr.mxu0 0.0
  %1899 = vmatpush1.msra.mxu0 0.0
  %1900 = vmatprep.subr.mxu0 0.0
  %1901 = vmatpush1.msra.mxu0 0.0
  %1902 = vmatprep.subr.mxu0 0.0
  %1903 = vmatpush1.msra.mxu0 0.0
  %1904 = vmatprep.subr.mxu0 0.0
  %1905 = vmatpush1.msra.mxu0 0.0
  %1906 = vmatprep.subr.mxu0 0.0
  %1907 = vmatpush1.msra.mxu0 0.0
  %1908 = vmatprep.subr.mxu0 0.0
  %1909 = vmatpush1.msra.mxu0 0.0
  %1910 = vmatprep.subr.mxu0 0.0
  %1911 = vmatpush1.msra.mxu0 0.0
  %1912 = vmatprep.subr.mxu0 0.0
  %1913 = vmatpush1.msra.mxu0 0.0
  %1914 = vmatprep.subr.mxu0 0.0
  %1915 = vmatpush1.msra.mxu0 0.0
  %1916 = vmatprep.subr.mxu0 0.0
  %1917 = vmatpush1.msra.mxu0 0.0
  %1918 = vmatprep.subr.mxu0 0.0
  %1919 = vmatpush1.msra.mxu0 0.0
  %1920 = vmatprep.subr.mxu0 0.0
  %1921 = vmatpush1.msra.mxu0 0.0
  %1922 = vmatprep.subr.mxu0 0.0
  %1923 = vmatpush1.msra.mxu0 0.0
  %1924 = vmatprep.subr.mxu0 0.0
  %1925 = vmatpush1.msra.mxu0 0.0
  %1926 = vmatprep.subr.mxu0 0.0
  %1927 = vmatpush1.msra.mxu0 0.0
  %1928 = vmatprep.mubr.f32.mxu0 0.0
  %1929 = vmatmul.mubr.f32.gmra.mrb[0].mxu0 %v1862
  %v1930 = vpop.f32.mrb[0].mxu0
  %v1931 = vadd.f32 0.0, %v1930
  %v1932 = vpop.f32.mrb[0].mxu0
  %1933 = vdwg.mxu0
  %v1934 = vadd.f32 %v1858, %v1931
  %v1935 = vadd.f32 %v62, %v1934
  %v1936 = vld [vmem:[%s13] sm:$0x1]
  %v1937 = vmul.f32 %v1935, %v1935
  %v1938 = vsel %vm85, %v1937, 0.0
  %1939 = vadd.xlane.f32.xlu0 %v1938
  %v1940 = vpop.xlane.xlu0 %1939
  %v1941 = vmul.f32 %v1940, %v89
  %v1942 = vadd.f32 %v1941, 1e-06
  %v1943 = vrsqrt.pop %v1942
  %v1944 = vmul.f32 %v1935, %v1943
  %v1946 = vlaneseq
  %v1947 = vshrl.u32 %v1946, 7
  %v1948 = vsub.s32 0, %v1947
  %v1949 = vrot.slane %v1936, %v1948
  %v1951 = vmul.f32 %v1944, %v1949
  %v1952 = vld [vmem:[%s14] sm:$0xff]
  %v1953 = vld [vmem:[%s14 + $0x8] sm:$0xff]
  %v1954 = vld [vmem:[%s14 + $0x10] sm:$0xff]
  %v1955 = vld [vmem:[%s14 + $0x18] sm:$0xff]
  %v1957 = vsel %vm85, %v1951, 0
  %1959 = vmatprep.subr.mxu0 0.0
  %1960 = vmatpush1.msra.mxu0 %v1952
  %1961 = vmatprep.subr.mxu0 0.0
  %1962 = vmatpush1.msra.mxu0 %v1953
  %1963 = vmatprep.subr.mxu0 0.0
  %1964 = vmatpush1.msra.mxu0 %v1954
  %1965 = vmatprep.subr.mxu0 0.0
  %1966 = vmatpush1.msra.mxu0 %v1955
  %1967 = vmatprep.subr.mxu0 0.0
  %1968 = vmatpush1.msra.mxu0 0.0
  %1969 = vmatprep.subr.mxu0 0.0
  %1970 = vmatpush1.msra.mxu0 0.0
  %1971 = vmatprep.subr.mxu0 0.0
  %1972 = vmatpush1.msra.mxu0 0.0
  %1973 = vmatprep.subr.mxu0 0.0
  %1974 = vmatpush1.msra.mxu0 0.0
  %1975 = vmatprep.subr.mxu0 0.0
  %1976 = vmatpush1.msra.mxu0 0.0
  %1977 = vmatprep.subr.mxu0 0.0
  %1978 = vmatpush1.msra.mxu0 0.0
  %1979 = vmatprep.subr.mxu0 0.0
  %1980 = vmatpush1.msra.mxu0 0.0
  %1981 = vmatprep.subr.mxu0 0.0
  %1982 = vmatpush1.msra.mxu0 0.0
  %1983 = vmatprep.subr.mxu0 0.0
  %1984 = vmatpush1.msra.mxu0 0.0
  %1985 = vmatprep.subr.mxu0 0.0
  %1986 = vmatpush1.msra.mxu0 0.0
  %1987 = vmatprep.subr.mxu0 0.0
  %1988 = vmatpush1.msra.mxu0 0.0
  %1989 = vmatprep.subr.mxu0 0.0
  %1990 = vmatpush1.msra.mxu0 0.0
  %1991 = vmatprep.subr.mxu0 0.0
  %1992 = vmatpush1.msra.mxu0 0.0
  %1993 = vmatprep.subr.mxu0 0.0
  %1994 = vmatpush1.msra.mxu0 0.0
  %1995 = vmatprep.subr.mxu0 0.0
  %1996 = vmatpush1.msra.mxu0 0.0
  %1997 = vmatprep.subr.mxu0 0.0
  %1998 = vmatpush1.msra.mxu0 0.0
  %1999 = vmatprep.subr.mxu0 0.0
  %2000 = vmatpush1.msra.mxu0 0.0
  %2001 = vmatprep.subr.mxu0 0.0
  %2002 = vmatpush1.msra.mxu0 0.0
  %2003 = vmatprep.subr.mxu0 0.0
  %2004 = vmatpush1.msra.mxu0 0.0
  %2005 = vmatprep.subr.mxu0 0.0
  %2006 = vmatpush1.msra.mxu0 0.0
  %2007 = vmatprep.subr.mxu0 0.0
  %2008 = vmatpush1.msra.mxu0 0.0
  %2009 = vmatprep.subr.mxu0 0.0
  %2010 = vmatpush1.msra.mxu0 0.0
  %2011 = vmatprep.subr.mxu0 0.0
  %2012 = vmatpush1.msra.mxu0 0.0
  %2013 = vmatprep.subr.mxu0 0.0
  %2014 = vmatpush1.msra.mxu0 0.0
  %2015 = vmatprep.subr.mxu0 0.0
  %2016 = vmatpush1.msra.mxu0 0.0
  %2017 = vmatprep.subr.mxu0 0.0
  %2018 = vmatpush1.msra.mxu0 0.0
  %2019 = vmatprep.subr.mxu0 0.0
  %2020 = vmatpush1.msra.mxu0 0.0
  %2021 = vmatprep.subr.mxu0 0.0
  %2022 = vmatpush1.msra.mxu0 0.0
  %2023 = vmatprep.mubr.f32.mxu0 0.0
  %2024 = vmatmul.mubr.f32.gmra.mrb[0].mxu0 %v1957
  %v2025 = vpop.f32.mrb[0].mxu0
  %v2026 = vadd.f32 0.0, %v2025
  %v2027 = vpop.f32.mrb[0].mxu0
  %2028 = vdwg.mxu0
  %v2029 = vld [vmem:[%s15] sm:$0xff]
  %v2030 = vld [vmem:[%s15 + $0x8] sm:$0xff]
  %v2031 = vld [vmem:[%s15 + $0x10] sm:$0xff]
  %v2032 = vld [vmem:[%s15 + $0x18] sm:$0xff]
  %2033 = vmatprep.subr.mxu0 0.0
  %2034 = vmatpush1.msra.mxu0 %v2029
  %2035 = vmatprep.subr.mxu0 0.0
  %2036 = vmatpush1.msra.mxu0 %v2030
  %2037 = vmatprep.subr.mxu0 0.0
  %2038 = vmatpush1.msra.mxu0 %v2031
  %2039 = vmatprep.subr.mxu0 0.0
  %2040 = vmatpush1.msra.mxu0 %v2032
  %2041 = vmatprep.subr.mxu0 0.0
  %2042 = vmatpush1.msra.mxu0 0.0
  %2043 = vmatprep.subr.mxu0 0.0
  %2044 = vmatpush1.msra.mxu0 0.0
  %2045 = vmatprep.subr.mxu0 0.0
  %2046 = vmatpush1.msra.mxu0 0.0
  %2047 = vmatprep.subr.mxu0 0.0
  %2048 = vmatpush1.msra.mxu0 0.0
  %2049 = vmatprep.subr.mxu0 0.0
  %2050 = vmatpush1.msra.mxu0 0.0
  %2051 = vmatprep.subr.mxu0 0.0
  %2052 = vmatpush1.msra.mxu0 0.0
  %2053 = vmatprep.subr.mxu0 0.0
  %2054 = vmatpush1.msra.mxu0 0.0
  %2055 = vmatprep.subr.mxu0 0.0
  %2056 = vmatpush1.msra.mxu0 0.0
  %2057 = vmatprep.subr.mxu0 0.0
  %2058 = vmatpush1.msra.mxu0 0.0
  %2059 = vmatprep.subr.mxu0 0.0
  %2060 = vmatpush1.msra.mxu0 0.0
  %2061 = vmatprep.subr.mxu0 0.0
  %2062 = vmatpush1.msra.mxu0 0.0
  %2063 = vmatprep.subr.mxu0 0.0
  %2064 = vmatpush1.msra.mxu0 0.0
  %2065 = vmatprep.subr.mxu0 0.0
  %2066 = vmatpush1.msra.mxu0 0.0
  %2067 = vmatprep.subr.mxu0 0.0
  %2068 = vmatpush1.msra.mxu0 0.0
  %2069 = vmatprep.subr.mxu0 0.0
  %2070 = vmatpush1.msra.mxu0 0.0
  %2071 = vmatprep.subr.mxu0 0.0
  %2072 = vmatpush1.msra.mxu0 0.0
  %2073 = vmatprep.subr.mxu0 0.0
  %2074 = vmatpush1.msra.mxu0 0.0
  %2075 = vmatprep.subr.mxu0 0.0
  %2076 = vmatpush1.msra.mxu0 0.0
  %2077 = vmatprep.subr.mxu0 0.0
  %2078 = vmatpush1.msra.mxu0 0.0
  %2079 = vmatprep.subr.mxu0 0.0
  %2080 = vmatpush1.msra.mxu0 0.0
  %2081 = vmatprep.subr.mxu0 0.0
  %2082 = vmatpush1.msra.mxu0 0.0
  %2083 = vmatprep.subr.mxu0 0.0
  %2084 = vmatpush1.msra.mxu0 0.0
  %2085 = vmatprep.subr.mxu0 0.0
  %2086 = vmatpush1.msra.mxu0 0.0
  %2087 = vmatprep.subr.mxu0 0.0
  %2088 = vmatpush1.msra.mxu0 0.0
  %2089 = vmatprep.subr.mxu0 0.0
  %2090 = vmatpush1.msra.mxu0 0.0
  %2091 = vmatprep.subr.mxu0 0.0
  %2092 = vmatpush1.msra.mxu0 0.0
  %2093 = vmatprep.subr.mxu0 0.0
  %2094 = vmatpush1.msra.mxu0 0.0
  %2095 = vmatprep.subr.mxu0 0.0
  %2096 = vmatpush1.msra.mxu0 0.0
  %2097 = vmatprep.mubr.f32.mxu0 0.0
  %2098 = vmatmul.mubr.f32.gmra.mrb[0].mxu0 %v1957
  %v2099 = vpop.f32.mrb[0].mxu0
  %v2100 = vadd.f32 0.0, %v2099
  %v2101 = vpop.f32.mrb[0].mxu0
  %2102 = vdwg.mxu0
  %v2103 = vxor.u32 %v2026, 2147483648
  %v2104 = vmul.f32 %v2103, 1.442695
  %v2105 = vpow.pop %v2104
  %v2106 = vadd.f32 %v2105, 1.0
  %v2107 = vrcp.pop %v2106
  %v2108 = vmul.f32 1.0, %v2107
  %v2109 = vmul.f32 %v2026, %v2108
  %v2110 = vmul.f32 %v2109, %v2100
  %v2111 = vld [vmem:[%s16] sm:$0xff]
  %v2112 = vld [vmem:[%s16 + $0x8] sm:$0xff]
  %v2113 = vld [vmem:[%s16 + $0x10] sm:$0xff]
  %v2114 = vld [vmem:[%s16 + $0x18] sm:$0xff]
  %v2115 = vld [vmem:[%s16 + $0x20] sm:$0xff]
  %v2116 = vld [vmem:[%s16 + $0x28] sm:$0xff]
  %v2117 = vld [vmem:[%s16 + $0x30] sm:$0xff]
  %v2118 = vld [vmem:[%s16 + $0x38] sm:$0xff]
  %vm2119 = vcmask 523264
  %v2121 = vsel %vm2119, %v2110, 0
  %2123 = vmatprep.subr.mxu0 0.0
  %2124 = vmatpush1.msra.mxu0 %v2111
  %2125 = vmatprep.subr.mxu0 0.0
  %2126 = vmatpush1.msra.mxu0 %v2112
  %2127 = vmatprep.subr.mxu0 0.0
  %2128 = vmatpush1.msra.mxu0 %v2113
  %2129 = vmatprep.subr.mxu0 0.0
  %2130 = vmatpush1.msra.mxu0 %v2114
  %2131 = vmatprep.subr.mxu0 0.0
  %2132 = vmatpush1.msra.mxu0 %v2115
  %2133 = vmatprep.subr.mxu0 0.0
  %2134 = vmatpush1.msra.mxu0 %v2116
  %2135 = vmatprep.subr.mxu0 0.0
  %2136 = vmatpush1.msra.mxu0 %v2117
  %2137 = vmatprep.subr.mxu0 0.0
  %2138 = vmatpush1.msra.mxu0 %v2118
  %2139 = vmatprep.subr.mxu0 0.0
  %2140 = vmatpush1.msra.mxu0 0.0
  %2141 = vmatprep.subr.mxu0 0.0
  %2142 = vmatpush1.msra.mxu0 0.0
  %2143 = vmatprep.subr.mxu0 0.0
  %2144 = vmatpush1.msra.mxu0 0.0
  %2145 = vmatprep.subr.mxu0 0.0
  %2146 = vmatpush1.msra.mxu0 0.0
  %2147 = vmatprep.subr.mxu0 0.0
  %2148 = vmatpush1.msra.mxu0 0.0
  %2149 = vmatprep.subr.mxu0 0.0
  %2150 = vmatpush1.msra.mxu0 0.0
  %2151 = vmatprep.subr.mxu0 0.0
  %2152 = vmatpush1.msra.mxu0 0.0
  %2153 = vmatprep.subr.mxu0 0.0
  %2154 = vmatpush1.msra.mxu0 0.0
  %2155 = vmatprep.subr.mxu0 0.0
  %2156 = vmatpush1.msra.mxu0 0.0
  %2157 = vmatprep.subr.mxu0 0.0
  %2158 = vmatpush1.msra.mxu0 0.0
  %2159 = vmatprep.subr.mxu0 0.0
  %2160 = vmatpush1.msra.mxu0 0.0
  %2161 = vmatprep.subr.mxu0 0.0
  %2162 = vmatpush1.msra.mxu0 0.0
  %2163 = vmatprep.subr.mxu0 0.0
  %2164 = vmatpush1.msra.mxu0 0.0
  %2165 = vmatprep.subr.mxu0 0.0
  %2166 = vmatpush1.msra.mxu0 0.0
  %2167 = vmatprep.subr.mxu0 0.0
  %2168 = vmatpush1.msra.mxu0 0.0
  %2169 = vmatprep.subr.mxu0 0.0
  %2170 = vmatpush1.msra.mxu0 0.0
  %2171 = vmatprep.subr.mxu0 0.0
  %2172 = vmatpush1.msra.mxu0 0.0
  %2173 = vmatprep.subr.mxu0 0.0
  %2174 = vmatpush1.msra.mxu0 0.0
  %2175 = vmatprep.subr.mxu0 0.0
  %2176 = vmatpush1.msra.mxu0 0.0
  %2177 = vmatprep.subr.mxu0 0.0
  %2178 = vmatpush1.msra.mxu0 0.0
  %2179 = vmatprep.subr.mxu0 0.0
  %2180 = vmatpush1.msra.mxu0 0.0
  %2181 = vmatprep.subr.mxu0 0.0
  %2182 = vmatpush1.msra.mxu0 0.0
  %2183 = vmatprep.subr.mxu0 0.0
  %2184 = vmatpush1.msra.mxu0 0.0
  %2185 = vmatprep.subr.mxu0 0.0
  %2186 = vmatpush1.msra.mxu0 0.0
  %2187 = vmatprep.mubr.f32.mxu0 0.0
  %2188 = vmatmul.mubr.f32.gmra.mrb[0].mxu0 %v2121
  %v2189 = vpop.f32.mrb[0].mxu0
  %v2190 = vadd.f32 0.0, %v2189
  %v2191 = vpop.f32.mrb[0].mxu0
  %2192 = vdwg.mxu0
  %v2193 = vadd.f32 %v1935, %v2190
  %s2194 = scalar_lea.vmem %s6, 1
  %v2195 = vld [vmem:[%s2194] sm:$0x1]
  %v2196 = vmul.f32 %v2193, %v2193
  %v2197 = vsel %vm85, %v2196, 0.0
  %2198 = vadd.xlane.f32.xlu0 %v2197
  %v2199 = vpop.xlane.xlu0 %2198
  %v2200 = vmul.f32 %v2199, %v89
  %v2201 = vadd.f32 %v2200, 1e-06
  %v2202 = vrsqrt.pop %v2201
  %v2203 = vmul.f32 %v2193, %v2202
  %v2205 = vlaneseq
  %v2206 = vshrl.u32 %v2205, 7
  %v2207 = vsub.s32 0, %v2206
  %v2208 = vrot.slane %v2195, %v2207
  %v2210 = vmul.f32 %v2203, %v2208
  %s2211 = scalar_lea.vmem %s7, 128
  %v2212 = vld [vmem:[%s2211] sm:$0xff]
  %v2213 = vld [vmem:[%s2211 + $0x8] sm:$0xff]
  %v2214 = vld [vmem:[%s2211 + $0x10] sm:$0xff]
  %v2215 = vld [vmem:[%s2211 + $0x18] sm:$0xff]
  %v2217 = vsel %vm85, %v2210, 0
  %2219 = vmatprep.subr.mxu0 0.0
  %2220 = vmatpush1.msra.mxu0 %v2212
  %2221 = vmatprep.subr.mxu0 0.0
  %2222 = vmatpush1.msra.mxu0 %v2213
  %2223 = vmatprep.subr.mxu0 0.0
  %2224 = vmatpush1.msra.mxu0 %v2214
  %2225 = vmatprep.subr.mxu0 0.0
  %2226 = vmatpush1.msra.mxu0 %v2215
  %2227 = vmatprep.subr.mxu0 0.0
  %2228 = vmatpush1.msra.mxu0 0.0
  %2229 = vmatprep.subr.mxu0 0.0
  %2230 = vmatpush1.msra.mxu0 0.0
  %2231 = vmatprep.subr.mxu0 0.0
  %2232 = vmatpush1.msra.mxu0 0.0
  %2233 = vmatprep.subr.mxu0 0.0
  %2234 = vmatpush1.msra.mxu0 0.0
  %2235 = vmatprep.subr.mxu0 0.0
  %2236 = vmatpush1.msra.mxu0 0.0
  %2237 = vmatprep.subr.mxu0 0.0
  %2238 = vmatpush1.msra.mxu0 0.0
  %2239 = vmatprep.subr.mxu0 0.0
  %2240 = vmatpush1.msra.mxu0 0.0
  %2241 = vmatprep.subr.mxu0 0.0
  %2242 = vmatpush1.msra.mxu0 0.0
  %2243 = vmatprep.subr.mxu0 0.0
  %2244 = vmatpush1.msra.mxu0 0.0
  %2245 = vmatprep.subr.mxu0 0.0
  %2246 = vmatpush1.msra.mxu0 0.0
  %2247 = vmatprep.subr.mxu0 0.0
  %2248 = vmatpush1.msra.mxu0 0.0
  %2249 = vmatprep.subr.mxu0 0.0
  %2250 = vmatpush1.msra.mxu0 0.0
  %2251 = vmatprep.subr.mxu0 0.0
  %2252 = vmatpush1.msra.mxu0 0.0
  %2253 = vmatprep.subr.mxu0 0.0
  %2254 = vmatpush1.msra.mxu0 0.0
  %2255 = vmatprep.subr.mxu0 0.0
  %2256 = vmatpush1.msra.mxu0 0.0
  %2257 = vmatprep.subr.mxu0 0.0
  %2258 = vmatpush1.msra.mxu0 0.0
  %2259 = vmatprep.subr.mxu0 0.0
  %2260 = vmatpush1.msra.mxu0 0.0
  %2261 = vmatprep.subr.mxu0 0.0
  %2262 = vmatpush1.msra.mxu0 0.0
  %2263 = vmatprep.subr.mxu0 0.0
  %2264 = vmatpush1.msra.mxu0 0.0
  %2265 = vmatprep.subr.mxu0 0.0
  %2266 = vmatpush1.msra.mxu0 0.0
  %2267 = vmatprep.subr.mxu0 0.0
  %2268 = vmatpush1.msra.mxu0 0.0
  %2269 = vmatprep.subr.mxu0 0.0
  %2270 = vmatpush1.msra.mxu0 0.0
  %2271 = vmatprep.subr.mxu0 0.0
  %2272 = vmatpush1.msra.mxu0 0.0
  %2273 = vmatprep.subr.mxu0 0.0
  %2274 = vmatpush1.msra.mxu0 0.0
  %2275 = vmatprep.subr.mxu0 0.0
  %2276 = vmatpush1.msra.mxu0 0.0
  %2277 = vmatprep.subr.mxu0 0.0
  %2278 = vmatpush1.msra.mxu0 0.0
  %2279 = vmatprep.subr.mxu0 0.0
  %2280 = vmatpush1.msra.mxu0 0.0
  %2281 = vmatprep.subr.mxu0 0.0
  %2282 = vmatpush1.msra.mxu0 0.0
  %2283 = vmatprep.mubr.f32.mxu0 0.0
  %2284 = vmatmul.mubr.f32.gmra.mrb[0].mxu0 %v2217
  %v2285 = vpop.f32.mrb[0].mxu0
  %v2286 = vadd.f32 0.0, %v2285
  %v2287 = vpop.f32.mrb[0].mxu0
  %2288 = vdwg.mxu0
  %s2289 = scalar_lea.vmem %s7, 160
  %v2290 = vld [vmem:[%s2289] sm:$0xff]
  %v2291 = vld [vmem:[%s2289 + $0x8] sm:$0xff]
  %v2292 = vld [vmem:[%s2289 + $0x10] sm:$0xff]
  %v2293 = vld [vmem:[%s2289 + $0x18] sm:$0xff]
  %2294 = vmatprep.subr.mxu0 0.0
  %2295 = vmatpush1.msra.mxu0 %v2290
  %2296 = vmatprep.subr.mxu0 0.0
  %2297 = vmatpush1.msra.mxu0 %v2291
  %2298 = vmatprep.subr.mxu0 0.0
  %2299 = vmatpush1.msra.mxu0 %v2292
  %2300 = vmatprep.subr.mxu0 0.0
  %2301 = vmatpush1.msra.mxu0 %v2293
  %2302 = vmatprep.subr.mxu0 0.0
  %2303 = vmatpush1.msra.mxu0 0.0
  %2304 = vmatprep.subr.mxu0 0.0
  %2305 = vmatpush1.msra.mxu0 0.0
  %2306 = vmatprep.subr.mxu0 0.0
  %2307 = vmatpush1.msra.mxu0 0.0
  %2308 = vmatprep.subr.mxu0 0.0
  %2309 = vmatpush1.msra.mxu0 0.0
  %2310 = vmatprep.subr.mxu0 0.0
  %2311 = vmatpush1.msra.mxu0 0.0
  %2312 = vmatprep.subr.mxu0 0.0
  %2313 = vmatpush1.msra.mxu0 0.0
  %2314 = vmatprep.subr.mxu0 0.0
  %2315 = vmatpush1.msra.mxu0 0.0
  %2316 = vmatprep.subr.mxu0 0.0
  %2317 = vmatpush1.msra.mxu0 0.0
  %2318 = vmatprep.subr.mxu0 0.0
  %2319 = vmatpush1.msra.mxu0 0.0
  %2320 = vmatprep.subr.mxu0 0.0
  %2321 = vmatpush1.msra.mxu0 0.0
  %2322 = vmatprep.subr.mxu0 0.0
  %2323 = vmatpush1.msra.mxu0 0.0
  %2324 = vmatprep.subr.mxu0 0.0
  %2325 = vmatpush1.msra.mxu0 0.0
  %2326 = vmatprep.subr.mxu0 0.0
  %2327 = vmatpush1.msra.mxu0 0.0
  %2328 = vmatprep.subr.mxu0 0.0
  %2329 = vmatpush1.msra.mxu0 0.0
  %2330 = vmatprep.subr.mxu0 0.0
  %2331 = vmatpush1.msra.mxu0 0.0
  %2332 = vmatprep.subr.mxu0 0.0
  %2333 = vmatpush1.msra.mxu0 0.0
  %2334 = vmatprep.subr.mxu0 0.0
  %2335 = vmatpush1.msra.mxu0 0.0
  %2336 = vmatprep.subr.mxu0 0.0
  %2337 = vmatpush1.msra.mxu0 0.0
  %2338 = vmatprep.subr.mxu0 0.0
  %2339 = vmatpush1.msra.mxu0 0.0
  %2340 = vmatprep.subr.mxu0 0.0
  %2341 = vmatpush1.msra.mxu0 0.0
  %2342 = vmatprep.subr.mxu0 0.0
  %2343 = vmatpush1.msra.mxu0 0.0
  %2344 = vmatprep.subr.mxu0 0.0
  %2345 = vmatpush1.msra.mxu0 0.0
  %2346 = vmatprep.subr.mxu0 0.0
  %2347 = vmatpush1.msra.mxu0 0.0
  %2348 = vmatprep.subr.mxu0 0.0
  %2349 = vmatpush1.msra.mxu0 0.0
  %2350 = vmatprep.subr.mxu0 0.0
  %2351 = vmatpush1.msra.mxu0 0.0
  %2352 = vmatprep.subr.mxu0 0.0
  %2353 = vmatpush1.msra.mxu0 0.0
  %2354 = vmatprep.subr.mxu0 0.0
  %2355 = vmatpush1.msra.mxu0 0.0
  %2356 = vmatprep.subr.mxu0 0.0
  %2357 = vmatpush1.msra.mxu0 0.0
  %2358 = vmatprep.mubr.f32.mxu0 0.0
  %2359 = vmatmul.mubr.f32.gmra.mrb[0].mxu0 %v2217
  %v2360 = vpop.f32.mrb[0].mxu0
  %v2361 = vadd.f32 0.0, %v2360
  %v2362 = vpop.f32.mrb[0].mxu0
  %2363 = vdwg.mxu0
  %s2364 = scalar_lea.vmem %s7, 192
  %v2365 = vld [vmem:[%s2364] sm:$0xff]
  %v2366 = vld [vmem:[%s2364 + $0x8] sm:$0xff]
  %v2367 = vld [vmem:[%s2364 + $0x10] sm:$0xff]
  %v2368 = vld [vmem:[%s2364 + $0x18] sm:$0xff]
  %2369 = vmatprep.subr.mxu0 0.0
  %2370 = vmatpush1.msra.mxu0 %v2365
  %2371 = vmatprep.subr.mxu0 0.0
  %2372 = vmatpush1.msra.mxu0 %v2366
  %2373 = vmatprep.subr.mxu0 0.0
  %2374 = vmatpush1.msra.mxu0 %v2367
  %2375 = vmatprep.subr.mxu0 0.0
  %2376 = vmatpush1.msra.mxu0 %v2368
  %2377 = vmatprep.subr.mxu0 0.0
  %2378 = vmatpush1.msra.mxu0 0.0
  %2379 = vmatprep.subr.mxu0 0.0
  %2380 = vmatpush1.msra.mxu0 0.0
  %2381 = vmatprep.subr.mxu0 0.0
  %2382 = vmatpush1.msra.mxu0 0.0
  %2383 = vmatprep.subr.mxu0 0.0
  %2384 = vmatpush1.msra.mxu0 0.0
  %2385 = vmatprep.subr.mxu0 0.0
  %2386 = vmatpush1.msra.mxu0 0.0
  %2387 = vmatprep.subr.mxu0 0.0
  %2388 = vmatpush1.msra.mxu0 0.0
  %2389 = vmatprep.subr.mxu0 0.0
  %2390 = vmatpush1.msra.mxu0 0.0
  %2391 = vmatprep.subr.mxu0 0.0
  %2392 = vmatpush1.msra.mxu0 0.0
  %2393 = vmatprep.subr.mxu0 0.0
  %2394 = vmatpush1.msra.mxu0 0.0
  %2395 = vmatprep.subr.mxu0 0.0
  %2396 = vmatpush1.msra.mxu0 0.0
  %2397 = vmatprep.subr.mxu0 0.0
  %2398 = vmatpush1.msra.mxu0 0.0
  %2399 = vmatprep.subr.mxu0 0.0
  %2400 = vmatpush1.msra.mxu0 0.0
  %2401 = vmatprep.subr.mxu0 0.0
  %2402 = vmatpush1.msra.mxu0 0.0
  %2403 = vmatprep.subr.mxu0 0.0
  %2404 = vmatpush1.msra.mxu0 0.0
  %2405 = vmatprep.subr.mxu0 0.0
  %2406 = vmatpush1.msra.mxu0 0.0
  %2407 = vmatprep.subr.mxu0 0.0
  %2408 = vmatpush1.msra.mxu0 0.0
  %2409 = vmatprep.subr.mxu0 0.0
  %2410 = vmatpush1.msra.mxu0 0.0
  %2411 = vmatprep.subr.mxu0 0.0
  %2412 = vmatpush1.msra.mxu0 0.0
  %2413 = vmatprep.subr.mxu0 0.0
  %2414 = vmatpush1.msra.mxu0 0.0
  %2415 = vmatprep.subr.mxu0 0.0
  %2416 = vmatpush1.msra.mxu0 0.0
  %2417 = vmatprep.subr.mxu0 0.0
  %2418 = vmatpush1.msra.mxu0 0.0
  %2419 = vmatprep.subr.mxu0 0.0
  %2420 = vmatpush1.msra.mxu0 0.0
  %2421 = vmatprep.subr.mxu0 0.0
  %2422 = vmatpush1.msra.mxu0 0.0
  %2423 = vmatprep.subr.mxu0 0.0
  %2424 = vmatpush1.msra.mxu0 0.0
  %2425 = vmatprep.subr.mxu0 0.0
  %2426 = vmatpush1.msra.mxu0 0.0
  %2427 = vmatprep.subr.mxu0 0.0
  %2428 = vmatpush1.msra.mxu0 0.0
  %2429 = vmatprep.subr.mxu0 0.0
  %2430 = vmatpush1.msra.mxu0 0.0
  %2431 = vmatprep.subr.mxu0 0.0
  %2432 = vmatpush1.msra.mxu0 0.0
  %2433 = vmatprep.mubr.f32.mxu0 0.0
  %2434 = vmatmul.mubr.f32.gmra.mrb[0].mxu0 %v2217
  %v2435 = vpop.f32.mrb[0].mxu0
  %v2436 = vadd.f32 0.0, %v2435
  %v2437 = vpop.f32.mrb[0].mxu0
  %2438 = vdwg.mxu0
  %s2439 = scalar_lea.vmem %s7, 224
  %v2440 = vld [vmem:[%s2439] sm:$0xff]
  %v2441 = vld [vmem:[%s2439 + $0x8] sm:$0xff]
  %v2442 = vld [vmem:[%s2439 + $0x10] sm:$0xff]
  %v2443 = vld [vmem:[%s2439 + $0x18] sm:$0xff]
  %2444 = vmatprep.subr.mxu0 0.0
  %2445 = vmatpush1.msra.mxu0 %v2440
  %2446 = vmatprep.subr.mxu0 0.0
  %2447 = vmatpush1.msra.mxu0 %v2441
  %2448 = vmatprep.subr.mxu0 0.0
  %2449 = vmatpush1.msra.mxu0 %v2442
  %2450 = vmatprep.subr.mxu0 0.0
  %2451 = vmatpush1.msra.mxu0 %v2443
  %2452 = vmatprep.subr.mxu0 0.0
  %2453 = vmatpush1.msra.mxu0 0.0
  %2454 = vmatprep.subr.mxu0 0.0
  %2455 = vmatpush1.msra.mxu0 0.0
  %2456 = vmatprep.subr.mxu0 0.0
  %2457 = vmatpush1.msra.mxu0 0.0
  %2458 = vmatprep.subr.mxu0 0.0
  %2459 = vmatpush1.msra.mxu0 0.0
  %2460 = vmatprep.subr.mxu0 0.0
  %2461 = vmatpush1.msra.mxu0 0.0
  %2462 = vmatprep.subr.mxu0 0.0
  %2463 = vmatpush1.msra.mxu0 0.0
  %2464 = vmatprep.subr.mxu0 0.0
  %2465 = vmatpush1.msra.mxu0 0.0
  %2466 = vmatprep.subr.mxu0 0.0
  %2467 = vmatpush1.msra.mxu0 0.0
  %2468 = vmatprep.subr.mxu0 0.0
  %2469 = vmatpush1.msra.mxu0 0.0
  %2470 = vmatprep.subr.mxu0 0.0
  %2471 = vmatpush1.msra.mxu0 0.0
  %2472 = vmatprep.subr.mxu0 0.0
  %2473 = vmatpush1.msra.mxu0 0.0
  %2474 = vmatprep.subr.mxu0 0.0
  %2475 = vmatpush1.msra.mxu0 0.0
  %2476 = vmatprep.subr.mxu0 0.0
  %2477 = vmatpush1.msra.mxu0 0.0
  %2478 = vmatprep.subr.mxu0 0.0
  %2479 = vmatpush1.msra.mxu0 0.0
  %2480 = vmatprep.subr.mxu0 0.0
  %2481 = vmatpush1.msra.mxu0 0.0
  %2482 = vmatprep.subr.mxu0 0.0
  %2483 = vmatpush1.msra.mxu0 0.0
  %2484 = vmatprep.subr.mxu0 0.0
  %2485 = vmatpush1.msra.mxu0 0.0
  %2486 = vmatprep.subr.mxu0 0.0
  %2487 = vmatpush1.msra.mxu0 0.0
  %2488 = vmatprep.subr.mxu0 0.0
  %2489 = vmatpush1.msra.mxu0 0.0
  %2490 = vmatprep.subr.mxu0 0.0
  %2491 = vmatpush1.msra.mxu0 0.0
  %2492 = vmatprep.subr.mxu0 0.0
  %2493 = vmatpush1.msra.mxu0 0.0
  %2494 = vmatprep.subr.mxu0 0.0
  %2495 = vmatpush1.msra.mxu0 0.0
  %2496 = vmatprep.subr.mxu0 0.0
  %2497 = vmatpush1.msra.mxu0 0.0
  %2498 = vmatprep.subr.mxu0 0.0
  %2499 = vmatpush1.msra.mxu0 0.0
  %2500 = vmatprep.subr.mxu0 0.0
  %2501 = vmatpush1.msra.mxu0 0.0
  %2502 = vmatprep.subr.mxu0 0.0
  %2503 = vmatpush1.msra.mxu0 0.0
  %2504 = vmatprep.subr.mxu0 0.0
  %2505 = vmatpush1.msra.mxu0 0.0
  %2506 = vmatprep.subr.mxu0 0.0
  %2507 = vmatpush1.msra.mxu0 0.0
  %2508 = vmatprep.mubr.f32.mxu0 0.0
  %2509 = vmatmul.mubr.f32.gmra.mrb[0].mxu0 %v2217
  %v2510 = vpop.f32.mrb[0].mxu0
  %v2511 = vadd.f32 0.0, %v2510
  %v2512 = vpop.f32.mrb[0].mxu0
  %2513 = vdwg.mxu0
  %s2514 = scalar_lea.vmem %s8, 128
  %v2515 = vld [vmem:[%s2514] sm:$0xff]
  %v2516 = vld [vmem:[%s2514 + $0x8] sm:$0xff]
  %v2517 = vld [vmem:[%s2514 + $0x10] sm:$0xff]
  %v2518 = vld [vmem:[%s2514 + $0x18] sm:$0xff]
  %2519 = vmatprep.subr.mxu0 0.0
  %2520 = vmatpush1.msra.mxu0 %v2515
  %2521 = vmatprep.subr.mxu0 0.0
  %2522 = vmatpush1.msra.mxu0 %v2516
  %2523 = vmatprep.subr.mxu0 0.0
  %2524 = vmatpush1.msra.mxu0 %v2517
  %2525 = vmatprep.subr.mxu0 0.0
  %2526 = vmatpush1.msra.mxu0 %v2518
  %2527 = vmatprep.subr.mxu0 0.0
  %2528 = vmatpush1.msra.mxu0 0.0
  %2529 = vmatprep.subr.mxu0 0.0
  %2530 = vmatpush1.msra.mxu0 0.0
  %2531 = vmatprep.subr.mxu0 0.0
  %2532 = vmatpush1.msra.mxu0 0.0
  %2533 = vmatprep.subr.mxu0 0.0
  %2534 = vmatpush1.msra.mxu0 0.0
  %2535 = vmatprep.subr.mxu0 0.0
  %2536 = vmatpush1.msra.mxu0 0.0
  %2537 = vmatprep.subr.mxu0 0.0
  %2538 = vmatpush1.msra.mxu0 0.0
  %2539 = vmatprep.subr.mxu0 0.0
  %2540 = vmatpush1.msra.mxu0 0.0
  %2541 = vmatprep.subr.mxu0 0.0
  %2542 = vmatpush1.msra.mxu0 0.0
  %2543 = vmatprep.subr.mxu0 0.0
  %2544 = vmatpush1.msra.mxu0 0.0
  %2545 = vmatprep.subr.mxu0 0.0
  %2546 = vmatpush1.msra.mxu0 0.0
  %2547 = vmatprep.subr.mxu0 0.0
  %2548 = vmatpush1.msra.mxu0 0.0
  %2549 = vmatprep.subr.mxu0 0.0
  %2550 = vmatpush1.msra.mxu0 0.0
  %2551 = vmatprep.subr.mxu0 0.0
  %2552 = vmatpush1.msra.mxu0 0.0
  %2553 = vmatprep.subr.mxu0 0.0
  %2554 = vmatpush1.msra.mxu0 0.0
  %2555 = vmatprep.subr.mxu0 0.0
  %2556 = vmatpush1.msra.mxu0 0.0
  %2557 = vmatprep.subr.mxu0 0.0
  %2558 = vmatpush1.msra.mxu0 0.0
  %2559 = vmatprep.subr.mxu0 0.0
  %2560 = vmatpush1.msra.mxu0 0.0
  %2561 = vmatprep.subr.mxu0 0.0
  %2562 = vmatpush1.msra.mxu0 0.0
  %2563 = vmatprep.subr.mxu0 0.0
  %2564 = vmatpush1.msra.mxu0 0.0
  %2565 = vmatprep.subr.mxu0 0.0
  %2566 = vmatpush1.msra.mxu0 0.0
  %2567 = vmatprep.subr.mxu0 0.0
  %2568 = vmatpush1.msra.mxu0 0.0
  %2569 = vmatprep.subr.mxu0 0.0
  %2570 = vmatpush1.msra.mxu0 0.0
  %2571 = vmatprep.subr.mxu0 0.0
  %2572 = vmatpush1.msra.mxu0 0.0
  %2573 = vmatprep.subr.mxu0 0.0
  %2574 = vmatpush1.msra.mxu0 0.0
  %2575 = vmatprep.subr.mxu0 0.0
  %2576 = vmatpush1.msra.mxu0 0.0
  %2577 = vmatprep.subr.mxu0 0.0
  %2578 = vmatpush1.msra.mxu0 0.0
  %2579 = vmatprep.subr.mxu0 0.0
  %2580 = vmatpush1.msra.mxu0 0.0
  %2581 = vmatprep.subr.mxu0 0.0
  %2582 = vmatpush1.msra.mxu0 0.0
  %2583 = vmatprep.mubr.f32.mxu0 0.0
  %2584 = vmatmul.mubr.f32.gmra.mrb[0].mxu0 %v2217
  %v2585 = vpop.f32.mrb[0].mxu0
  %v2586 = vadd.f32 0.0, %v2585
  %v2587 = vpop.f32.mrb[0].mxu0
  %2588 = vdwg.mxu0
  %s2589 = scalar_lea.vmem %s8, 160
  %v2590 = vld [vmem:[%s2589] sm:$0xff]
  %v2591 = vld [vmem:[%s2589 + $0x8] sm:$0xff]
  %v2592 = vld [vmem:[%s2589 + $0x10] sm:$0xff]
  %v2593 = vld [vmem:[%s2589 + $0x18] sm:$0xff]
  %2594 = vmatprep.subr.mxu0 0.0
  %2595 = vmatpush1.msra.mxu0 %v2590
  %2596 = vmatprep.subr.mxu0 0.0
  %2597 = vmatpush1.msra.mxu0 %v2591
  %2598 = vmatprep.subr.mxu0 0.0
  %2599 = vmatpush1.msra.mxu0 %v2592
  %2600 = vmatprep.subr.mxu0 0.0
  %2601 = vmatpush1.msra.mxu0 %v2593
  %2602 = vmatprep.subr.mxu0 0.0
  %2603 = vmatpush1.msra.mxu0 0.0
  %2604 = vmatprep.subr.mxu0 0.0
  %2605 = vmatpush1.msra.mxu0 0.0
  %2606 = vmatprep.subr.mxu0 0.0
  %2607 = vmatpush1.msra.mxu0 0.0
  %2608 = vmatprep.subr.mxu0 0.0
  %2609 = vmatpush1.msra.mxu0 0.0
  %2610 = vmatprep.subr.mxu0 0.0
  %2611 = vmatpush1.msra.mxu0 0.0
  %2612 = vmatprep.subr.mxu0 0.0
  %2613 = vmatpush1.msra.mxu0 0.0
  %2614 = vmatprep.subr.mxu0 0.0
  %2615 = vmatpush1.msra.mxu0 0.0
  %2616 = vmatprep.subr.mxu0 0.0
  %2617 = vmatpush1.msra.mxu0 0.0
  %2618 = vmatprep.subr.mxu0 0.0
  %2619 = vmatpush1.msra.mxu0 0.0
  %2620 = vmatprep.subr.mxu0 0.0
  %2621 = vmatpush1.msra.mxu0 0.0
  %2622 = vmatprep.subr.mxu0 0.0
  %2623 = vmatpush1.msra.mxu0 0.0
  %2624 = vmatprep.subr.mxu0 0.0
  %2625 = vmatpush1.msra.mxu0 0.0
  %2626 = vmatprep.subr.mxu0 0.0
  %2627 = vmatpush1.msra.mxu0 0.0
  %2628 = vmatprep.subr.mxu0 0.0
  %2629 = vmatpush1.msra.mxu0 0.0
  %2630 = vmatprep.subr.mxu0 0.0
  %2631 = vmatpush1.msra.mxu0 0.0
  %2632 = vmatprep.subr.mxu0 0.0
  %2633 = vmatpush1.msra.mxu0 0.0
  %2634 = vmatprep.subr.mxu0 0.0
  %2635 = vmatpush1.msra.mxu0 0.0
  %2636 = vmatprep.subr.mxu0 0.0
  %2637 = vmatpush1.msra.mxu0 0.0
  %2638 = vmatprep.subr.mxu0 0.0
  %2639 = vmatpush1.msra.mxu0 0.0
  %2640 = vmatprep.subr.mxu0 0.0
  %2641 = vmatpush1.msra.mxu0 0.0
  %2642 = vmatprep.subr.mxu0 0.0
  %2643 = vmatpush1.msra.mxu0 0.0
  %2644 = vmatprep.subr.mxu0 0.0
  %2645 = vmatpush1.msra.mxu0 0.0
  %2646 = vmatprep.subr.mxu0 0.0
  %2647 = vmatpush1.msra.mxu0 0.0
  %2648 = vmatprep.subr.mxu0 0.0
  %2649 = vmatpush1.msra.mxu0 0.0
  %2650 = vmatprep.subr.mxu0 0.0
  %2651 = vmatpush1.msra.mxu0 0.0
  %2652 = vmatprep.subr.mxu0 0.0
  %2653 = vmatpush1.msra.mxu0 0.0
  %2654 = vmatprep.subr.mxu0 0.0
  %2655 = vmatpush1.msra.mxu0 0.0
  %2656 = vmatprep.subr.mxu0 0.0
  %2657 = vmatpush1.msra.mxu0 0.0
  %2658 = vmatprep.mubr.f32.mxu0 0.0
  %2659 = vmatmul.mubr.f32.gmra.mrb[0].mxu0 %v2217
  %v2660 = vpop.f32.mrb[0].mxu0
  %v2661 = vadd.f32 0.0, %v2660
  %v2662 = vpop.f32.mrb[0].mxu0
  %2663 = vdwg.mxu0
  %s2664 = scalar_lea.vmem %s8, 192
  %v2665 = vld [vmem:[%s2664] sm:$0xff]
  %v2666 = vld [vmem:[%s2664 + $0x8] sm:$0xff]
  %v2667 = vld [vmem:[%s2664 + $0x10] sm:$0xff]
  %v2668 = vld [vmem:[%s2664 + $0x18] sm:$0xff]
  %2669 = vmatprep.subr.mxu0 0.0
  %2670 = vmatpush1.msra.mxu0 %v2665
  %2671 = vmatprep.subr.mxu0 0.0
  %2672 = vmatpush1.msra.mxu0 %v2666
  %2673 = vmatprep.subr.mxu0 0.0
  %2674 = vmatpush1.msra.mxu0 %v2667
  %2675 = vmatprep.subr.mxu0 0.0
  %2676 = vmatpush1.msra.mxu0 %v2668
  %2677 = vmatprep.subr.mxu0 0.0
  %2678 = vmatpush1.msra.mxu0 0.0
  %2679 = vmatprep.subr.mxu0 0.0
  %2680 = vmatpush1.msra.mxu0 0.0
  %2681 = vmatprep.subr.mxu0 0.0
  %2682 = vmatpush1.msra.mxu0 0.0
  %2683 = vmatprep.subr.mxu0 0.0
  %2684 = vmatpush1.msra.mxu0 0.0
  %2685 = vmatprep.subr.mxu0 0.0
  %2686 = vmatpush1.msra.mxu0 0.0
  %2687 = vmatprep.subr.mxu0 0.0
  %2688 = vmatpush1.msra.mxu0 0.0
  %2689 = vmatprep.subr.mxu0 0.0
  %2690 = vmatpush1.msra.mxu0 0.0
  %2691 = vmatprep.subr.mxu0 0.0
  %2692 = vmatpush1.msra.mxu0 0.0
  %2693 = vmatprep.subr.mxu0 0.0
  %2694 = vmatpush1.msra.mxu0 0.0
  %2695 = vmatprep.subr.mxu0 0.0
  %2696 = vmatpush1.msra.mxu0 0.0
  %2697 = vmatprep.subr.mxu0 0.0
  %2698 = vmatpush1.msra.mxu0 0.0
  %2699 = vmatprep.subr.mxu0 0.0
  %2700 = vmatpush1.msra.mxu0 0.0
  %2701 = vmatprep.subr.mxu0 0.0
  %2702 = vmatpush1.msra.mxu0 0.0
  %2703 = vmatprep.subr.mxu0 0.0
  %2704 = vmatpush1.msra.mxu0 0.0
  %2705 = vmatprep.subr.mxu0 0.0
  %2706 = vmatpush1.msra.mxu0 0.0
  %2707 = vmatprep.subr.mxu0 0.0
  %2708 = vmatpush1.msra.mxu0 0.0
  %2709 = vmatprep.subr.mxu0 0.0
  %2710 = vmatpush1.msra.mxu0 0.0
  %2711 = vmatprep.subr.mxu0 0.0
  %2712 = vmatpush1.msra.mxu0 0.0
  %2713 = vmatprep.subr.mxu0 0.0
  %2714 = vmatpush1.msra.mxu0 0.0
  %2715 = vmatprep.subr.mxu0 0.0
  %2716 = vmatpush1.msra.mxu0 0.0
  %2717 = vmatprep.subr.mxu0 0.0
  %2718 = vmatpush1.msra.mxu0 0.0
  %2719 = vmatprep.subr.mxu0 0.0
  %2720 = vmatpush1.msra.mxu0 0.0
  %2721 = vmatprep.subr.mxu0 0.0
  %2722 = vmatpush1.msra.mxu0 0.0
  %2723 = vmatprep.subr.mxu0 0.0
  %2724 = vmatpush1.msra.mxu0 0.0
  %2725 = vmatprep.subr.mxu0 0.0
  %2726 = vmatpush1.msra.mxu0 0.0
  %2727 = vmatprep.subr.mxu0 0.0
  %2728 = vmatpush1.msra.mxu0 0.0
  %2729 = vmatprep.subr.mxu0 0.0
  %2730 = vmatpush1.msra.mxu0 0.0
  %2731 = vmatprep.subr.mxu0 0.0
  %2732 = vmatpush1.msra.mxu0 0.0
  %2733 = vmatprep.mubr.f32.mxu0 0.0
  %2734 = vmatmul.mubr.f32.gmra.mrb[0].mxu0 %v2217
  %v2735 = vpop.f32.mrb[0].mxu0
  %v2736 = vadd.f32 0.0, %v2735
  %v2737 = vpop.f32.mrb[0].mxu0
  %2738 = vdwg.mxu0
  %s2739 = scalar_lea.vmem %s8, 224
  %v2740 = vld [vmem:[%s2739] sm:$0xff]
  %v2741 = vld [vmem:[%s2739 + $0x8] sm:$0xff]
  %v2742 = vld [vmem:[%s2739 + $0x10] sm:$0xff]
  %v2743 = vld [vmem:[%s2739 + $0x18] sm:$0xff]
  %2744 = vmatprep.subr.mxu0 0.0
  %2745 = vmatpush1.msra.mxu0 %v2740
  %2746 = vmatprep.subr.mxu0 0.0
  %2747 = vmatpush1.msra.mxu0 %v2741
  %2748 = vmatprep.subr.mxu0 0.0
  %2749 = vmatpush1.msra.mxu0 %v2742
  %2750 = vmatprep.subr.mxu0 0.0
  %2751 = vmatpush1.msra.mxu0 %v2743
  %2752 = vmatprep.subr.mxu0 0.0
  %2753 = vmatpush1.msra.mxu0 0.0
  %2754 = vmatprep.subr.mxu0 0.0
  %2755 = vmatpush1.msra.mxu0 0.0
  %2756 = vmatprep.subr.mxu0 0.0
  %2757 = vmatpush1.msra.mxu0 0.0
  %2758 = vmatprep.subr.mxu0 0.0
  %2759 = vmatpush1.msra.mxu0 0.0
  %2760 = vmatprep.subr.mxu0 0.0
  %2761 = vmatpush1.msra.mxu0 0.0
  %2762 = vmatprep.subr.mxu0 0.0
  %2763 = vmatpush1.msra.mxu0 0.0
  %2764 = vmatprep.subr.mxu0 0.0
  %2765 = vmatpush1.msra.mxu0 0.0
  %2766 = vmatprep.subr.mxu0 0.0
  %2767 = vmatpush1.msra.mxu0 0.0
  %2768 = vmatprep.subr.mxu0 0.0
  %2769 = vmatpush1.msra.mxu0 0.0
  %2770 = vmatprep.subr.mxu0 0.0
  %2771 = vmatpush1.msra.mxu0 0.0
  %2772 = vmatprep.subr.mxu0 0.0
  %2773 = vmatpush1.msra.mxu0 0.0
  %2774 = vmatprep.subr.mxu0 0.0
  %2775 = vmatpush1.msra.mxu0 0.0
  %2776 = vmatprep.subr.mxu0 0.0
  %2777 = vmatpush1.msra.mxu0 0.0
  %2778 = vmatprep.subr.mxu0 0.0
  %2779 = vmatpush1.msra.mxu0 0.0
  %2780 = vmatprep.subr.mxu0 0.0
  %2781 = vmatpush1.msra.mxu0 0.0
  %2782 = vmatprep.subr.mxu0 0.0
  %2783 = vmatpush1.msra.mxu0 0.0
  %2784 = vmatprep.subr.mxu0 0.0
  %2785 = vmatpush1.msra.mxu0 0.0
  %2786 = vmatprep.subr.mxu0 0.0
  %2787 = vmatpush1.msra.mxu0 0.0
  %2788 = vmatprep.subr.mxu0 0.0
  %2789 = vmatpush1.msra.mxu0 0.0
  %2790 = vmatprep.subr.mxu0 0.0
  %2791 = vmatpush1.msra.mxu0 0.0
  %2792 = vmatprep.subr.mxu0 0.0
  %2793 = vmatpush1.msra.mxu0 0.0
  %2794 = vmatprep.subr.mxu0 0.0
  %2795 = vmatpush1.msra.mxu0 0.0
  %2796 = vmatprep.subr.mxu0 0.0
  %2797 = vmatpush1.msra.mxu0 0.0
  %2798 = vmatprep.subr.mxu0 0.0
  %2799 = vmatpush1.msra.mxu0 0.0
  %2800 = vmatprep.subr.mxu0 0.0
  %2801 = vmatpush1.msra.mxu0 0.0
  %2802 = vmatprep.subr.mxu0 0.0
  %2803 = vmatpush1.msra.mxu0 0.0
  %2804 = vmatprep.subr.mxu0 0.0
  %2805 = vmatpush1.msra.mxu0 0.0
  %2806 = vmatprep.subr.mxu0 0.0
  %2807 = vmatpush1.msra.mxu0 0.0
  %2808 = vmatprep.mubr.f32.mxu0 0.0
  %2809 = vmatmul.mubr.f32.gmra.mrb[0].mxu0 %v2217
  %v2810 = vpop.f32.mrb[0].mxu0
  %v2811 = vadd.f32 0.0, %v2810
  %v2812 = vpop.f32.mrb[0].mxu0
  %2813 = vdwg.mxu0
  %s2814 = scalar_lea.vmem %s9, 64
  %v2815 = vld [vmem:[%s2814] sm:$0xff]
  %v2816 = vld [vmem:[%s2814 + $0x8] sm:$0xff]
  %v2817 = vld [vmem:[%s2814 + $0x10] sm:$0xff]
  %v2818 = vld [vmem:[%s2814 + $0x18] sm:$0xff]
  %2819 = vmatprep.subr.mxu0 0.0
  %2820 = vmatpush1.msra.mxu0 %v2815
  %2821 = vmatprep.subr.mxu0 0.0
  %2822 = vmatpush1.msra.mxu0 %v2816
  %2823 = vmatprep.subr.mxu0 0.0
  %2824 = vmatpush1.msra.mxu0 %v2817
  %2825 = vmatprep.subr.mxu0 0.0
  %2826 = vmatpush1.msra.mxu0 %v2818
  %2827 = vmatprep.subr.mxu0 0.0
  %2828 = vmatpush1.msra.mxu0 0.0
  %2829 = vmatprep.subr.mxu0 0.0
  %2830 = vmatpush1.msra.mxu0 0.0
  %2831 = vmatprep.subr.mxu0 0.0
  %2832 = vmatpush1.msra.mxu0 0.0
  %2833 = vmatprep.subr.mxu0 0.0
  %2834 = vmatpush1.msra.mxu0 0.0
  %2835 = vmatprep.subr.mxu0 0.0
  %2836 = vmatpush1.msra.mxu0 0.0
  %2837 = vmatprep.subr.mxu0 0.0
  %2838 = vmatpush1.msra.mxu0 0.0
  %2839 = vmatprep.subr.mxu0 0.0
  %2840 = vmatpush1.msra.mxu0 0.0
  %2841 = vmatprep.subr.mxu0 0.0
  %2842 = vmatpush1.msra.mxu0 0.0
  %2843 = vmatprep.subr.mxu0 0.0
  %2844 = vmatpush1.msra.mxu0 0.0
  %2845 = vmatprep.subr.mxu0 0.0
  %2846 = vmatpush1.msra.mxu0 0.0
  %2847 = vmatprep.subr.mxu0 0.0
  %2848 = vmatpush1.msra.mxu0 0.0
  %2849 = vmatprep.subr.mxu0 0.0
  %2850 = vmatpush1.msra.mxu0 0.0
  %2851 = vmatprep.subr.mxu0 0.0
  %2852 = vmatpush1.msra.mxu0 0.0
  %2853 = vmatprep.subr.mxu0 0.0
  %2854 = vmatpush1.msra.mxu0 0.0
  %2855 = vmatprep.subr.mxu0 0.0
  %2856 = vmatpush1.msra.mxu0 0.0
  %2857 = vmatprep.subr.mxu0 0.0
  %2858 = vmatpush1.msra.mxu0 0.0
  %2859 = vmatprep.subr.mxu0 0.0
  %2860 = vmatpush1.msra.mxu0 0.0
  %2861 = vmatprep.subr.mxu0 0.0
  %2862 = vmatpush1.msra.mxu0 0.0
  %2863 = vmatprep.subr.mxu0 0.0
  %2864 = vmatpush1.msra.mxu0 0.0
  %2865 = vmatprep.subr.mxu0 0.0
  %2866 = vmatpush1.msra.mxu0 0.0
  %2867 = vmatprep.subr.mxu0 0.0
  %2868 = vmatpush1.msra.mxu0 0.0
  %2869 = vmatprep.subr.mxu0 0.0
  %2870 = vmatpush1.msra.mxu0 0.0
  %2871 = vmatprep.subr.mxu0 0.0
  %2872 = vmatpush1.msra.mxu0 0.0
  %2873 = vmatprep.subr.mxu0 0.0
  %2874 = vmatpush1.msra.mxu0 0.0
  %2875 = vmatprep.subr.mxu0 0.0
  %2876 = vmatpush1.msra.mxu0 0.0
  %2877 = vmatprep.subr.mxu0 0.0
  %2878 = vmatpush1.msra.mxu0 0.0
  %2879 = vmatprep.subr.mxu0 0.0
  %2880 = vmatpush1.msra.mxu0 0.0
  %2881 = vmatprep.subr.mxu0 0.0
  %2882 = vmatpush1.msra.mxu0 0.0
  %2883 = vmatprep.mubr.f32.mxu0 0.0
  %2884 = vmatmul.mubr.f32.gmra.mrb[0].mxu0 %v2217
  %v2885 = vpop.f32.mrb[0].mxu0
  %v2886 = vadd.f32 0.0, %v2885
  %v2887 = vpop.f32.mrb[0].mxu0
  %2888 = vdwg.mxu0
  %s2889 = scalar_lea.vmem %s9, 96
  %v2890 = vld [vmem:[%s2889] sm:$0xff]
  %v2891 = vld [vmem:[%s2889 + $0x8] sm:$0xff]
  %v2892 = vld [vmem:[%s2889 + $0x10] sm:$0xff]
  %v2893 = vld [vmem:[%s2889 + $0x18] sm:$0xff]
  %2894 = vmatprep.subr.mxu0 0.0
  %2895 = vmatpush1.msra.mxu0 %v2890
  %2896 = vmatprep.subr.mxu0 0.0
  %2897 = vmatpush1.msra.mxu0 %v2891
  %2898 = vmatprep.subr.mxu0 0.0
  %2899 = vmatpush1.msra.mxu0 %v2892
  %2900 = vmatprep.subr.mxu0 0.0
  %2901 = vmatpush1.msra.mxu0 %v2893
  %2902 = vmatprep.subr.mxu0 0.0
  %2903 = vmatpush1.msra.mxu0 0.0
  %2904 = vmatprep.subr.mxu0 0.0
  %2905 = vmatpush1.msra.mxu0 0.0
  %2906 = vmatprep.subr.mxu0 0.0
  %2907 = vmatpush1.msra.mxu0 0.0
  %2908 = vmatprep.subr.mxu0 0.0
  %2909 = vmatpush1.msra.mxu0 0.0
  %2910 = vmatprep.subr.mxu0 0.0
  %2911 = vmatpush1.msra.mxu0 0.0
  %2912 = vmatprep.subr.mxu0 0.0
  %2913 = vmatpush1.msra.mxu0 0.0
  %2914 = vmatprep.subr.mxu0 0.0
  %2915 = vmatpush1.msra.mxu0 0.0
  %2916 = vmatprep.subr.mxu0 0.0
  %2917 = vmatpush1.msra.mxu0 0.0
  %2918 = vmatprep.subr.mxu0 0.0
  %2919 = vmatpush1.msra.mxu0 0.0
  %2920 = vmatprep.subr.mxu0 0.0
  %2921 = vmatpush1.msra.mxu0 0.0
  %2922 = vmatprep.subr.mxu0 0.0
  %2923 = vmatpush1.msra.mxu0 0.0
  %2924 = vmatprep.subr.mxu0 0.0
  %2925 = vmatpush1.msra.mxu0 0.0
  %2926 = vmatprep.subr.mxu0 0.0
  %2927 = vmatpush1.msra.mxu0 0.0
  %2928 = vmatprep.subr.mxu0 0.0
  %2929 = vmatpush1.msra.mxu0 0.0
  %2930 = vmatprep.subr.mxu0 0.0
  %2931 = vmatpush1.msra.mxu0 0.0
  %2932 = vmatprep.subr.mxu0 0.0
  %2933 = vmatpush1.msra.mxu0 0.0
  %2934 = vmatprep.subr.mxu0 0.0
  %2935 = vmatpush1.msra.mxu0 0.0
  %2936 = vmatprep.subr.mxu0 0.0
  %2937 = vmatpush1.msra.mxu0 0.0
  %2938 = vmatprep.subr.mxu0 0.0
  %2939 = vmatpush1.msra.mxu0 0.0
  %2940 = vmatprep.subr.mxu0 0.0
  %2941 = vmatpush1.msra.mxu0 0.0
  %2942 = vmatprep.subr.mxu0 0.0
  %2943 = vmatpush1.msra.mxu0 0.0
  %2944 = vmatprep.subr.mxu0 0.0
  %2945 = vmatpush1.msra.mxu0 0.0
  %2946 = vmatprep.subr.mxu0 0.0
  %2947 = vmatpush1.msra.mxu0 0.0
  %2948 = vmatprep.subr.mxu0 0.0
  %2949 = vmatpush1.msra.mxu0 0.0
  %2950 = vmatprep.subr.mxu0 0.0
  %2951 = vmatpush1.msra.mxu0 0.0
  %2952 = vmatprep.subr.mxu0 0.0
  %2953 = vmatpush1.msra.mxu0 0.0
  %2954 = vmatprep.subr.mxu0 0.0
  %2955 = vmatpush1.msra.mxu0 0.0
  %2956 = vmatprep.subr.mxu0 0.0
  %2957 = vmatpush1.msra.mxu0 0.0
  %2958 = vmatprep.mubr.f32.mxu0 0.0
  %2959 = vmatmul.mubr.f32.gmra.mrb[0].mxu0 %v2217
  %v2960 = vpop.f32.mrb[0].mxu0
  %v2961 = vadd.f32 0.0, %v2960
  %v2962 = vpop.f32.mrb[0].mxu0
  %2963 = vdwg.mxu0
  %s2964 = scalar_lea.vmem %s10, 64
  %v2965 = vld [vmem:[%s2964] sm:$0xff]
  %v2966 = vld [vmem:[%s2964 + $0x8] sm:$0xff]
  %v2967 = vld [vmem:[%s2964 + $0x10] sm:$0xff]
  %v2968 = vld [vmem:[%s2964 + $0x18] sm:$0xff]
  %2969 = vmatprep.subr.mxu0 0.0
  %2970 = vmatpush1.msra.mxu0 %v2965
  %2971 = vmatprep.subr.mxu0 0.0
  %2972 = vmatpush1.msra.mxu0 %v2966
  %2973 = vmatprep.subr.mxu0 0.0
  %2974 = vmatpush1.msra.mxu0 %v2967
  %2975 = vmatprep.subr.mxu0 0.0
  %2976 = vmatpush1.msra.mxu0 %v2968
  %2977 = vmatprep.subr.mxu0 0.0
  %2978 = vmatpush1.msra.mxu0 0.0
  %2979 = vmatprep.subr.mxu0 0.0
  %2980 = vmatpush1.msra.mxu0 0.0
  %2981 = vmatprep.subr.mxu0 0.0
  %2982 = vmatpush1.msra.mxu0 0.0
  %2983 = vmatprep.subr.mxu0 0.0
  %2984 = vmatpush1.msra.mxu0 0.0
  %2985 = vmatprep.subr.mxu0 0.0
  %2986 = vmatpush1.msra.mxu0 0.0
  %2987 = vmatprep.subr.mxu0 0.0
  %2988 = vmatpush1.msra.mxu0 0.0
  %2989 = vmatprep.subr.mxu0 0.0
  %2990 = vmatpush1.msra.mxu0 0.0
  %2991 = vmatprep.subr.mxu0 0.0
  %2992 = vmatpush1.msra.mxu0 0.0
  %2993 = vmatprep.subr.mxu0 0.0
  %2994 = vmatpush1.msra.mxu0 0.0
  %2995 = vmatprep.subr.mxu0 0.0
  %2996 = vmatpush1.msra.mxu0 0.0
  %2997 = vmatprep.subr.mxu0 0.0
  %2998 = vmatpush1.msra.mxu0 0.0
  %2999 = vmatprep.subr.mxu0 0.0
  %3000 = vmatpush1.msra.mxu0 0.0
  %3001 = vmatprep.subr.mxu0 0.0
  %3002 = vmatpush1.msra.mxu0 0.0
  %3003 = vmatprep.subr.mxu0 0.0
  %3004 = vmatpush1.msra.mxu0 0.0
  %3005 = vmatprep.subr.mxu0 0.0
  %3006 = vmatpush1.msra.mxu0 0.0
  %3007 = vmatprep.subr.mxu0 0.0
  %3008 = vmatpush1.msra.mxu0 0.0
  %3009 = vmatprep.subr.mxu0 0.0
  %3010 = vmatpush1.msra.mxu0 0.0
  %3011 = vmatprep.subr.mxu0 0.0
  %3012 = vmatpush1.msra.mxu0 0.0
  %3013 = vmatprep.subr.mxu0 0.0
  %3014 = vmatpush1.msra.mxu0 0.0
  %3015 = vmatprep.subr.mxu0 0.0
  %3016 = vmatpush1.msra.mxu0 0.0
  %3017 = vmatprep.subr.mxu0 0.0
  %3018 = vmatpush1.msra.mxu0 0.0
  %3019 = vmatprep.subr.mxu0 0.0
  %3020 = vmatpush1.msra.mxu0 0.0
  %3021 = vmatprep.subr.mxu0 0.0
  %3022 = vmatpush1.msra.mxu0 0.0
  %3023 = vmatprep.subr.mxu0 0.0
  %3024 = vmatpush1.msra.mxu0 0.0
  %3025 = vmatprep.subr.mxu0 0.0
  %3026 = vmatpush1.msra.mxu0 0.0
  %3027 = vmatprep.subr.mxu0 0.0
  %3028 = vmatpush1.msra.mxu0 0.0
  %3029 = vmatprep.subr.mxu0 0.0
  %3030 = vmatpush1.msra.mxu0 0.0
  %3031 = vmatprep.subr.mxu0 0.0
  %3032 = vmatpush1.msra.mxu0 0.0
  %3033 = vmatprep.mubr.f32.mxu0 0.0
  %3034 = vmatmul.mubr.f32.gmra.mrb[0].mxu0 %v2217
  %v3035 = vpop.f32.mrb[0].mxu0
  %v3036 = vadd.f32 0.0, %v3035
  %v3037 = vpop.f32.mrb[0].mxu0
  %3038 = vdwg.mxu0
  %s3039 = scalar_lea.vmem %s10, 96
  %v3040 = vld [vmem:[%s3039] sm:$0xff]
  %v3041 = vld [vmem:[%s3039 + $0x8] sm:$0xff]
  %v3042 = vld [vmem:[%s3039 + $0x10] sm:$0xff]
  %v3043 = vld [vmem:[%s3039 + $0x18] sm:$0xff]
  %3044 = vmatprep.subr.mxu0 0.0
  %3045 = vmatpush1.msra.mxu0 %v3040
  %3046 = vmatprep.subr.mxu0 0.0
  %3047 = vmatpush1.msra.mxu0 %v3041
  %3048 = vmatprep.subr.mxu0 0.0
  %3049 = vmatpush1.msra.mxu0 %v3042
  %3050 = vmatprep.subr.mxu0 0.0
  %3051 = vmatpush1.msra.mxu0 %v3043
  %3052 = vmatprep.subr.mxu0 0.0
  %3053 = vmatpush1.msra.mxu0 0.0
  %3054 = vmatprep.subr.mxu0 0.0
  %3055 = vmatpush1.msra.mxu0 0.0
  %3056 = vmatprep.subr.mxu0 0.0
  %3057 = vmatpush1.msra.mxu0 0.0
  %3058 = vmatprep.subr.mxu0 0.0
  %3059 = vmatpush1.msra.mxu0 0.0
  %3060 = vmatprep.subr.mxu0 0.0
  %3061 = vmatpush1.msra.mxu0 0.0
  %3062 = vmatprep.subr.mxu0 0.0
  %3063 = vmatpush1.msra.mxu0 0.0
  %3064 = vmatprep.subr.mxu0 0.0
  %3065 = vmatpush1.msra.mxu0 0.0
  %3066 = vmatprep.subr.mxu0 0.0
  %3067 = vmatpush1.msra.mxu0 0.0
  %3068 = vmatprep.subr.mxu0 0.0
  %3069 = vmatpush1.msra.mxu0 0.0
  %3070 = vmatprep.subr.mxu0 0.0
  %3071 = vmatpush1.msra.mxu0 0.0
  %3072 = vmatprep.subr.mxu0 0.0
  %3073 = vmatpush1.msra.mxu0 0.0
  %3074 = vmatprep.subr.mxu0 0.0
  %3075 = vmatpush1.msra.mxu0 0.0
  %3076 = vmatprep.subr.mxu0 0.0
  %3077 = vmatpush1.msra.mxu0 0.0
  %3078 = vmatprep.subr.mxu0 0.0
  %3079 = vmatpush1.msra.mxu0 0.0
  %3080 = vmatprep.subr.mxu0 0.0
  %3081 = vmatpush1.msra.mxu0 0.0
  %3082 = vmatprep.subr.mxu0 0.0
  %3083 = vmatpush1.msra.mxu0 0.0
  %3084 = vmatprep.subr.mxu0 0.0
  %3085 = vmatpush1.msra.mxu0 0.0
  %3086 = vmatprep.subr.mxu0 0.0
  %3087 = vmatpush1.msra.mxu0 0.0
  %3088 = vmatprep.subr.mxu0 0.0
  %3089 = vmatpush1.msra.mxu0 0.0
  %3090 = vmatprep.subr.mxu0 0.0
  %3091 = vmatpush1.msra.mxu0 0.0
  %3092 = vmatprep.subr.mxu0 0.0
  %3093 = vmatpush1.msra.mxu0 0.0
  %3094 = vmatprep.subr.mxu0 0.0
  %3095 = vmatpush1.msra.mxu0 0.0
  %3096 = vmatprep.subr.mxu0 0.0
  %3097 = vmatpush1.msra.mxu0 0.0
  %3098 = vmatprep.subr.mxu0 0.0
  %3099 = vmatpush1.msra.mxu0 0.0
  %3100 = vmatprep.subr.mxu0 0.0
  %3101 = vmatpush1.msra.mxu0 0.0
  %3102 = vmatprep.subr.mxu0 0.0
  %3103 = vmatpush1.msra.mxu0 0.0
  %3104 = vmatprep.subr.mxu0 0.0
  %3105 = vmatpush1.msra.mxu0 0.0
  %3106 = vmatprep.subr.mxu0 0.0
  %3107 = vmatpush1.msra.mxu0 0.0
  %3108 = vmatprep.mubr.f32.mxu0 0.0
  %3109 = vmatmul.mubr.f32.gmra.mrb[0].mxu0 %v2217
  %v3110 = vpop.f32.mrb[0].mxu0
  %v3111 = vadd.f32 0.0, %v3110
  %v3112 = vpop.f32.mrb[0].mxu0
  %3113 = vdwg.mxu0
  %s3114 = scalar_lea.vmem %s11, 64
  %v3115 = vld [vmem:[%s3114] sm:$0xff]
  %v3116 = vld [vmem:[%s3114 + $0x8] sm:$0xff]
  %v3117 = vld [vmem:[%s3114 + $0x10] sm:$0xff]
  %v3118 = vld [vmem:[%s3114 + $0x18] sm:$0xff]
  %3119 = vmatprep.subr.mxu0 0.0
  %3120 = vmatpush1.msra.mxu0 %v3115
  %3121 = vmatprep.subr.mxu0 0.0
  %3122 = vmatpush1.msra.mxu0 %v3116
  %3123 = vmatprep.subr.mxu0 0.0
  %3124 = vmatpush1.msra.mxu0 %v3117
  %3125 = vmatprep.subr.mxu0 0.0
  %3126 = vmatpush1.msra.mxu0 %v3118
  %3127 = vmatprep.subr.mxu0 0.0
  %3128 = vmatpush1.msra.mxu0 0.0
  %3129 = vmatprep.subr.mxu0 0.0
  %3130 = vmatpush1.msra.mxu0 0.0
  %3131 = vmatprep.subr.mxu0 0.0
  %3132 = vmatpush1.msra.mxu0 0.0
  %3133 = vmatprep.subr.mxu0 0.0
  %3134 = vmatpush1.msra.mxu0 0.0
  %3135 = vmatprep.subr.mxu0 0.0
  %3136 = vmatpush1.msra.mxu0 0.0
  %3137 = vmatprep.subr.mxu0 0.0
  %3138 = vmatpush1.msra.mxu0 0.0
  %3139 = vmatprep.subr.mxu0 0.0
  %3140 = vmatpush1.msra.mxu0 0.0
  %3141 = vmatprep.subr.mxu0 0.0
  %3142 = vmatpush1.msra.mxu0 0.0
  %3143 = vmatprep.subr.mxu0 0.0
  %3144 = vmatpush1.msra.mxu0 0.0
  %3145 = vmatprep.subr.mxu0 0.0
  %3146 = vmatpush1.msra.mxu0 0.0
  %3147 = vmatprep.subr.mxu0 0.0
  %3148 = vmatpush1.msra.mxu0 0.0
  %3149 = vmatprep.subr.mxu0 0.0
  %3150 = vmatpush1.msra.mxu0 0.0
  %3151 = vmatprep.subr.mxu0 0.0
  %3152 = vmatpush1.msra.mxu0 0.0
  %3153 = vmatprep.subr.mxu0 0.0
  %3154 = vmatpush1.msra.mxu0 0.0
  %3155 = vmatprep.subr.mxu0 0.0
  %3156 = vmatpush1.msra.mxu0 0.0
  %3157 = vmatprep.subr.mxu0 0.0
  %3158 = vmatpush1.msra.mxu0 0.0
  %3159 = vmatprep.subr.mxu0 0.0
  %3160 = vmatpush1.msra.mxu0 0.0
  %3161 = vmatprep.subr.mxu0 0.0
  %3162 = vmatpush1.msra.mxu0 0.0
  %3163 = vmatprep.subr.mxu0 0.0
  %3164 = vmatpush1.msra.mxu0 0.0
  %3165 = vmatprep.subr.mxu0 0.0
  %3166 = vmatpush1.msra.mxu0 0.0
  %3167 = vmatprep.subr.mxu0 0.0
  %3168 = vmatpush1.msra.mxu0 0.0
  %3169 = vmatprep.subr.mxu0 0.0
  %3170 = vmatpush1.msra.mxu0 0.0
  %3171 = vmatprep.subr.mxu0 0.0
  %3172 = vmatpush1.msra.mxu0 0.0
  %3173 = vmatprep.subr.mxu0 0.0
  %3174 = vmatpush1.msra.mxu0 0.0
  %3175 = vmatprep.subr.mxu0 0.0
  %3176 = vmatpush1.msra.mxu0 0.0
  %3177 = vmatprep.subr.mxu0 0.0
  %3178 = vmatpush1.msra.mxu0 0.0
  %3179 = vmatprep.subr.mxu0 0.0
  %3180 = vmatpush1.msra.mxu0 0.0
  %3181 = vmatprep.subr.mxu0 0.0
  %3182 = vmatpush1.msra.mxu0 0.0
  %3183 = vmatprep.mubr.f32.mxu0 0.0
  %3184 = vmatmul.mubr.f32.gmra.mrb[0].mxu0 %v2217
  %v3185 = vpop.f32.mrb[0].mxu0
  %v3186 = vadd.f32 0.0, %v3185
  %v3187 = vpop.f32.mrb[0].mxu0
  %3188 = vdwg.mxu0
  %s3189 = scalar_lea.vmem %s11, 96
  %v3190 = vld [vmem:[%s3189] sm:$0xff]
  %v3191 = vld [vmem:[%s3189 + $0x8] sm:$0xff]
  %v3192 = vld [vmem:[%s3189 + $0x10] sm:$0xff]
  %v3193 = vld [vmem:[%s3189 + $0x18] sm:$0xff]
  %3194 = vmatprep.subr.mxu0 0.0
  %3195 = vmatpush1.msra.mxu0 %v3190
  %3196 = vmatprep.subr.mxu0 0.0
  %3197 = vmatpush1.msra.mxu0 %v3191
  %3198 = vmatprep.subr.mxu0 0.0
  %3199 = vmatpush1.msra.mxu0 %v3192
  %3200 = vmatprep.subr.mxu0 0.0
  %3201 = vmatpush1.msra.mxu0 %v3193
  %3202 = vmatprep.subr.mxu0 0.0
  %3203 = vmatpush1.msra.mxu0 0.0
  %3204 = vmatprep.subr.mxu0 0.0
  %3205 = vmatpush1.msra.mxu0 0.0
  %3206 = vmatprep.subr.mxu0 0.0
  %3207 = vmatpush1.msra.mxu0 0.0
  %3208 = vmatprep.subr.mxu0 0.0
  %3209 = vmatpush1.msra.mxu0 0.0
  %3210 = vmatprep.subr.mxu0 0.0
  %3211 = vmatpush1.msra.mxu0 0.0
  %3212 = vmatprep.subr.mxu0 0.0
  %3213 = vmatpush1.msra.mxu0 0.0
  %3214 = vmatprep.subr.mxu0 0.0
  %3215 = vmatpush1.msra.mxu0 0.0
  %3216 = vmatprep.subr.mxu0 0.0
  %3217 = vmatpush1.msra.mxu0 0.0
  %3218 = vmatprep.subr.mxu0 0.0
  %3219 = vmatpush1.msra.mxu0 0.0
  %3220 = vmatprep.subr.mxu0 0.0
  %3221 = vmatpush1.msra.mxu0 0.0
  %3222 = vmatprep.subr.mxu0 0.0
  %3223 = vmatpush1.msra.mxu0 0.0
  %3224 = vmatprep.subr.mxu0 0.0
  %3225 = vmatpush1.msra.mxu0 0.0
  %3226 = vmatprep.subr.mxu0 0.0
  %3227 = vmatpush1.msra.mxu0 0.0
  %3228 = vmatprep.subr.mxu0 0.0
  %3229 = vmatpush1.msra.mxu0 0.0
  %3230 = vmatprep.subr.mxu0 0.0
  %3231 = vmatpush1.msra.mxu0 0.0
  %3232 = vmatprep.subr.mxu0 0.0
  %3233 = vmatpush1.msra.mxu0 0.0
  %3234 = vmatprep.subr.mxu0 0.0
  %3235 = vmatpush1.msra.mxu0 0.0
  %3236 = vmatprep.subr.mxu0 0.0
  %3237 = vmatpush1.msra.mxu0 0.0
  %3238 = vmatprep.subr.mxu0 0.0
  %3239 = vmatpush1.msra.mxu0 0.0
  %3240 = vmatprep.subr.mxu0 0.0
  %3241 = vmatpush1.msra.mxu0 0.0
  %3242 = vmatprep.subr.mxu0 0.0
  %3243 = vmatpush1.msra.mxu0 0.0
  %3244 = vmatprep.subr.mxu0 0.0
  %3245 = vmatpush1.msra.mxu0 0.0
  %3246 = vmatprep.subr.mxu0 0.0
  %3247 = vmatpush1.msra.mxu0 0.0
  %3248 = vmatprep.subr.mxu0 0.0
  %3249 = vmatpush1.msra.mxu0 0.0
  %3250 = vmatprep.subr.mxu0 0.0
  %3251 = vmatpush1.msra.mxu0 0.0
  %3252 = vmatprep.subr.mxu0 0.0
  %3253 = vmatpush1.msra.mxu0 0.0
  %3254 = vmatprep.subr.mxu0 0.0
  %3255 = vmatpush1.msra.mxu0 0.0
  %3256 = vmatprep.subr.mxu0 0.0
  %3257 = vmatpush1.msra.mxu0 0.0
  %3258 = vmatprep.mubr.f32.mxu0 0.0
  %3259 = vmatmul.mubr.f32.gmra.mrb[0].mxu0 %v2217
  %v3260 = vpop.f32.mrb[0].mxu0
  %v3261 = vadd.f32 0.0, %v3260
  %v3262 = vpop.f32.mrb[0].mxu0
  %3263 = vdwg.mxu0
  %v3264 = vmul.f32 %v2286, %v63
  %v3265 = vmul.f32 %v2361, %v64
  %v3266 = vmul.f32 %v2436, %v65
  %v3267 = vmul.f32 %v2511, %v66
  %v3268 = vmul.f32 %v2586, %v67
  %v3269 = vmul.f32 %v2661, %v68
  %v3270 = vmul.f32 %v2736, %v69
  %v3271 = vmul.f32 %v2811, %v70
  %v3272 = vadd.f32 %v3264, %v3268
  %v3273 = vadd.f32 %v3265, %v3269
  %v3274 = vadd.f32 %v3266, %v3270
  %v3275 = vadd.f32 %v3267, %v3271
  %v3276 = vmul.f32 %v2886, %v71
  %v3277 = vmul.f32 %v2961, %v72
  %v3278 = vmul.f32 %v3036, %v73
  %v3279 = vmul.f32 %v3111, %v74
  %v3280 = vadd.f32 %v3276, %v3278
  %v3281 = vadd.f32 %v3277, %v3279
  %v3283 = vsel %vm1167, %v3272, 0
  %v3286 = vsel %vm1167, %v3273, 0
  %v3289 = vsel %vm1167, %v3280, 0
  %3291 = vmatprep.subr.mxu0 0.0
  %3292 = vmatpush1.xpose.msra.mxu0 %v3289
  %3293 = vmatprep.subr.mxu0 0.0
  %3294 = vmatpush1.xpose.msra.mxu0 0.0
  %3295 = vmatprep.subr.mxu0 0.0
  %3296 = vmatpush1.xpose.msra.mxu0 0.0
  %3297 = vmatprep.subr.mxu0 0.0
  %3298 = vmatpush1.xpose.msra.mxu0 0.0
  %3299 = vmatprep.subr.mxu0 0.0
  %3300 = vmatpush1.xpose.msra.mxu0 0.0
  %3301 = vmatprep.subr.mxu0 0.0
  %3302 = vmatpush1.xpose.msra.mxu0 0.0
  %3303 = vmatprep.subr.mxu0 0.0
  %3304 = vmatpush1.xpose.msra.mxu0 0.0
  %3305 = vmatprep.subr.mxu0 0.0
  %3306 = vmatpush1.xpose.msra.mxu0 0.0
  %3307 = vmatprep.subr.mxu0 0.0
  %3308 = vmatpush1.xpose.msra.mxu0 0.0
  %3309 = vmatprep.subr.mxu0 0.0
  %3310 = vmatpush1.xpose.msra.mxu0 0.0
  %3311 = vmatprep.subr.mxu0 0.0
  %3312 = vmatpush1.xpose.msra.mxu0 0.0
  %3313 = vmatprep.subr.mxu0 0.0
  %3314 = vmatpush1.xpose.msra.mxu0 0.0
  %3315 = vmatprep.subr.mxu0 0.0
  %3316 = vmatpush1.xpose.msra.mxu0 0.0
  %3317 = vmatprep.subr.mxu0 0.0
  %3318 = vmatpush1.xpose.msra.mxu0 0.0
  %3319 = vmatprep.subr.mxu0 0.0
  %3320 = vmatpush1.xpose.msra.mxu0 0.0
  %3321 = vmatprep.subr.mxu0 0.0
  %3322 = vmatpush1.xpose.msra.mxu0 0.0
  %3323 = vmatprep.subr.mxu0 0.0
  %3324 = vmatpush1.xpose.msra.mxu0 0.0
  %3325 = vmatprep.subr.mxu0 0.0
  %3326 = vmatpush1.xpose.msra.mxu0 0.0
  %3327 = vmatprep.subr.mxu0 0.0
  %3328 = vmatpush1.xpose.msra.mxu0 0.0
  %3329 = vmatprep.subr.mxu0 0.0
  %3330 = vmatpush1.xpose.msra.mxu0 0.0
  %3331 = vmatprep.subr.mxu0 0.0
  %3332 = vmatpush1.xpose.msra.mxu0 0.0
  %3333 = vmatprep.subr.mxu0 0.0
  %3334 = vmatpush1.xpose.msra.mxu0 0.0
  %3335 = vmatprep.subr.mxu0 0.0
  %3336 = vmatpush1.xpose.msra.mxu0 0.0
  %3337 = vmatprep.subr.mxu0 0.0
  %3338 = vmatpush1.xpose.msra.mxu0 0.0
  %3339 = vmatprep.subr.mxu0 0.0
  %3340 = vmatpush1.xpose.msra.mxu0 0.0
  %3341 = vmatprep.subr.mxu0 0.0
  %3342 = vmatpush1.xpose.msra.mxu0 0.0
  %3343 = vmatprep.subr.mxu0 0.0
  %3344 = vmatpush1.xpose.msra.mxu0 0.0
  %3345 = vmatprep.subr.mxu0 0.0
  %3346 = vmatpush1.xpose.msra.mxu0 0.0
  %3347 = vmatprep.subr.mxu0 0.0
  %3348 = vmatpush1.xpose.msra.mxu0 0.0
  %3349 = vmatprep.subr.mxu0 0.0
  %3350 = vmatpush1.xpose.msra.mxu0 0.0
  %3351 = vmatprep.subr.mxu0 0.0
  %3352 = vmatpush1.xpose.msra.mxu0 0.0
  %3353 = vmatprep.subr.mxu0 0.0
  %3354 = vmatpush1.xpose.msra.mxu0 0.0
  %3355 = vmatprep.mubr.f32.mxu0 0.0
  %3356 = vmatmul.mubr.f32.gmra.mrb[0].mxu0 %v3283
  %v3357 = vpop.f32.mrb[0].mxu0
  %v3358 = vadd.f32 0.0, %v3357
  %v3359 = vpop.f32.mrb[0].mxu0
  %3360 = vmatprep.mubr.f32.mxu0 0.0
  %3361 = vmatmul.mubr.f32.gmra.mrb[0].mxu0 %v3286
  %v3362 = vpop.f32.mrb[0].mxu0
  %v3363 = vadd.f32 0.0, %v3362
  %v3364 = vpop.f32.mrb[0].mxu0
  %3365 = vdwg.mxu0
  %v3367 = vsel %vm1167, %v3274, 0
  %v3370 = vsel %vm1167, %v3275, 0
  %v3373 = vsel %vm1167, %v3281, 0
  %3375 = vmatprep.subr.mxu0 0.0
  %3376 = vmatpush1.xpose.msra.mxu0 %v3373
  %3377 = vmatprep.subr.mxu0 0.0
  %3378 = vmatpush1.xpose.msra.mxu0 0.0
  %3379 = vmatprep.subr.mxu0 0.0
  %3380 = vmatpush1.xpose.msra.mxu0 0.0
  %3381 = vmatprep.subr.mxu0 0.0
  %3382 = vmatpush1.xpose.msra.mxu0 0.0
  %3383 = vmatprep.subr.mxu0 0.0
  %3384 = vmatpush1.xpose.msra.mxu0 0.0
  %3385 = vmatprep.subr.mxu0 0.0
  %3386 = vmatpush1.xpose.msra.mxu0 0.0
  %3387 = vmatprep.subr.mxu0 0.0
  %3388 = vmatpush1.xpose.msra.mxu0 0.0
  %3389 = vmatprep.subr.mxu0 0.0
  %3390 = vmatpush1.xpose.msra.mxu0 0.0
  %3391 = vmatprep.subr.mxu0 0.0
  %3392 = vmatpush1.xpose.msra.mxu0 0.0
  %3393 = vmatprep.subr.mxu0 0.0
  %3394 = vmatpush1.xpose.msra.mxu0 0.0
  %3395 = vmatprep.subr.mxu0 0.0
  %3396 = vmatpush1.xpose.msra.mxu0 0.0
  %3397 = vmatprep.subr.mxu0 0.0
  %3398 = vmatpush1.xpose.msra.mxu0 0.0
  %3399 = vmatprep.subr.mxu0 0.0
  %3400 = vmatpush1.xpose.msra.mxu0 0.0
  %3401 = vmatprep.subr.mxu0 0.0
  %3402 = vmatpush1.xpose.msra.mxu0 0.0
  %3403 = vmatprep.subr.mxu0 0.0
  %3404 = vmatpush1.xpose.msra.mxu0 0.0
  %3405 = vmatprep.subr.mxu0 0.0
  %3406 = vmatpush1.xpose.msra.mxu0 0.0
  %3407 = vmatprep.subr.mxu0 0.0
  %3408 = vmatpush1.xpose.msra.mxu0 0.0
  %3409 = vmatprep.subr.mxu0 0.0
  %3410 = vmatpush1.xpose.msra.mxu0 0.0
  %3411 = vmatprep.subr.mxu0 0.0
  %3412 = vmatpush1.xpose.msra.mxu0 0.0
  %3413 = vmatprep.subr.mxu0 0.0
  %3414 = vmatpush1.xpose.msra.mxu0 0.0
  %3415 = vmatprep.subr.mxu0 0.0
  %3416 = vmatpush1.xpose.msra.mxu0 0.0
  %3417 = vmatprep.subr.mxu0 0.0
  %3418 = vmatpush1.xpose.msra.mxu0 0.0
  %3419 = vmatprep.subr.mxu0 0.0
  %3420 = vmatpush1.xpose.msra.mxu0 0.0
  %3421 = vmatprep.subr.mxu0 0.0
  %3422 = vmatpush1.xpose.msra.mxu0 0.0
  %3423 = vmatprep.subr.mxu0 0.0
  %3424 = vmatpush1.xpose.msra.mxu0 0.0
  %3425 = vmatprep.subr.mxu0 0.0
  %3426 = vmatpush1.xpose.msra.mxu0 0.0
  %3427 = vmatprep.subr.mxu0 0.0
  %3428 = vmatpush1.xpose.msra.mxu0 0.0
  %3429 = vmatprep.subr.mxu0 0.0
  %3430 = vmatpush1.xpose.msra.mxu0 0.0
  %3431 = vmatprep.subr.mxu0 0.0
  %3432 = vmatpush1.xpose.msra.mxu0 0.0
  %3433 = vmatprep.subr.mxu0 0.0
  %3434 = vmatpush1.xpose.msra.mxu0 0.0
  %3435 = vmatprep.subr.mxu0 0.0
  %3436 = vmatpush1.xpose.msra.mxu0 0.0
  %3437 = vmatprep.subr.mxu0 0.0
  %3438 = vmatpush1.xpose.msra.mxu0 0.0
  %3439 = vmatprep.mubr.f32.mxu0 0.0
  %3440 = vmatmul.mubr.f32.gmra.mrb[0].mxu0 %v3367
  %v3441 = vpop.f32.mrb[0].mxu0
  %v3442 = vadd.f32 0.0, %v3441
  %v3443 = vpop.f32.mrb[0].mxu0
  %3444 = vmatprep.mubr.f32.mxu0 0.0
  %3445 = vmatmul.mubr.f32.gmra.mrb[0].mxu0 %v3370
  %v3446 = vpop.f32.mrb[0].mxu0
  %v3447 = vadd.f32 0.0, %v3446
  %v3448 = vpop.f32.mrb[0].mxu0
  %3449 = vdwg.mxu0
  %v3450 = vsel %vm79, -3.4028235e+38, %v3358
  %v3451 = vsel %vm80, -3.4028235e+38, %v3363
  %v3452 = vsel %vm81, -3.4028235e+38, %v3442
  %v3453 = vsel %vm82, -3.4028235e+38, %v3447
  %v3454 = vsel %vm1167, %v3450, -inf
  %3455 = vmax.xlane.f32.xlu0 %v3454
  %v3456 = vpop.xlane.xlu0 %3455
  %v3457 = vsel %vm1167, %v3451, -inf
  %3458 = vmax.xlane.f32.xlu0 %v3457
  %v3459 = vpop.xlane.xlu0 %3458
  %v3460 = vsel %vm1167, %v3452, -inf
  %3461 = vmax.xlane.f32.xlu0 %v3460
  %v3462 = vpop.xlane.xlu0 %3461
  %v3463 = vsel %vm1167, %v3453, -inf
  %3464 = vmax.xlane.f32.xlu0 %v3463
  %v3465 = vpop.xlane.xlu0 %3464
  %vm3466 = vcmp.ge.f32.partialorder %v3450, %v3456
  %vm3467 = vcmp.ge.f32.partialorder %v3451, %v3459
  %vm3468 = vcmp.ge.f32.partialorder %v3452, %v3462
  %vm3469 = vcmp.ge.f32.partialorder %v3453, %v3465
  %v3470 = vsel %vm3466, -3.4028235e+38, %v3450
  %v3471 = vsel %vm3467, -3.4028235e+38, %v3451
  %v3472 = vsel %vm3468, -3.4028235e+38, %v3452
  %v3473 = vsel %vm3469, -3.4028235e+38, %v3453
  %v3474 = vsel %vm1167, %v3470, -inf
  %3475 = vmax.xlane.f32.xlu0 %v3474
  %v3476 = vpop.xlane.xlu0 %3475
  %v3477 = vsel %vm1167, %v3471, -inf
  %3478 = vmax.xlane.f32.xlu0 %v3477
  %v3479 = vpop.xlane.xlu0 %3478
  %v3480 = vsel %vm1167, %v3472, -inf
  %3481 = vmax.xlane.f32.xlu0 %v3480
  %v3482 = vpop.xlane.xlu0 %3481
  %v3483 = vsel %vm1167, %v3473, -inf
  %3484 = vmax.xlane.f32.xlu0 %v3483
  %v3485 = vpop.xlane.xlu0 %3484
  %vm3486 = vcmp.ge.f32.partialorder %v3470, %v3476
  %vm3487 = vcmp.ge.f32.partialorder %v3471, %v3479
  %vm3488 = vcmp.ge.f32.partialorder %v3472, %v3482
  %vm3489 = vcmp.ge.f32.partialorder %v3473, %v3485
  %v3490 = vsel %vm3486, -3.4028235e+38, %v3470
  %v3491 = vsel %vm3487, -3.4028235e+38, %v3471
  %v3492 = vsel %vm3488, -3.4028235e+38, %v3472
  %v3493 = vsel %vm3489, -3.4028235e+38, %v3473
  %v3494 = vsel %vm1167, %v3490, -inf
  %3495 = vmax.xlane.f32.xlu0 %v3494
  %v3496 = vpop.xlane.xlu0 %3495
  %v3497 = vsel %vm1167, %v3491, -inf
  %3498 = vmax.xlane.f32.xlu0 %v3497
  %v3499 = vpop.xlane.xlu0 %3498
  %v3500 = vsel %vm1167, %v3492, -inf
  %3501 = vmax.xlane.f32.xlu0 %v3500
  %v3502 = vpop.xlane.xlu0 %3501
  %v3503 = vsel %vm1167, %v3493, -inf
  %3504 = vmax.xlane.f32.xlu0 %v3503
  %v3505 = vpop.xlane.xlu0 %3504
  %vm3506 = vcmp.ge.f32.partialorder %v3490, %v3496
  %vm3507 = vcmp.ge.f32.partialorder %v3491, %v3499
  %vm3508 = vcmp.ge.f32.partialorder %v3492, %v3502
  %vm3509 = vcmp.ge.f32.partialorder %v3493, %v3505
  %v3510 = vsel %vm3506, -3.4028235e+38, %v3490
  %v3511 = vsel %vm3507, -3.4028235e+38, %v3491
  %v3512 = vsel %vm3508, -3.4028235e+38, %v3492
  %v3513 = vsel %vm3509, -3.4028235e+38, %v3493
  %v3514 = vsel %vm1167, %v3510, -inf
  %3515 = vmax.xlane.f32.xlu0 %v3514
  %v3516 = vpop.xlane.xlu0 %3515
  %v3517 = vsel %vm1167, %v3511, -inf
  %3518 = vmax.xlane.f32.xlu0 %v3517
  %v3519 = vpop.xlane.xlu0 %3518
  %v3520 = vsel %vm1167, %v3512, -inf
  %3521 = vmax.xlane.f32.xlu0 %v3520
  %v3522 = vpop.xlane.xlu0 %3521
  %v3523 = vsel %vm1167, %v3513, -inf
  %3524 = vmax.xlane.f32.xlu0 %v3523
  %v3525 = vpop.xlane.xlu0 %3524
  %vm3526 = vcmp.ge.f32.partialorder %v3450, %v3516
  %vm3527 = vcmp.ge.f32.partialorder %v3451, %v3519
  %vm3528 = vcmp.ge.f32.partialorder %v3452, %v3522
  %vm3529 = vcmp.ge.f32.partialorder %v3453, %v3525
  %vm3530 = vmand %vm3526, %vm1416
  %vm3531 = vmand %vm3527, %vm1417
  %vm3532 = vmand %vm3528, %vm1418
  %vm3533 = vmand %vm3529, %vm1419
  %v3534 = vsel %vm3530, %v3358, -3.4028235e+38
  %v3535 = vsel %vm3531, %v3363, -3.4028235e+38
  %v3536 = vsel %vm3532, %v3442, -3.4028235e+38
  %v3537 = vsel %vm3533, %v3447, -3.4028235e+38
  %v3538 = vsel %vm1167, %v3534, -inf
  %3539 = vmax.xlane.f32.xlu0 %v3538
  %v3540 = vpop.xlane.xlu0 %3539
  %v3541 = vsel %vm1167, %v3535, -inf
  %3542 = vmax.xlane.f32.xlu0 %v3541
  %v3543 = vpop.xlane.xlu0 %3542
  %v3544 = vsel %vm1167, %v3536, -inf
  %3545 = vmax.xlane.f32.xlu0 %v3544
  %v3546 = vpop.xlane.xlu0 %3545
  %v3547 = vsel %vm1167, %v3537, -inf
  %3548 = vmax.xlane.f32.xlu0 %v3547
  %v3549 = vpop.xlane.xlu0 %3548
  %v3550 = vsub.f32 %v3534, %v3540
  %v3551 = vsub.f32 %v3535, %v3543
  %v3552 = vsub.f32 %v3536, %v3546
  %v3553 = vsub.f32 %v3537, %v3549
  %v3554 = vmul.f32 %v3550, 1.442695
  %v3555 = vpow.pop %v3554
  %v3556 = vmul.f32 %v3551, 1.442695
  %v3557 = vpow.pop %v3556
  %v3558 = vmul.f32 %v3552, 1.442695
  %v3559 = vpow.pop %v3558
  %v3560 = vmul.f32 %v3553, 1.442695
  %v3561 = vpow.pop %v3560
  %v3562 = vsel %vm1167, %v3555, 0.0
  %3563 = vadd.xlane.f32.xlu0 %v3562
  %v3564 = vpop.xlane.xlu0 %3563
  %v3565 = vsel %vm1167, %v3557, 0.0
  %3566 = vadd.xlane.f32.xlu0 %v3565
  %v3567 = vpop.xlane.xlu0 %3566
  %v3568 = vsel %vm1167, %v3559, 0.0
  %3569 = vadd.xlane.f32.xlu0 %v3568
  %v3570 = vpop.xlane.xlu0 %3569
  %v3571 = vsel %vm1167, %v3561, 0.0
  %3572 = vadd.xlane.f32.xlu0 %v3571
  %v3573 = vpop.xlane.xlu0 %3572
  %v3574 = vrcp.pop %v3564
  %v3575 = vmul.f32 %v3555, %v3574
  %v3576 = vrcp.pop %v3567
  %v3577 = vmul.f32 %v3557, %v3576
  %v3578 = vrcp.pop %v3570
  %v3579 = vmul.f32 %v3559, %v3578
  %v3580 = vrcp.pop %v3573
  %v3581 = vmul.f32 %v3561, %v3580
  %v3583 = vsel %vm1167, %v3575, 0
  %v3586 = vsel %vm1167, %v3577, 0
  %3588 = vmatprep.subr.mxu0 0.0
  %3589 = vmatpush1.msra.mxu0 %v3186
  %3590 = vmatprep.subr.mxu0 0.0
  %3591 = vmatpush1.msra.mxu0 0.0
  %3592 = vmatprep.subr.mxu0 0.0
  %3593 = vmatpush1.msra.mxu0 0.0
  %3594 = vmatprep.subr.mxu0 0.0
  %3595 = vmatpush1.msra.mxu0 0.0
  %3596 = vmatprep.subr.mxu0 0.0
  %3597 = vmatpush1.msra.mxu0 0.0
  %3598 = vmatprep.subr.mxu0 0.0
  %3599 = vmatpush1.msra.mxu0 0.0
  %3600 = vmatprep.subr.mxu0 0.0
  %3601 = vmatpush1.msra.mxu0 0.0
  %3602 = vmatprep.subr.mxu0 0.0
  %3603 = vmatpush1.msra.mxu0 0.0
  %3604 = vmatprep.subr.mxu0 0.0
  %3605 = vmatpush1.msra.mxu0 0.0
  %3606 = vmatprep.subr.mxu0 0.0
  %3607 = vmatpush1.msra.mxu0 0.0
  %3608 = vmatprep.subr.mxu0 0.0
  %3609 = vmatpush1.msra.mxu0 0.0
  %3610 = vmatprep.subr.mxu0 0.0
  %3611 = vmatpush1.msra.mxu0 0.0
  %3612 = vmatprep.subr.mxu0 0.0
  %3613 = vmatpush1.msra.mxu0 0.0
  %3614 = vmatprep.subr.mxu0 0.0
  %3615 = vmatpush1.msra.mxu0 0.0
  %3616 = vmatprep.subr.mxu0 0.0
  %3617 = vmatpush1.msra.mxu0 0.0
  %3618 = vmatprep.subr.mxu0 0.0
  %3619 = vmatpush1.msra.mxu0 0.0
  %3620 = vmatprep.subr.mxu0 0.0
  %3621 = vmatpush1.msra.mxu0 0.0
  %3622 = vmatprep.subr.mxu0 0.0
  %3623 = vmatpush1.msra.mxu0 0.0
  %3624 = vmatprep.subr.mxu0 0.0
  %3625 = vmatpush1.msra.mxu0 0.0
  %3626 = vmatprep.subr.mxu0 0.0
  %3627 = vmatpush1.msra.mxu0 0.0
  %3628 = vmatprep.subr.mxu0 0.0
  %3629 = vmatpush1.msra.mxu0 0.0
  %3630 = vmatprep.subr.mxu0 0.0
  %3631 = vmatpush1.msra.mxu0 0.0
  %3632 = vmatprep.subr.mxu0 0.0
  %3633 = vmatpush1.msra.mxu0 0.0
  %3634 = vmatprep.subr.mxu0 0.0
  %3635 = vmatpush1.msra.mxu0 0.0
  %3636 = vmatprep.subr.mxu0 0.0
  %3637 = vmatpush1.msra.mxu0 0.0
  %3638 = vmatprep.subr.mxu0 0.0
  %3639 = vmatpush1.msra.mxu0 0.0
  %3640 = vmatprep.subr.mxu0 0.0
  %3641 = vmatpush1.msra.mxu0 0.0
  %3642 = vmatprep.subr.mxu0 0.0
  %3643 = vmatpush1.msra.mxu0 0.0
  %3644 = vmatprep.subr.mxu0 0.0
  %3645 = vmatpush1.msra.mxu0 0.0
  %3646 = vmatprep.subr.mxu0 0.0
  %3647 = vmatpush1.msra.mxu0 0.0
  %3648 = vmatprep.subr.mxu0 0.0
  %3649 = vmatpush1.msra.mxu0 0.0
  %3650 = vmatprep.subr.mxu0 0.0
  %3651 = vmatpush1.msra.mxu0 0.0
  %3652 = vmatprep.mubr.f32.mxu0 0.0
  %3653 = vmatmul.mubr.f32.gmra.mrb[0].mxu0 %v3583
  %v3654 = vpop.f32.mrb[0].mxu0
  %v3655 = vadd.f32 0.0, %v3654
  %v3656 = vpop.f32.mrb[0].mxu0
  %3657 = vmatprep.mubr.f32.mxu0 0.0
  %3658 = vmatmul.mubr.f32.gmra.mrb[0].mxu0 %v3586
  %v3659 = vpop.f32.mrb[0].mxu0
  %v3660 = vadd.f32 0.0, %v3659
  %v3661 = vpop.f32.mrb[0].mxu0
  %3662 = vdwg.mxu0
  %v3664 = vsel %vm1167, %v3579, 0
  %v3667 = vsel %vm1167, %v3581, 0
  %3669 = vmatprep.subr.mxu0 0.0
  %3670 = vmatpush1.msra.mxu0 %v3261
  %3671 = vmatprep.subr.mxu0 0.0
  %3672 = vmatpush1.msra.mxu0 0.0
  %3673 = vmatprep.subr.mxu0 0.0
  %3674 = vmatpush1.msra.mxu0 0.0
  %3675 = vmatprep.subr.mxu0 0.0
  %3676 = vmatpush1.msra.mxu0 0.0
  %3677 = vmatprep.subr.mxu0 0.0
  %3678 = vmatpush1.msra.mxu0 0.0
  %3679 = vmatprep.subr.mxu0 0.0
  %3680 = vmatpush1.msra.mxu0 0.0
  %3681 = vmatprep.subr.mxu0 0.0
  %3682 = vmatpush1.msra.mxu0 0.0
  %3683 = vmatprep.subr.mxu0 0.0
  %3684 = vmatpush1.msra.mxu0 0.0
  %3685 = vmatprep.subr.mxu0 0.0
  %3686 = vmatpush1.msra.mxu0 0.0
  %3687 = vmatprep.subr.mxu0 0.0
  %3688 = vmatpush1.msra.mxu0 0.0
  %3689 = vmatprep.subr.mxu0 0.0
  %3690 = vmatpush1.msra.mxu0 0.0
  %3691 = vmatprep.subr.mxu0 0.0
  %3692 = vmatpush1.msra.mxu0 0.0
  %3693 = vmatprep.subr.mxu0 0.0
  %3694 = vmatpush1.msra.mxu0 0.0
  %3695 = vmatprep.subr.mxu0 0.0
  %3696 = vmatpush1.msra.mxu0 0.0
  %3697 = vmatprep.subr.mxu0 0.0
  %3698 = vmatpush1.msra.mxu0 0.0
  %3699 = vmatprep.subr.mxu0 0.0
  %3700 = vmatpush1.msra.mxu0 0.0
  %3701 = vmatprep.subr.mxu0 0.0
  %3702 = vmatpush1.msra.mxu0 0.0
  %3703 = vmatprep.subr.mxu0 0.0
  %3704 = vmatpush1.msra.mxu0 0.0
  %3705 = vmatprep.subr.mxu0 0.0
  %3706 = vmatpush1.msra.mxu0 0.0
  %3707 = vmatprep.subr.mxu0 0.0
  %3708 = vmatpush1.msra.mxu0 0.0
  %3709 = vmatprep.subr.mxu0 0.0
  %3710 = vmatpush1.msra.mxu0 0.0
  %3711 = vmatprep.subr.mxu0 0.0
  %3712 = vmatpush1.msra.mxu0 0.0
  %3713 = vmatprep.subr.mxu0 0.0
  %3714 = vmatpush1.msra.mxu0 0.0
  %3715 = vmatprep.subr.mxu0 0.0
  %3716 = vmatpush1.msra.mxu0 0.0
  %3717 = vmatprep.subr.mxu0 0.0
  %3718 = vmatpush1.msra.mxu0 0.0
  %3719 = vmatprep.subr.mxu0 0.0
  %3720 = vmatpush1.msra.mxu0 0.0
  %3721 = vmatprep.subr.mxu0 0.0
  %3722 = vmatpush1.msra.mxu0 0.0
  %3723 = vmatprep.subr.mxu0 0.0
  %3724 = vmatpush1.msra.mxu0 0.0
  %3725 = vmatprep.subr.mxu0 0.0
  %3726 = vmatpush1.msra.mxu0 0.0
  %3727 = vmatprep.subr.mxu0 0.0
  %3728 = vmatpush1.msra.mxu0 0.0
  %3729 = vmatprep.subr.mxu0 0.0
  %3730 = vmatpush1.msra.mxu0 0.0
  %3731 = vmatprep.subr.mxu0 0.0
  %3732 = vmatpush1.msra.mxu0 0.0
  %3733 = vmatprep.mubr.f32.mxu0 0.0
  %3734 = vmatmul.mubr.f32.gmra.mrb[0].mxu0 %v3664
  %v3735 = vpop.f32.mrb[0].mxu0
  %v3736 = vadd.f32 0.0, %v3735
  %v3737 = vpop.f32.mrb[0].mxu0
  %3738 = vmatprep.mubr.f32.mxu0 0.0
  %3739 = vmatmul.mubr.f32.gmra.mrb[0].mxu0 %v3667
  %v3740 = vpop.f32.mrb[0].mxu0
  %v3741 = vadd.f32 0.0, %v3740
  %v3742 = vpop.f32.mrb[0].mxu0
  %3743 = vdwg.mxu0
  %s3744 = scalar_lea.vmem %s12, 32
  %v3745 = vld [vmem:[%s3744] sm:$0xff]
  %s3746 = scalar_lea.vmem %s12, 40
  %v3747 = vld [vmem:[%s3746] sm:$0xff]
  %v3749 = vsel %vm1167, %v3660, 0
  %3751 = vmatprep.subr.mxu0 0.0
  %3752 = vmatpush1.msra.mxu0 %v3747
  %3753 = vmatprep.subr.mxu0 0.0
  %3754 = vmatpush1.msra.mxu0 0.0
  %3755 = vmatprep.subr.mxu0 0.0
  %3756 = vmatpush1.msra.mxu0 0.0
  %3757 = vmatprep.subr.mxu0 0.0
  %3758 = vmatpush1.msra.mxu0 0.0
  %3759 = vmatprep.subr.mxu0 0.0
  %3760 = vmatpush1.msra.mxu0 0.0
  %3761 = vmatprep.subr.mxu0 0.0
  %3762 = vmatpush1.msra.mxu0 0.0
  %3763 = vmatprep.subr.mxu0 0.0
  %3764 = vmatpush1.msra.mxu0 0.0
  %3765 = vmatprep.subr.mxu0 0.0
  %3766 = vmatpush1.msra.mxu0 0.0
  %3767 = vmatprep.subr.mxu0 0.0
  %3768 = vmatpush1.msra.mxu0 0.0
  %3769 = vmatprep.subr.mxu0 0.0
  %3770 = vmatpush1.msra.mxu0 0.0
  %3771 = vmatprep.subr.mxu0 0.0
  %3772 = vmatpush1.msra.mxu0 0.0
  %3773 = vmatprep.subr.mxu0 0.0
  %3774 = vmatpush1.msra.mxu0 0.0
  %3775 = vmatprep.subr.mxu0 0.0
  %3776 = vmatpush1.msra.mxu0 0.0
  %3777 = vmatprep.subr.mxu0 0.0
  %3778 = vmatpush1.msra.mxu0 0.0
  %3779 = vmatprep.subr.mxu0 0.0
  %3780 = vmatpush1.msra.mxu0 0.0
  %3781 = vmatprep.subr.mxu0 0.0
  %3782 = vmatpush1.msra.mxu0 0.0
  %3783 = vmatprep.subr.mxu0 0.0
  %3784 = vmatpush1.msra.mxu0 0.0
  %3785 = vmatprep.subr.mxu0 0.0
  %3786 = vmatpush1.msra.mxu0 0.0
  %3787 = vmatprep.subr.mxu0 0.0
  %3788 = vmatpush1.msra.mxu0 0.0
  %3789 = vmatprep.subr.mxu0 0.0
  %3790 = vmatpush1.msra.mxu0 0.0
  %3791 = vmatprep.subr.mxu0 0.0
  %3792 = vmatpush1.msra.mxu0 0.0
  %3793 = vmatprep.subr.mxu0 0.0
  %3794 = vmatpush1.msra.mxu0 0.0
  %3795 = vmatprep.subr.mxu0 0.0
  %3796 = vmatpush1.msra.mxu0 0.0
  %3797 = vmatprep.subr.mxu0 0.0
  %3798 = vmatpush1.msra.mxu0 0.0
  %3799 = vmatprep.subr.mxu0 0.0
  %3800 = vmatpush1.msra.mxu0 0.0
  %3801 = vmatprep.subr.mxu0 0.0
  %3802 = vmatpush1.msra.mxu0 0.0
  %3803 = vmatprep.subr.mxu0 0.0
  %3804 = vmatpush1.msra.mxu0 0.0
  %3805 = vmatprep.subr.mxu0 0.0
  %3806 = vmatpush1.msra.mxu0 0.0
  %3807 = vmatprep.subr.mxu0 0.0
  %3808 = vmatpush1.msra.mxu0 0.0
  %3809 = vmatprep.subr.mxu0 0.0
  %3810 = vmatpush1.msra.mxu0 0.0
  %3811 = vmatprep.subr.mxu0 0.0
  %3812 = vmatpush1.msra.mxu0 0.0
  %3813 = vmatprep.subr.mxu0 0.0
  %3814 = vmatpush1.msra.mxu0 0.0
  %3815 = vmatprep.mubr.f32.mxu0 0.0
  %3816 = vmatmul.mubr.f32.gmra.mrb[0].mxu0 %v3749
  %v3817 = vpop.f32.mrb[0].mxu0
  %v3818 = vadd.f32 0.0, %v3817
  %v3819 = vpop.f32.mrb[0].mxu0
  %3820 = vdwg.mxu0
  %v3822 = vsel %vm1167, %v3655, 0
  %3824 = vmatprep.subr.mxu0 0.0
  %3825 = vmatpush1.msra.mxu0 %v3745
  %3826 = vmatprep.subr.mxu0 0.0
  %3827 = vmatpush1.msra.mxu0 0.0
  %3828 = vmatprep.subr.mxu0 0.0
  %3829 = vmatpush1.msra.mxu0 0.0
  %3830 = vmatprep.subr.mxu0 0.0
  %3831 = vmatpush1.msra.mxu0 0.0
  %3832 = vmatprep.subr.mxu0 0.0
  %3833 = vmatpush1.msra.mxu0 0.0
  %3834 = vmatprep.subr.mxu0 0.0
  %3835 = vmatpush1.msra.mxu0 0.0
  %3836 = vmatprep.subr.mxu0 0.0
  %3837 = vmatpush1.msra.mxu0 0.0
  %3838 = vmatprep.subr.mxu0 0.0
  %3839 = vmatpush1.msra.mxu0 0.0
  %3840 = vmatprep.subr.mxu0 0.0
  %3841 = vmatpush1.msra.mxu0 0.0
  %3842 = vmatprep.subr.mxu0 0.0
  %3843 = vmatpush1.msra.mxu0 0.0
  %3844 = vmatprep.subr.mxu0 0.0
  %3845 = vmatpush1.msra.mxu0 0.0
  %3846 = vmatprep.subr.mxu0 0.0
  %3847 = vmatpush1.msra.mxu0 0.0
  %3848 = vmatprep.subr.mxu0 0.0
  %3849 = vmatpush1.msra.mxu0 0.0
  %3850 = vmatprep.subr.mxu0 0.0
  %3851 = vmatpush1.msra.mxu0 0.0
  %3852 = vmatprep.subr.mxu0 0.0
  %3853 = vmatpush1.msra.mxu0 0.0
  %3854 = vmatprep.subr.mxu0 0.0
  %3855 = vmatpush1.msra.mxu0 0.0
  %3856 = vmatprep.subr.mxu0 0.0
  %3857 = vmatpush1.msra.mxu0 0.0
  %3858 = vmatprep.subr.mxu0 0.0
  %3859 = vmatpush1.msra.mxu0 0.0
  %3860 = vmatprep.subr.mxu0 0.0
  %3861 = vmatpush1.msra.mxu0 0.0
  %3862 = vmatprep.subr.mxu0 0.0
  %3863 = vmatpush1.msra.mxu0 0.0
  %3864 = vmatprep.subr.mxu0 0.0
  %3865 = vmatpush1.msra.mxu0 0.0
  %3866 = vmatprep.subr.mxu0 0.0
  %3867 = vmatpush1.msra.mxu0 0.0
  %3868 = vmatprep.subr.mxu0 0.0
  %3869 = vmatpush1.msra.mxu0 0.0
  %3870 = vmatprep.subr.mxu0 0.0
  %3871 = vmatpush1.msra.mxu0 0.0
  %3872 = vmatprep.subr.mxu0 0.0
  %3873 = vmatpush1.msra.mxu0 0.0
  %3874 = vmatprep.subr.mxu0 0.0
  %3875 = vmatpush1.msra.mxu0 0.0
  %3876 = vmatprep.subr.mxu0 0.0
  %3877 = vmatpush1.msra.mxu0 0.0
  %3878 = vmatprep.subr.mxu0 0.0
  %3879 = vmatpush1.msra.mxu0 0.0
  %3880 = vmatprep.subr.mxu0 0.0
  %3881 = vmatpush1.msra.mxu0 0.0
  %3882 = vmatprep.subr.mxu0 0.0
  %3883 = vmatpush1.msra.mxu0 0.0
  %3884 = vmatprep.subr.mxu0 0.0
  %3885 = vmatpush1.msra.mxu0 0.0
  %3886 = vmatprep.subr.mxu0 0.0
  %3887 = vmatpush1.msra.mxu0 0.0
  %3888 = vmatprep.mubr.f32.mxu0 0.0
  %3889 = vmatmul.mubr.f32.gmra.mrb[0].mxu0 %v3822
  %v3890 = vpop.f32.mrb[0].mxu0
  %v3891 = vadd.f32 %v3818, %v3890
  %v3892 = vpop.f32.mrb[0].mxu0
  %3893 = vdwg.mxu0
  %s3894 = scalar_lea.vmem %s12, 48
  %v3895 = vld [vmem:[%s3894] sm:$0xff]
  %v3897 = vsel %vm1167, %v3736, 0
  %3899 = vmatprep.subr.mxu0 0.0
  %3900 = vmatpush1.msra.mxu0 %v3895
  %3901 = vmatprep.subr.mxu0 0.0
  %3902 = vmatpush1.msra.mxu0 0.0
  %3903 = vmatprep.subr.mxu0 0.0
  %3904 = vmatpush1.msra.mxu0 0.0
  %3905 = vmatprep.subr.mxu0 0.0
  %3906 = vmatpush1.msra.mxu0 0.0
  %3907 = vmatprep.subr.mxu0 0.0
  %3908 = vmatpush1.msra.mxu0 0.0
  %3909 = vmatprep.subr.mxu0 0.0
  %3910 = vmatpush1.msra.mxu0 0.0
  %3911 = vmatprep.subr.mxu0 0.0
  %3912 = vmatpush1.msra.mxu0 0.0
  %3913 = vmatprep.subr.mxu0 0.0
  %3914 = vmatpush1.msra.mxu0 0.0
  %3915 = vmatprep.subr.mxu0 0.0
  %3916 = vmatpush1.msra.mxu0 0.0
  %3917 = vmatprep.subr.mxu0 0.0
  %3918 = vmatpush1.msra.mxu0 0.0
  %3919 = vmatprep.subr.mxu0 0.0
  %3920 = vmatpush1.msra.mxu0 0.0
  %3921 = vmatprep.subr.mxu0 0.0
  %3922 = vmatpush1.msra.mxu0 0.0
  %3923 = vmatprep.subr.mxu0 0.0
  %3924 = vmatpush1.msra.mxu0 0.0
  %3925 = vmatprep.subr.mxu0 0.0
  %3926 = vmatpush1.msra.mxu0 0.0
  %3927 = vmatprep.subr.mxu0 0.0
  %3928 = vmatpush1.msra.mxu0 0.0
  %3929 = vmatprep.subr.mxu0 0.0
  %3930 = vmatpush1.msra.mxu0 0.0
  %3931 = vmatprep.subr.mxu0 0.0
  %3932 = vmatpush1.msra.mxu0 0.0
  %3933 = vmatprep.subr.mxu0 0.0
  %3934 = vmatpush1.msra.mxu0 0.0
  %3935 = vmatprep.subr.mxu0 0.0
  %3936 = vmatpush1.msra.mxu0 0.0
  %3937 = vmatprep.subr.mxu0 0.0
  %3938 = vmatpush1.msra.mxu0 0.0
  %3939 = vmatprep.subr.mxu0 0.0
  %3940 = vmatpush1.msra.mxu0 0.0
  %3941 = vmatprep.subr.mxu0 0.0
  %3942 = vmatpush1.msra.mxu0 0.0
  %3943 = vmatprep.subr.mxu0 0.0
  %3944 = vmatpush1.msra.mxu0 0.0
  %3945 = vmatprep.subr.mxu0 0.0
  %3946 = vmatpush1.msra.mxu0 0.0
  %3947 = vmatprep.subr.mxu0 0.0
  %3948 = vmatpush1.msra.mxu0 0.0
  %3949 = vmatprep.subr.mxu0 0.0
  %3950 = vmatpush1.msra.mxu0 0.0
  %3951 = vmatprep.subr.mxu0 0.0
  %3952 = vmatpush1.msra.mxu0 0.0
  %3953 = vmatprep.subr.mxu0 0.0
  %3954 = vmatpush1.msra.mxu0 0.0
  %3955 = vmatprep.subr.mxu0 0.0
  %3956 = vmatpush1.msra.mxu0 0.0
  %3957 = vmatprep.subr.mxu0 0.0
  %3958 = vmatpush1.msra.mxu0 0.0
  %3959 = vmatprep.subr.mxu0 0.0
  %3960 = vmatpush1.msra.mxu0 0.0
  %3961 = vmatprep.subr.mxu0 0.0
  %3962 = vmatpush1.msra.mxu0 0.0
  %3963 = vmatprep.mubr.f32.mxu0 0.0
  %3964 = vmatmul.mubr.f32.gmra.mrb[0].mxu0 %v3897
  %v3965 = vpop.f32.mrb[0].mxu0
  %v3966 = vadd.f32 0.0, %v3965
  %v3967 = vpop.f32.mrb[0].mxu0
  %3968 = vdwg.mxu0
  %v3969 = vadd.f32 %v3891, %v3966
  %s3970 = scalar_lea.vmem %s12, 56
  %v3971 = vld [vmem:[%s3970] sm:$0xff]
  %v3973 = vsel %vm1167, %v3741, 0
  %3975 = vmatprep.subr.mxu0 0.0
  %3976 = vmatpush1.msra.mxu0 %v3971
  %3977 = vmatprep.subr.mxu0 0.0
  %3978 = vmatpush1.msra.mxu0 0.0
  %3979 = vmatprep.subr.mxu0 0.0
  %3980 = vmatpush1.msra.mxu0 0.0
  %3981 = vmatprep.subr.mxu0 0.0
  %3982 = vmatpush1.msra.mxu0 0.0
  %3983 = vmatprep.subr.mxu0 0.0
  %3984 = vmatpush1.msra.mxu0 0.0
  %3985 = vmatprep.subr.mxu0 0.0
  %3986 = vmatpush1.msra.mxu0 0.0
  %3987 = vmatprep.subr.mxu0 0.0
  %3988 = vmatpush1.msra.mxu0 0.0
  %3989 = vmatprep.subr.mxu0 0.0
  %3990 = vmatpush1.msra.mxu0 0.0
  %3991 = vmatprep.subr.mxu0 0.0
  %3992 = vmatpush1.msra.mxu0 0.0
  %3993 = vmatprep.subr.mxu0 0.0
  %3994 = vmatpush1.msra.mxu0 0.0
  %3995 = vmatprep.subr.mxu0 0.0
  %3996 = vmatpush1.msra.mxu0 0.0
  %3997 = vmatprep.subr.mxu0 0.0
  %3998 = vmatpush1.msra.mxu0 0.0
  %3999 = vmatprep.subr.mxu0 0.0
  %4000 = vmatpush1.msra.mxu0 0.0
  %4001 = vmatprep.subr.mxu0 0.0
  %4002 = vmatpush1.msra.mxu0 0.0
  %4003 = vmatprep.subr.mxu0 0.0
  %4004 = vmatpush1.msra.mxu0 0.0
  %4005 = vmatprep.subr.mxu0 0.0
  %4006 = vmatpush1.msra.mxu0 0.0
  %4007 = vmatprep.subr.mxu0 0.0
  %4008 = vmatpush1.msra.mxu0 0.0
  %4009 = vmatprep.subr.mxu0 0.0
  %4010 = vmatpush1.msra.mxu0 0.0
  %4011 = vmatprep.subr.mxu0 0.0
  %4012 = vmatpush1.msra.mxu0 0.0
  %4013 = vmatprep.subr.mxu0 0.0
  %4014 = vmatpush1.msra.mxu0 0.0
  %4015 = vmatprep.subr.mxu0 0.0
  %4016 = vmatpush1.msra.mxu0 0.0
  %4017 = vmatprep.subr.mxu0 0.0
  %4018 = vmatpush1.msra.mxu0 0.0
  %4019 = vmatprep.subr.mxu0 0.0
  %4020 = vmatpush1.msra.mxu0 0.0
  %4021 = vmatprep.subr.mxu0 0.0
  %4022 = vmatpush1.msra.mxu0 0.0
  %4023 = vmatprep.subr.mxu0 0.0
  %4024 = vmatpush1.msra.mxu0 0.0
  %4025 = vmatprep.subr.mxu0 0.0
  %4026 = vmatpush1.msra.mxu0 0.0
  %4027 = vmatprep.subr.mxu0 0.0
  %4028 = vmatpush1.msra.mxu0 0.0
  %4029 = vmatprep.subr.mxu0 0.0
  %4030 = vmatpush1.msra.mxu0 0.0
  %4031 = vmatprep.subr.mxu0 0.0
  %4032 = vmatpush1.msra.mxu0 0.0
  %4033 = vmatprep.subr.mxu0 0.0
  %4034 = vmatpush1.msra.mxu0 0.0
  %4035 = vmatprep.subr.mxu0 0.0
  %4036 = vmatpush1.msra.mxu0 0.0
  %4037 = vmatprep.subr.mxu0 0.0
  %4038 = vmatpush1.msra.mxu0 0.0
  %4039 = vmatprep.mubr.f32.mxu0 0.0
  %4040 = vmatmul.mubr.f32.gmra.mrb[0].mxu0 %v3973
  %v4041 = vpop.f32.mrb[0].mxu0
  %v4042 = vadd.f32 0.0, %v4041
  %v4043 = vpop.f32.mrb[0].mxu0
  %4044 = vdwg.mxu0
  %v4045 = vadd.f32 %v3969, %v4042
  %v4046 = vadd.f32 %v2193, %v4045
  %s4047 = scalar_lea.vmem %s13, 1
  %v4048 = vld [vmem:[%s4047] sm:$0x1]
  %v4049 = vmul.f32 %v4046, %v4046
  %v4050 = vsel %vm85, %v4049, 0.0
  %4051 = vadd.xlane.f32.xlu0 %v4050
  %v4052 = vpop.xlane.xlu0 %4051
  %v4053 = vmul.f32 %v4052, %v89
  %v4054 = vadd.f32 %v4053, 1e-06
  %v4055 = vrsqrt.pop %v4054
  %v4056 = vmul.f32 %v4046, %v4055
  %v4058 = vlaneseq
  %v4059 = vshrl.u32 %v4058, 7
  %v4060 = vsub.s32 0, %v4059
  %v4061 = vrot.slane %v4048, %v4060
  %v4063 = vmul.f32 %v4056, %v4061
  %s4064 = scalar_lea.vmem %s14, 32
  %v4065 = vld [vmem:[%s4064] sm:$0xff]
  %v4066 = vld [vmem:[%s4064 + $0x8] sm:$0xff]
  %v4067 = vld [vmem:[%s4064 + $0x10] sm:$0xff]
  %v4068 = vld [vmem:[%s4064 + $0x18] sm:$0xff]
  %v4070 = vsel %vm85, %v4063, 0
  %4072 = vmatprep.subr.mxu0 0.0
  %4073 = vmatpush1.msra.mxu0 %v4065
  %4074 = vmatprep.subr.mxu0 0.0
  %4075 = vmatpush1.msra.mxu0 %v4066
  %4076 = vmatprep.subr.mxu0 0.0
  %4077 = vmatpush1.msra.mxu0 %v4067
  %4078 = vmatprep.subr.mxu0 0.0
  %4079 = vmatpush1.msra.mxu0 %v4068
  %4080 = vmatprep.subr.mxu0 0.0
  %4081 = vmatpush1.msra.mxu0 0.0
  %4082 = vmatprep.subr.mxu0 0.0
  %4083 = vmatpush1.msra.mxu0 0.0
  %4084 = vmatprep.subr.mxu0 0.0
  %4085 = vmatpush1.msra.mxu0 0.0
  %4086 = vmatprep.subr.mxu0 0.0
  %4087 = vmatpush1.msra.mxu0 0.0
  %4088 = vmatprep.subr.mxu0 0.0
  %4089 = vmatpush1.msra.mxu0 0.0
  %4090 = vmatprep.subr.mxu0 0.0
  %4091 = vmatpush1.msra.mxu0 0.0
  %4092 = vmatprep.subr.mxu0 0.0
  %4093 = vmatpush1.msra.mxu0 0.0
  %4094 = vmatprep.subr.mxu0 0.0
  %4095 = vmatpush1.msra.mxu0 0.0
  %4096 = vmatprep.subr.mxu0 0.0
  %4097 = vmatpush1.msra.mxu0 0.0
  %4098 = vmatprep.subr.mxu0 0.0
  %4099 = vmatpush1.msra.mxu0 0.0
  %4100 = vmatprep.subr.mxu0 0.0
  %4101 = vmatpush1.msra.mxu0 0.0
  %4102 = vmatprep.subr.mxu0 0.0
  %4103 = vmatpush1.msra.mxu0 0.0
  %4104 = vmatprep.subr.mxu0 0.0
  %4105 = vmatpush1.msra.mxu0 0.0
  %4106 = vmatprep.subr.mxu0 0.0
  %4107 = vmatpush1.msra.mxu0 0.0
  %4108 = vmatprep.subr.mxu0 0.0
  %4109 = vmatpush1.msra.mxu0 0.0
  %4110 = vmatprep.subr.mxu0 0.0
  %4111 = vmatpush1.msra.mxu0 0.0
  %4112 = vmatprep.subr.mxu0 0.0
  %4113 = vmatpush1.msra.mxu0 0.0
  %4114 = vmatprep.subr.mxu0 0.0
  %4115 = vmatpush1.msra.mxu0 0.0
  %4116 = vmatprep.subr.mxu0 0.0
  %4117 = vmatpush1.msra.mxu0 0.0
  %4118 = vmatprep.subr.mxu0 0.0
  %4119 = vmatpush1.msra.mxu0 0.0
  %4120 = vmatprep.subr.mxu0 0.0
  %4121 = vmatpush1.msra.mxu0 0.0
  %4122 = vmatprep.subr.mxu0 0.0
  %4123 = vmatpush1.msra.mxu0 0.0
  %4124 = vmatprep.subr.mxu0 0.0
  %4125 = vmatpush1.msra.mxu0 0.0
  %4126 = vmatprep.subr.mxu0 0.0
  %4127 = vmatpush1.msra.mxu0 0.0
  %4128 = vmatprep.subr.mxu0 0.0
  %4129 = vmatpush1.msra.mxu0 0.0
  %4130 = vmatprep.subr.mxu0 0.0
  %4131 = vmatpush1.msra.mxu0 0.0
  %4132 = vmatprep.subr.mxu0 0.0
  %4133 = vmatpush1.msra.mxu0 0.0
  %4134 = vmatprep.subr.mxu0 0.0
  %4135 = vmatpush1.msra.mxu0 0.0
  %4136 = vmatprep.mubr.f32.mxu0 0.0
  %4137 = vmatmul.mubr.f32.gmra.mrb[0].mxu0 %v4070
  %v4138 = vpop.f32.mrb[0].mxu0
  %v4139 = vadd.f32 0.0, %v4138
  %v4140 = vpop.f32.mrb[0].mxu0
  %4141 = vdwg.mxu0
  %s4142 = scalar_lea.vmem %s15, 32
  %v4143 = vld [vmem:[%s4142] sm:$0xff]
  %v4144 = vld [vmem:[%s4142 + $0x8] sm:$0xff]
  %v4145 = vld [vmem:[%s4142 + $0x10] sm:$0xff]
  %v4146 = vld [vmem:[%s4142 + $0x18] sm:$0xff]
  %4147 = vmatprep.subr.mxu0 0.0
  %4148 = vmatpush1.msra.mxu0 %v4143
  %4149 = vmatprep.subr.mxu0 0.0
  %4150 = vmatpush1.msra.mxu0 %v4144
  %4151 = vmatprep.subr.mxu0 0.0
  %4152 = vmatpush1.msra.mxu0 %v4145
  %4153 = vmatprep.subr.mxu0 0.0
  %4154 = vmatpush1.msra.mxu0 %v4146
  %4155 = vmatprep.subr.mxu0 0.0
  %4156 = vmatpush1.msra.mxu0 0.0
  %4157 = vmatprep.subr.mxu0 0.0
  %4158 = vmatpush1.msra.mxu0 0.0
  %4159 = vmatprep.subr.mxu0 0.0
  %4160 = vmatpush1.msra.mxu0 0.0
  %4161 = vmatprep.subr.mxu0 0.0
  %4162 = vmatpush1.msra.mxu0 0.0
  %4163 = vmatprep.subr.mxu0 0.0
  %4164 = vmatpush1.msra.mxu0 0.0
  %4165 = vmatprep.subr.mxu0 0.0
  %4166 = vmatpush1.msra.mxu0 0.0
  %4167 = vmatprep.subr.mxu0 0.0
  %4168 = vmatpush1.msra.mxu0 0.0
  %4169 = vmatprep.subr.mxu0 0.0
  %4170 = vmatpush1.msra.mxu0 0.0
  %4171 = vmatprep.subr.mxu0 0.0
  %4172 = vmatpush1.msra.mxu0 0.0
  %4173 = vmatprep.subr.mxu0 0.0
  %4174 = vmatpush1.msra.mxu0 0.0
  %4175 = vmatprep.subr.mxu0 0.0
  %4176 = vmatpush1.msra.mxu0 0.0
  %4177 = vmatprep.subr.mxu0 0.0
  %4178 = vmatpush1.msra.mxu0 0.0
  %4179 = vmatprep.subr.mxu0 0.0
  %4180 = vmatpush1.msra.mxu0 0.0
  %4181 = vmatprep.subr.mxu0 0.0
  %4182 = vmatpush1.msra.mxu0 0.0
  %4183 = vmatprep.subr.mxu0 0.0
  %4184 = vmatpush1.msra.mxu0 0.0
  %4185 = vmatprep.subr.mxu0 0.0
  %4186 = vmatpush1.msra.mxu0 0.0
  %4187 = vmatprep.subr.mxu0 0.0
  %4188 = vmatpush1.msra.mxu0 0.0
  %4189 = vmatprep.subr.mxu0 0.0
  %4190 = vmatpush1.msra.mxu0 0.0
  %4191 = vmatprep.subr.mxu0 0.0
  %4192 = vmatpush1.msra.mxu0 0.0
  %4193 = vmatprep.subr.mxu0 0.0
  %4194 = vmatpush1.msra.mxu0 0.0
  %4195 = vmatprep.subr.mxu0 0.0
  %4196 = vmatpush1.msra.mxu0 0.0
  %4197 = vmatprep.subr.mxu0 0.0
  %4198 = vmatpush1.msra.mxu0 0.0
  %4199 = vmatprep.subr.mxu0 0.0
  %4200 = vmatpush1.msra.mxu0 0.0
  %4201 = vmatprep.subr.mxu0 0.0
  %4202 = vmatpush1.msra.mxu0 0.0
  %4203 = vmatprep.subr.mxu0 0.0
  %4204 = vmatpush1.msra.mxu0 0.0
  %4205 = vmatprep.subr.mxu0 0.0
  %4206 = vmatpush1.msra.mxu0 0.0
  %4207 = vmatprep.subr.mxu0 0.0
  %4208 = vmatpush1.msra.mxu0 0.0
  %4209 = vmatprep.subr.mxu0 0.0
  %4210 = vmatpush1.msra.mxu0 0.0
  %4211 = vmatprep.mubr.f32.mxu0 0.0
  %4212 = vmatmul.mubr.f32.gmra.mrb[0].mxu0 %v4070
  %v4213 = vpop.f32.mrb[0].mxu0
  %v4214 = vadd.f32 0.0, %v4213
  %v4215 = vpop.f32.mrb[0].mxu0
  %4216 = vdwg.mxu0
  %v4217 = vxor.u32 %v4139, 2147483648
  %v4218 = vmul.f32 %v4217, 1.442695
  %v4219 = vpow.pop %v4218
  %v4220 = vadd.f32 %v4219, 1.0
  %v4221 = vrcp.pop %v4220
  %v4222 = vmul.f32 1.0, %v4221
  %v4223 = vmul.f32 %v4139, %v4222
  %v4224 = vmul.f32 %v4223, %v4214
  %s4225 = scalar_lea.vmem %s16, 64
  %v4226 = vld [vmem:[%s4225] sm:$0xff]
  %v4227 = vld [vmem:[%s4225 + $0x8] sm:$0xff]
  %v4228 = vld [vmem:[%s4225 + $0x10] sm:$0xff]
  %v4229 = vld [vmem:[%s4225 + $0x18] sm:$0xff]
  %v4230 = vld [vmem:[%s4225 + $0x20] sm:$0xff]
  %v4231 = vld [vmem:[%s4225 + $0x28] sm:$0xff]
  %v4232 = vld [vmem:[%s4225 + $0x30] sm:$0xff]
  %v4233 = vld [vmem:[%s4225 + $0x38] sm:$0xff]
  %v4235 = vsel %vm2119, %v4224, 0
  %4237 = vmatprep.subr.mxu0 0.0
  %4238 = vmatpush1.msra.mxu0 %v4226
  %4239 = vmatprep.subr.mxu0 0.0
  %4240 = vmatpush1.msra.mxu0 %v4227
  %4241 = vmatprep.subr.mxu0 0.0
  %4242 = vmatpush1.msra.mxu0 %v4228
  %4243 = vmatprep.subr.mxu0 0.0
  %4244 = vmatpush1.msra.mxu0 %v4229
  %4245 = vmatprep.subr.mxu0 0.0
  %4246 = vmatpush1.msra.mxu0 %v4230
  %4247 = vmatprep.subr.mxu0 0.0
  %4248 = vmatpush1.msra.mxu0 %v4231
  %4249 = vmatprep.subr.mxu0 0.0
  %4250 = vmatpush1.msra.mxu0 %v4232
  %4251 = vmatprep.subr.mxu0 0.0
  %4252 = vmatpush1.msra.mxu0 %v4233
  %4253 = vmatprep.subr.mxu0 0.0
  %4254 = vmatpush1.msra.mxu0 0.0
  %4255 = vmatprep.subr.mxu0 0.0
  %4256 = vmatpush1.msra.mxu0 0.0
  %4257 = vmatprep.subr.mxu0 0.0
  %4258 = vmatpush1.msra.mxu0 0.0
  %4259 = vmatprep.subr.mxu0 0.0
  %4260 = vmatpush1.msra.mxu0 0.0
  %4261 = vmatprep.subr.mxu0 0.0
  %4262 = vmatpush1.msra.mxu0 0.0
  %4263 = vmatprep.subr.mxu0 0.0
  %4264 = vmatpush1.msra.mxu0 0.0
  %4265 = vmatprep.subr.mxu0 0.0
  %4266 = vmatpush1.msra.mxu0 0.0
  %4267 = vmatprep.subr.mxu0 0.0
  %4268 = vmatpush1.msra.mxu0 0.0
  %4269 = vmatprep.subr.mxu0 0.0
  %4270 = vmatpush1.msra.mxu0 0.0
  %4271 = vmatprep.subr.mxu0 0.0
  %4272 = vmatpush1.msra.mxu0 0.0
  %4273 = vmatprep.subr.mxu0 0.0
  %4274 = vmatpush1.msra.mxu0 0.0
  %4275 = vmatprep.subr.mxu0 0.0
  %4276 = vmatpush1.msra.mxu0 0.0
  %4277 = vmatprep.subr.mxu0 0.0
  %4278 = vmatpush1.msra.mxu0 0.0
  %4279 = vmatprep.subr.mxu0 0.0
  %4280 = vmatpush1.msra.mxu0 0.0
  %4281 = vmatprep.subr.mxu0 0.0
  %4282 = vmatpush1.msra.mxu0 0.0
  %4283 = vmatprep.subr.mxu0 0.0
  %4284 = vmatpush1.msra.mxu0 0.0
  %4285 = vmatprep.subr.mxu0 0.0
  %4286 = vmatpush1.msra.mxu0 0.0
  %4287 = vmatprep.subr.mxu0 0.0
  %4288 = vmatpush1.msra.mxu0 0.0
  %4289 = vmatprep.subr.mxu0 0.0
  %4290 = vmatpush1.msra.mxu0 0.0
  %4291 = vmatprep.subr.mxu0 0.0
  %4292 = vmatpush1.msra.mxu0 0.0
  %4293 = vmatprep.subr.mxu0 0.0
  %4294 = vmatpush1.msra.mxu0 0.0
  %4295 = vmatprep.subr.mxu0 0.0
  %4296 = vmatpush1.msra.mxu0 0.0
  %4297 = vmatprep.subr.mxu0 0.0
  %4298 = vmatpush1.msra.mxu0 0.0
  %4299 = vmatprep.subr.mxu0 0.0
  %4300 = vmatpush1.msra.mxu0 0.0
  %4301 = vmatprep.mubr.f32.mxu0 0.0
  %4302 = vmatmul.mubr.f32.gmra.mrb[0].mxu0 %v4235
  %v4303 = vpop.f32.mrb[0].mxu0
  %v4304 = vadd.f32 0.0, %v4303
  %v4305 = vpop.f32.mrb[0].mxu0
  %4306 = vdwg.mxu0
  %v4307 = vadd.f32 %v4046, %v4304
  %v4308 = vld [vmem:[%s17] sm:$0x1]
  %v4309 = vmul.f32 %v4307, %v4307
  %v4310 = vsel %vm85, %v4309, 0.0
  %4311 = vadd.xlane.f32.xlu0 %v4310
  %v4312 = vpop.xlane.xlu0 %4311
  %v4313 = vmul.f32 %v4312, %v89
  %v4314 = vadd.f32 %v4313, 1e-06
  %v4315 = vrsqrt.pop %v4314
  %v4316 = vmul.f32 %v4307, %v4315
  %v4318 = vlaneseq
  %v4319 = vshrl.u32 %v4318, 7
  %v4320 = vsub.s32 0, %v4319
  %v4321 = vrot.slane %v4308, %v4320
  %v4323 = vmul.f32 %v4316, %v4321
  %v4324 = vld [vmem:[%s18] sm:$0xff]
  %v4325 = vld [vmem:[%s18 + $0x8] sm:$0xff]
  %v4326 = vld [vmem:[%s18 + $0x10] sm:$0xff]
  %v4327 = vld [vmem:[%s18 + $0x18] sm:$0xff]
  %v4329 = vsel %vm85, %v4323, 0
  %4331 = vmatprep.subr.mxu0 0.0
  %4332 = vmatpush1.msra.mxu0 %v4324
  %4333 = vmatprep.subr.mxu0 0.0
  %4334 = vmatpush1.msra.mxu0 %v4325
  %4335 = vmatprep.subr.mxu0 0.0
  %4336 = vmatpush1.msra.mxu0 %v4326
  %4337 = vmatprep.subr.mxu0 0.0
  %4338 = vmatpush1.msra.mxu0 %v4327
  %4339 = vmatprep.subr.mxu0 0.0
  %4340 = vmatpush1.msra.mxu0 0.0
  %4341 = vmatprep.subr.mxu0 0.0
  %4342 = vmatpush1.msra.mxu0 0.0
  %4343 = vmatprep.subr.mxu0 0.0
  %4344 = vmatpush1.msra.mxu0 0.0
  %4345 = vmatprep.subr.mxu0 0.0
  %4346 = vmatpush1.msra.mxu0 0.0
  %4347 = vmatprep.subr.mxu0 0.0
  %4348 = vmatpush1.msra.mxu0 0.0
  %4349 = vmatprep.subr.mxu0 0.0
  %4350 = vmatpush1.msra.mxu0 0.0
  %4351 = vmatprep.subr.mxu0 0.0
  %4352 = vmatpush1.msra.mxu0 0.0
  %4353 = vmatprep.subr.mxu0 0.0
  %4354 = vmatpush1.msra.mxu0 0.0
  %4355 = vmatprep.subr.mxu0 0.0
  %4356 = vmatpush1.msra.mxu0 0.0
  %4357 = vmatprep.subr.mxu0 0.0
  %4358 = vmatpush1.msra.mxu0 0.0
  %4359 = vmatprep.subr.mxu0 0.0
  %4360 = vmatpush1.msra.mxu0 0.0
  %4361 = vmatprep.subr.mxu0 0.0
  %4362 = vmatpush1.msra.mxu0 0.0
  %4363 = vmatprep.subr.mxu0 0.0
  %4364 = vmatpush1.msra.mxu0 0.0
  %4365 = vmatprep.subr.mxu0 0.0
  %4366 = vmatpush1.msra.mxu0 0.0
  %4367 = vmatprep.subr.mxu0 0.0
  %4368 = vmatpush1.msra.mxu0 0.0
  %4369 = vmatprep.subr.mxu0 0.0
  %4370 = vmatpush1.msra.mxu0 0.0
  %4371 = vmatprep.subr.mxu0 0.0
  %4372 = vmatpush1.msra.mxu0 0.0
  %4373 = vmatprep.subr.mxu0 0.0
  %4374 = vmatpush1.msra.mxu0 0.0
  %4375 = vmatprep.subr.mxu0 0.0
  %4376 = vmatpush1.msra.mxu0 0.0
  %4377 = vmatprep.subr.mxu0 0.0
  %4378 = vmatpush1.msra.mxu0 0.0
  %4379 = vmatprep.subr.mxu0 0.0
  %4380 = vmatpush1.msra.mxu0 0.0
  %4381 = vmatprep.subr.mxu0 0.0
  %4382 = vmatpush1.msra.mxu0 0.0
  %4383 = vmatprep.subr.mxu0 0.0
  %4384 = vmatpush1.msra.mxu0 0.0
  %4385 = vmatprep.subr.mxu0 0.0
  %4386 = vmatpush1.msra.mxu0 0.0
  %4387 = vmatprep.subr.mxu0 0.0
  %4388 = vmatpush1.msra.mxu0 0.0
  %4389 = vmatprep.subr.mxu0 0.0
  %4390 = vmatpush1.msra.mxu0 0.0
  %4391 = vmatprep.subr.mxu0 0.0
  %4392 = vmatpush1.msra.mxu0 0.0
  %4393 = vmatprep.subr.mxu0 0.0
  %4394 = vmatpush1.msra.mxu0 0.0
  %4395 = vmatprep.mubr.f32.mxu0 0.0
  %4396 = vmatmul.mubr.f32.gmra.mrb[0].mxu0 %v4329
  %v4397 = vpop.f32.mrb[0].mxu0
  %v4398 = vadd.f32 0.0, %v4397
  %v4399 = vpop.f32.mrb[0].mxu0
  %4400 = vdwg.mxu0
  %4401 = vst [vmem:[%s19] sm:$0xff] %v4398
  // Predicated region
  $region78: #{model_forward.1} parent=0 // pred_check
    _
  $region79: #{model_forward.1} parent=0 // pred_check_branch
    %4403 = sbr.rel (0) target = $region81
  $region80: #{model_forward.1} parent=0 // pred_region
    _
  $region81: #{model_forward.1} parent=0 // pred_fallthru
    _
  // Predicated region
  $region82: #{model_forward.1} parent=0 // pred_check
    _
  $region83: #{model_forward.1} parent=0 // pred_check_branch
    %4405 = sbr.rel (0) target = $region85
  $region84: #{model_forward.1} parent=0 // pred_region
    _
  $region85: #{model_forward.1} parent=0 // pred_fallthru
    _

</llo_original>
